<compile_context>
chip_gen: v7x
topology: tpu7x:2x2x1
jax: 0.10.0
libtpu: 0.0.40
codegen_flags: <defaults>
</compile_context>

<pallas_src>
import functools

import jax
import jax.numpy as jnp
from jax.experimental import pallas as pl
from jax.experimental.pallas import tpu as pltpu

_LANE = 128          # TPU lane width
_NEG_BIG = -1e30     # log-softmax mask value baked into the padded bias


def _lrelu(v, slope=0.2):  # nn.LeakyReLU(0.2, True)
    return jnp.where(v > 0, v, slope * v)


def d2_kernel(
    x_ref,
    w_map_ref, b_map_ref,       # mapSize -> tile_k column block of 4096 (bf16 W)
    w_map2_ref, b_map2_ref,     # tile_k row block -> mapSize (bias constant)
    w_hd_ref, b_hd_ref,         # mapSize -> 1024 + 128   (hidden | padded dis)
    w_cls_ref, b_cls_ref,       # 1024 -> 128 (pad columns carry -1e30 bias)
    dis_ref, pred_ref, m_ref,
    acc_ref,                    # VMEM (tb, mapSize) f32 accumulator for m
    *, n_hidden,
):
    k = pl.program_id(1)

    @pl.when(k == 0)
    def _():
        acc_ref[...] = jnp.zeros_like(acc_ref)

    # Streamed mapping -> mapping2: per k block of the 4096 hidden dim.
    x = x_ref[...].astype(jnp.bfloat16)
    m1 = _lrelu(
        jnp.dot(x, w_map_ref[...], preferred_element_type=jnp.float32)
        + b_map_ref[...]
    ).astype(jnp.bfloat16)                        # bf16 immediately: one live copy
    acc_ref[...] += jnp.dot(m1, w_map2_ref[...],
                            preferred_element_type=jnp.float32)

    # Tail (dis / hidden / classifier / log-softmax) only on the last k step.
    @pl.when(k == pl.num_programs(1) - 1)
    def _():
        m = _lrelu(acc_ref[...] + b_map2_ref[...])
        m_ref[...] = m

        # hidden + discriminator fused into one matmul over 1024+128 lanes.
        hd = (
            jnp.dot(m.astype(jnp.bfloat16), w_hd_ref[...],
                    preferred_element_type=jnp.float32)
            + b_hd_ref[...]
        )
        h = _lrelu(hd[:, :n_hidden]).astype(jnp.bfloat16)
        dis_ref[...] = hd[:, n_hidden:]           # lane-dense slab; column 0 = dis

        # classifier; pad columns come out at -1e30 straight from the bias.
        logits = (
            jnp.dot(h, w_cls_ref[...], preferred_element_type=jnp.float32)
            + b_cls_ref[...]
        )
        lmax = jnp.max(logits, axis=1, keepdims=True)
        shifted = logits - lmax
        lse = jnp.log(jnp.sum(jnp.exp(shifted), axis=1, keepdims=True))
        pred_ref[...] = shifted - lse


def prepare_d2_params(params):
    """One-time weight prep (hoisted out of the forward path).

    Casts weights to bf16, fuses the N=1 discriminator into the hidden matmul
    as a 128-lane block, pads the classifier to 128 lanes, and bakes the
    log-softmax pad mask into the classifier bias.
    """
    n_hidden = params["w_hid"].shape[1]
    n_class = params["w_cls"].shape[1]
    assert n_class <= _LANE, "classifier padding assumes n_class <= 128"
    assert n_hidden % _LANE == 0

    bf16 = lambda w: w.astype(jnp.bfloat16)

    w_hd = jnp.concatenate(
        [params["w_hid"], jnp.pad(params["w_dis"], ((0, 0), (0, _LANE - 1)))],
        axis=1)
    b_hd = jnp.concatenate(
        [params["b_hid"], jnp.pad(params["b_dis"], ((0, 0), (0, _LANE - 1)))],
        axis=1)

    pad_c = _LANE - n_class
    w_cls = jnp.pad(params["w_cls"], ((0, 0), (0, pad_c)))
    b_cls = jnp.pad(params["b_cls"], ((0, 0), (0, pad_c)),
                    constant_values=_NEG_BIG)      # mask baked into the bias

    return dict(
        w_map=bf16(params["w_map"]), b_map=params["b_map"],
        w_map2=bf16(params["w_map2"]), b_map2=params["b_map2"],
        w_hd=bf16(w_hd), b_hd=b_hd,
        w_cls=bf16(w_cls), b_cls=b_cls,
        n_hidden=n_hidden, n_class=n_class,
    )


def d2_forward(x, prep, *, tile_b=256, tile_k=1024):
    """Fused D2 forward. x: [B, mapSize] f32 -> (dis_out, log_probs, m)."""
    B, map_size = x.shape
    n_hidden = prep["n_hidden"]
    n_class = prep["n_class"]
    K = prep["w_map"].shape[1]                    # 4096
    assert K % tile_k == 0

    tb = min(tile_b, B)
    grid = (pl.cdiv(B, tb), K // tile_k)

    # Constant-block spec: weights/biases stay resident in VMEM across steps.
    def const_spec(a):
        return pl.BlockSpec(a.shape, lambda i, k: (0, 0))

    in_specs = [
        pl.BlockSpec((tb, map_size), lambda i, k: (i, 0)),      # x (resident over k)
        pl.BlockSpec((map_size, tile_k), lambda i, k: (0, k)),  # w_map col block
        pl.BlockSpec((1, tile_k), lambda i, k: (0, k)),         # b_map block
        pl.BlockSpec((tile_k, map_size), lambda i, k: (k, 0)),  # w_map2 row block
        const_spec(prep["b_map2"]),
        const_spec(prep["w_hd"]),
        const_spec(prep["b_hd"]),
        const_spec(prep["w_cls"]),
        const_spec(prep["b_cls"]),
    ]

    out_shapes = (
        jax.ShapeDtypeStruct((B, _LANE), jnp.float32),          # dis slab (col 0)
        jax.ShapeDtypeStruct((B, _LANE), jnp.float32),          # padded log-probs
        jax.ShapeDtypeStruct((B, map_size), jnp.float32),       # m
    )
    out_specs = (
        pl.BlockSpec((tb, _LANE), lambda i, k: (i, 0)),
        pl.BlockSpec((tb, _LANE), lambda i, k: (i, 0)),
        pl.BlockSpec((tb, map_size), lambda i, k: (i, 0)),
    )

    # Advisory cost estimate for XLA scheduling.
    flops = 2 * B * (2 * map_size * K
                     + map_size * (n_hidden + _LANE)
                     + n_hidden * _LANE)
    weight_bytes = sum(
        int(prep[name].size) * prep[name].dtype.itemsize
        for name in ("w_map", "b_map", "w_map2", "b_map2",
                     "w_hd", "b_hd", "w_cls", "b_cls"))
    bytes_accessed = (x.size * 4 + weight_bytes
                      + (B * _LANE * 2 + B * map_size) * 4)
    cost = pl.CostEstimate(flops=int(flops),
                           transcendentals=int(B * (_LANE + 1)),
                           bytes_accessed=int(bytes_accessed))

    dis_pad, pred_pad, m = pl.pallas_call(
        functools.partial(d2_kernel, n_hidden=n_hidden),
        out_shape=out_shapes,
        grid=grid,
        in_specs=in_specs,
        out_specs=out_specs,
        scratch_shapes=[pltpu.VMEM((tb, map_size), jnp.float32)],
        compiler_params=pltpu.CompilerParams(
            dimension_semantics=("parallel", "arbitrary"),
            vmem_limit_bytes=32 * 1024 * 1024,
        ),
        cost_estimate=cost,
    )(x, prep["w_map"], prep["b_map"], prep["w_map2"], prep["b_map2"],
      prep["w_hd"], prep["b_hd"], prep["w_cls"], prep["b_cls"])

    return dis_pad[:, :1], pred_pad[:, :n_class], m


def init_d2_params(key, map_size, nclass_seen):
    """Deterministic init matching weights_init: W ~ N(0, 0.02), b = 0.

    Weights are stored transposed relative to PyTorch ((in, out) layout).
    Biases are stored as (1, out) for clean 2-D broadcasting in VMEM.
    """
    keys = jax.random.split(key, 5)

    def lin(k, fan_in, fan_out):
        w = 0.02 * jax.random.normal(k, (fan_in, fan_out), dtype=jnp.float32)
        b = jnp.zeros((1, fan_out), dtype=jnp.float32)
        return w, b

    w_map, b_map = lin(keys[0], map_size, 4096)
    w_map2, b_map2 = lin(keys[1], 4096, map_size)
    w_dis, b_dis = lin(keys[2], map_size, 1)
    w_hid, b_hid = lin(keys[3], map_size, 1024)
    w_cls, b_cls = lin(keys[4], 1024, nclass_seen)

    return dict(
        w_map=w_map, b_map=b_map,
        w_map2=w_map2, b_map2=b_map2,
        w_dis=w_dis, b_dis=b_dis,
        w_hid=w_hid, b_hid=b_hid,
        w_cls=w_cls, b_cls=b_cls,
    )


def d2_reference(x, p):
    """Pure-JAX f32 reference for correctness checking."""
    m = _lrelu(x @ p["w_map"] + p["b_map"])
    m = _lrelu(m @ p["w_map2"] + p["b_map2"])
    dis = m @ p["w_dis"] + p["b_dis"]
    h = _lrelu(m @ p["w_hid"] + p["b_hid"])
    logits = h @ p["w_cls"] + p["b_cls"]
    pred = jax.nn.log_softmax(logits, axis=1)
    return dis, pred, m


if __name__ == "__main__":
    # Small synthetic config: opt.mapSize = 256, opt.nclass_seen = 16, batch = 8.
    MAP_SIZE = 256
    NCLASS_SEEN = 16
    BATCH = 8

    key = jax.random.PRNGKey(0)
    k_param, k_x = jax.random.split(key)

    params = init_d2_params(k_param, MAP_SIZE, NCLASS_SEEN)
    prep = prepare_d2_params(params)   # one-time weight prep (hoisted out of fwd)
    x = jax.random.normal(k_x, (BATCH, MAP_SIZE), dtype=jnp.float32)

    dis_out, pred, m = jax.block_until_ready(d2_forward(x, prep))

    # Sanity check against plain-JAX f32 reference (bf16 weights => loose tol).
    dis_ref, pred_ref, m_ref = d2_reference(x, params)
    assert dis_out.shape == (BATCH, 1)
    assert pred.shape == (BATCH, NCLASS_SEEN)
    assert m.shape == (BATCH, MAP_SIZE)
    assert jnp.allclose(dis_out, dis_ref, atol=3e-2, rtol=3e-2)
    assert jnp.allclose(pred, pred_ref, atol=3e-2, rtol=3e-2)
    assert jnp.allclose(m, m_ref, atol=3e-2, rtol=3e-2)

    print("KERNEL_OK")
</pallas_src>

<mosaic_0001>
module attributes {stable_mosaic.version = 11 : i64} {
  func.func @d2_kernel(%arg0: i32, %arg1: i32, %arg2: memref<8x256xf32, #tpu.memory_space<vmem>>, %arg3: memref<256x1024xbf16, #tpu.memory_space<vmem>>, %arg4: memref<1x1024xf32, #tpu.memory_space<vmem>>, %arg5: memref<1024x256xbf16, #tpu.memory_space<vmem>>, %arg6: memref<1x256xf32, #tpu.memory_space<vmem>>, %arg7: memref<256x1152xbf16, #tpu.memory_space<vmem>>, %arg8: memref<1x1152xf32, #tpu.memory_space<vmem>>, %arg9: memref<1024x128xbf16, #tpu.memory_space<vmem>>, %arg10: memref<1x128xf32, #tpu.memory_space<vmem>>, %arg11: memref<8x128xf32, #tpu.memory_space<vmem>>, %arg12: memref<8x128xf32, #tpu.memory_space<vmem>>, %arg13: memref<8x256xf32, #tpu.memory_space<vmem>>, %arg14: memref<8x256xf32, #tpu.memory_space<vmem>>) attributes {dimension_semantics = [#tpu.dimension_semantics<parallel>, #tpu.dimension_semantics<arbitrary>], iteration_bounds = array<i64: 1, 4>, scalar_prefetch = 0 : i64, scratch_operands = 1 : i64, tpu.core_type = #tpu.core_type<tc>, window_params = [{transform_indices = @transform_0, window_bounds = array<i64: 8, 256>}, {transform_indices = @transform_1, window_bounds = array<i64: 256, 1024>}, {transform_indices = @transform_2, window_bounds = array<i64: 1, 1024>}, {transform_indices = @transform_3, window_bounds = array<i64: 1024, 256>}, {pipeline_mode = #tpu.pipeline_mode<synchronous>, transform_indices = @transform_4, window_bounds = array<i64: 1, 256>}, {pipeline_mode = #tpu.pipeline_mode<synchronous>, transform_indices = @transform_5, window_bounds = array<i64: 256, 1152>}, {pipeline_mode = #tpu.pipeline_mode<synchronous>, transform_indices = @transform_6, window_bounds = array<i64: 1, 1152>}, {pipeline_mode = #tpu.pipeline_mode<synchronous>, transform_indices = @transform_7, window_bounds = array<i64: 1024, 128>}, {pipeline_mode = #tpu.pipeline_mode<synchronous>, transform_indices = @transform_8, window_bounds = array<i64: 1, 128>}, {transform_indices = @transform_9, window_bounds = array<i64: 8, 128>}, {transform_indices = @transform_10, window_bounds = array<i64: 8, 128>}, {transform_indices = @transform_11, window_bounds = array<i64: 8, 256>}]} {
    %c0_i32 = arith.constant 0 : i32
    %0 = arith.cmpi eq, %arg1, %c0_i32 : i32
    %1 = arith.extui %0 : i1 to i32
    %c0_i32_0 = arith.constant 0 : i32
    %2 = arith.cmpi ne, %1, %c0_i32_0 : i32
    scf.if %2 {
      %cst_16 = arith.constant 0.000000e+00 : f32
      %24 = vector.broadcast %cst_16 : f32 to vector<8x256xf32>
      %c0_17 = arith.constant 0 : index
      %c0_18 = arith.constant 0 : index
      %25 = vector.load %arg14[%c0_17, %c0_18] : memref<8x256xf32, #tpu.memory_space<vmem>>, vector<8x256xf32>
      tpu.vector_store %arg14[%c0_17, %c0_18], %24 {strides = array<i32>} : memref<8x256xf32, #tpu.memory_space<vmem>>, vector<8x256xf32>,
    } else {
    }
    %c0 = arith.constant 0 : index
    %c0_1 = arith.constant 0 : index
    %3 = vector.load %arg2[%c0, %c0_1] : memref<8x256xf32, #tpu.memory_space<vmem>>, vector<8x256xf32>
    %4 = arith.truncf %3 : vector<8x256xf32> to vector<8x256xbf16>
    %c0_2 = arith.constant 0 : index
    %c0_3 = arith.constant 0 : index
    %5 = vector.load %arg3[%c0_2, %c0_3] : memref<256x1024xbf16, #tpu.memory_space<vmem>>, vector<256x1024xbf16>
    %cst = arith.constant dense<0.000000e+00> : vector<8x1024xf32>
    %6 = tpu.matmul %4, %5, %cst {dimension_numbers = #tpu.dot_dimension_numbers<[1], [0], [0], [1], [0, 0, 1, 1], [], []>} : vector<8x256xbf16>, vector<256x1024xbf16>, vector<8x1024xf32> -> vector<8x1024xf32>
    %c0_4 = arith.constant 0 : index
    %c0_5 = arith.constant 0 : index
    %7 = vector.load %arg4[%c0_4, %c0_5] : memref<1x1024xf32, #tpu.memory_space<vmem>>, vector<1x1024xf32>
    %8 = vector.broadcast %7 : vector<1x1024xf32> to vector<8x1024xf32>
    %9 = arith.addf %6, %8 : vector<8x1024xf32>
    %cst_6 = arith.constant 0.000000e+00 : f32
    %10 = vector.broadcast %cst_6 : f32 to vector<8x1024xf32>
    %11 = arith.cmpf ogt, %9, %10 : vector<8x1024xf32>
    %cst_7 = arith.constant 2.000000e-01 : f32
    %12 = vector.broadcast %cst_7 : f32 to vector<8x1024xf32>
    %13 = arith.mulf %12, %9 : vector<8x1024xf32>
    %14 = arith.select %11, %9, %13 : vector<8x1024xi1>, vector<8x1024xf32>
    %15 = arith.truncf %14 : vector<8x1024xf32> to vector<8x1024xbf16>
    %c0_8 = arith.constant 0 : index
    %c0_9 = arith.constant 0 : index
    %16 = vector.load %arg14[%c0_8, %c0_9] : memref<8x256xf32, #tpu.memory_space<vmem>>, vector<8x256xf32>
    %c0_10 = arith.constant 0 : index
    %c0_11 = arith.constant 0 : index
    %17 = vector.load %arg5[%c0_10, %c0_11] : memref<1024x256xbf16, #tpu.memory_space<vmem>>, vector<1024x256xbf16>
    %cst_12 = arith.constant dense<0.000000e+00> : vector<8x256xf32>
    %18 = tpu.matmul %15, %17, %cst_12 {dimension_numbers = #tpu.dot_dimension_numbers<[1], [0], [0], [1], [0, 0, 1, 1], [], []>} : vector<8x1024xbf16>, vector<1024x256xbf16>, vector<8x256xf32> -> vector<8x256xf32>
    %19 = arith.addf %16, %18 : vector<8x256xf32>
    %c0_13 = arith.constant 0 : index
    %c0_14 = arith.constant 0 : index
    %20 = vector.load %arg14[%c0_13, %c0_14] : memref<8x256xf32, #tpu.memory_space<vmem>>, vector<8x256xf32>
    tpu.vector_store %arg14[%c0_13, %c0_14], %19 {strides = array<i32>} : memref<8x256xf32, #tpu.memory_space<vmem>>, vector<8x256xf32>,
    %c3_i32 = arith.constant 3 : i32
    %21 = arith.cmpi eq, %arg1, %c3_i32 : i32
    %22 = arith.extui %21 : i1 to i32
    %c0_i32_15 = arith.constant 0 : i32
    %23 = arith.cmpi ne, %22, %c0_i32_15 : i32
    scf.if %23 {
      %c0_16 = arith.constant 0 : index
      %c0_17 = arith.constant 0 : index
      %24 = vector.load %arg14[%c0_16, %c0_17] : memref<8x256xf32, #tpu.memory_space<vmem>>, vector<8x256xf32>
      %c0_18 = arith.constant 0 : index
      %c0_19 = arith.constant 0 : index
      %25 = vector.load %arg6[%c0_18, %c0_19] : memref<1x256xf32, #tpu.memory_space<vmem>>, vector<1x256xf32>
      %26 = vector.broadcast %25 : vector<1x256xf32> to vector<8x256xf32>
      %27 = arith.addf %24, %26 : vector<8x256xf32>
      %cst_20 = arith.constant 0.000000e+00 : f32
      %28 = vector.broadcast %cst_20 : f32 to vector<8x256xf32>
      %29 = arith.cmpf ogt, %27, %28 : vector<8x256xf32>
      %cst_21 = arith.constant 2.000000e-01 : f32
      %30 = vector.broadcast %cst_21 : f32 to vector<8x256xf32>
      %31 = arith.mulf %30, %27 : vector<8x256xf32>
      %32 = arith.select %29, %27, %31 : vector<8x256xi1>, vector<8x256xf32>
      %c0_22 = arith.constant 0 : index
      %c0_23 = arith.constant 0 : index
      %33 = vector.load %arg13[%c0_22, %c0_23] : memref<8x256xf32, #tpu.memory_space<vmem>>, vector<8x256xf32>
      tpu.vector_store %arg13[%c0_22, %c0_23], %32 {strides = array<i32>} : memref<8x256xf32, #tpu.memory_space<vmem>>, vector<8x256xf32>,
      %34 = arith.truncf %32 : vector<8x256xf32> to vector<8x256xbf16>
      %c0_24 = arith.constant 0 : index
      %c0_25 = arith.constant 0 : index
      %35 = vector.load %arg7[%c0_24, %c0_25] : memref<256x1152xbf16, #tpu.memory_space<vmem>>, vector<256x1152xbf16>
      %cst_26 = arith.constant dense<0.000000e+00> : vector<8x1152xf32>
      %36 = tpu.matmul %34, %35, %cst_26 {dimension_numbers = #tpu.dot_dimension_numbers<[1], [0], [0], [1], [0, 0, 1, 1], [], []>} : vector<8x256xbf16>, vector<256x1152xbf16>, vector<8x1152xf32> -> vector<8x1152xf32>
      %c0_27 = arith.constant 0 : index
      %c0_28 = arith.constant 0 : index
      %37 = vector.load %arg8[%c0_27, %c0_28] : memref<1x1152xf32, #tpu.memory_space<vmem>>, vector<1x1152xf32>
      %38 = vector.broadcast %37 : vector<1x1152xf32> to vector<8x1152xf32>
      %39 = arith.addf %36, %38 : vector<8x1152xf32>
      %40 = vector.extract_strided_slice %39 {offsets = [0, 0], sizes = [8, 1024], strides = [1, 1]} : vector<8x1152xf32> to vector<8x1024xf32>
      %cst_29 = arith.constant 0.000000e+00 : f32
      %41 = vector.broadcast %cst_29 : f32 to vector<8x1024xf32>
      %42 = arith.cmpf ogt, %40, %41 : vector<8x1024xf32>
      %cst_30 = arith.constant 2.000000e-01 : f32
      %43 = vector.broadcast %cst_30 : f32 to vector<8x1024xf32>
      %44 = arith.mulf %43, %40 : vector<8x1024xf32>
      %45 = arith.select %42, %40, %44 : vector<8x1024xi1>, vector<8x1024xf32>
      %46 = arith.truncf %45 : vector<8x1024xf32> to vector<8x1024xbf16>
      %47 = vector.extract_strided_slice %39 {offsets = [0, 1024], sizes = [8, 128], strides = [1, 1]} : vector<8x1152xf32> to vector<8x128xf32>
      %c0_31 = arith.constant 0 : index
      %c0_32 = arith.constant 0 : index
      %48 = vector.load %arg11[%c0_31, %c0_32] : memref<8x128xf32, #tpu.memory_space<vmem>>, vector<8x128xf32>
      tpu.vector_store %arg11[%c0_31, %c0_32], %47 {strides = array<i32>} : memref<8x128xf32, #tpu.memory_space<vmem>>, vector<8x128xf32>,
      %c0_33 = arith.constant 0 : index
      %c0_34 = arith.constant 0 : index
      %49 = vector.load %arg9[%c0_33, %c0_34] : memref<1024x128xbf16, #tpu.memory_space<vmem>>, vector<1024x128xbf16>
      %cst_35 = arith.constant dense<0.000000e+00> : vector<8x128xf32>
      %50 = tpu.matmul %46, %49, %cst_35 {dimension_numbers = #tpu.dot_dimension_numbers<[1], [0], [0], [1], [0, 0, 1, 1], [], []>} : vector<8x1024xbf16>, vector<1024x128xbf16>, vector<8x128xf32> -> vector<8x128xf32>
      %c0_36 = arith.constant 0 : index
      %c0_37 = arith.constant 0 : index
      %51 = vector.load %arg10[%c0_36, %c0_37] : memref<1x128xf32, #tpu.memory_space<vmem>>, vector<1x128xf32>
      %52 = vector.broadcast %51 : vector<1x128xf32> to vector<8x128xf32>
      %53 = arith.addf %50, %52 : vector<8x128xf32>
      %cst_38 = arith.constant dense<0xFF800000> : vector<8xf32>
      %54 = vector.multi_reduction <maximumf>, %53, %cst_38 [1] : vector<8x128xf32> to vector<8xf32>
      %55 = vector.shape_cast %54 : vector<8xf32> to vector<8x1xf32>
      %56 = vector.broadcast %55 : vector<8x1xf32> to vector<8x128xf32>
      %57 = arith.subf %53, %56 : vector<8x128xf32>
      %58 = math.exp %57 : vector<8x128xf32>
      %cst_39 = arith.constant dense<0.000000e+00> : vector<8xf32>
      %59 = vector.multi_reduction <add>, %58, %cst_39 [1] : vector<8x128xf32> to vector<8xf32>
      %60 = vector.shape_cast %59 : vector<8xf32> to vector<8x1xf32>
      %61 = math.log %60 : vector<8x1xf32>
      %62 = vector.broadcast %61 : vector<8x1xf32> to vector<8x128xf32>
      %63 = arith.subf %57, %62 : vector<8x128xf32>
      %c0_40 = arith.constant 0 : index
      %c0_41 = arith.constant 0 : index
      %64 = vector.load %arg12[%c0_40, %c0_41] : memref<8x128xf32, #tpu.memory_space<vmem>>, vector<8x128xf32>
      tpu.vector_store %arg12[%c0_40, %c0_41], %63 {strides = array<i32>} : memref<8x128xf32, #tpu.memory_space<vmem>>, vector<8x128xf32>,
    } else {
    }
    return
  }
  func.func @transform_0(%arg0: i32, %arg1: i32) -> (i32, i32) {
    %c0_i32 = arith.constant 0 : i32
    %c0_i32_0 = arith.constant 0 : i32
    return %arg0, %c0_i32 : i32, i32
  }
  func.func @transform_1(%arg0: i32, %arg1: i32) -> (i32, i32) {
    %c0_i32 = arith.constant 0 : i32
    %c0_i32_0 = arith.constant 0 : i32
    return %c0_i32, %arg1 : i32, i32
  }
  func.func @transform_2(%arg0: i32, %arg1: i32) -> (i32, i32) {
    %c0_i32 = arith.constant 0 : i32
    %c0_i32_0 = arith.constant 0 : i32
    return %c0_i32, %arg1 : i32, i32
  }
  func.func @transform_3(%arg0: i32, %arg1: i32) -> (i32, i32) {
    %c0_i32 = arith.constant 0 : i32
    %c0_i32_0 = arith.constant 0 : i32
    return %arg1, %c0_i32 : i32, i32
  }
  func.func @transform_4(%arg0: i32, %arg1: i32) -> (i32, i32) {
    %c0_i32 = arith.constant 0 : i32
    %c0_i32_0 = arith.constant 0 : i32
    %c0_i32_1 = arith.constant 0 : i32
    return %c0_i32, %c0_i32_0 : i32, i32
  }
  func.func @transform_5(%arg0: i32, %arg1: i32) -> (i32, i32) {
    %c0_i32 = arith.constant 0 : i32
    %c0_i32_0 = arith.constant 0 : i32
    %c0_i32_1 = arith.constant 0 : i32
    return %c0_i32, %c0_i32_0 : i32, i32
  }
  func.func @transform_6(%arg0: i32, %arg1: i32) -> (i32, i32) {
    %c0_i32 = arith.constant 0 : i32
    %c0_i32_0 = arith.constant 0 : i32
    %c0_i32_1 = arith.constant 0 : i32
    return %c0_i32, %c0_i32_0 : i32, i32
  }
  func.func @transform_7(%arg0: i32, %arg1: i32) -> (i32, i32) {
    %c0_i32 = arith.constant 0 : i32
    %c0_i32_0 = arith.constant 0 : i32
    %c0_i32_1 = arith.constant 0 : i32
    return %c0_i32, %c0_i32_0 : i32, i32
  }
  func.func @transform_8(%arg0: i32, %arg1: i32) -> (i32, i32) {
    %c0_i32 = arith.constant 0 : i32
    %c0_i32_0 = arith.constant 0 : i32
    %c0_i32_1 = arith.constant 0 : i32
    return %c0_i32, %c0_i32_0 : i32, i32
  }
  func.func @transform_9(%arg0: i32, %arg1: i32) -> (i32, i32) {
    %c0_i32 = arith.constant 0 : i32
    %c0_i32_0 = arith.constant 0 : i32
    return %arg0, %c0_i32 : i32, i32
  }
  func.func @transform_10(%arg0: i32, %arg1: i32) -> (i32, i32) {
    %c0_i32 = arith.constant 0 : i32
    %c0_i32_0 = arith.constant 0 : i32
    return %arg0, %c0_i32 : i32, i32
  }
  func.func @transform_11(%arg0: i32, %arg1: i32) -> (i32, i32) {
    %c0_i32 = arith.constant 0 : i32
    %c0_i32_0 = arith.constant 0 : i32
    return %arg0, %c0_i32 : i32, i32
  }
}

</mosaic_0001>

<llo_original>
// kernel: tpu_custom_call.1
$region0: #{tpu_custom_call.1}
  #allocation0 [shape = 'u32[]', space=smem, size = 0x4, offset = 0x4, fixed_abs, tag = 'smem constant byte address 0x4 - core index']
  #allocation1 [shape = 'u32[144,128]{1,0:T(1,128)}', space=vmem, size = 0x12000, scoped, tag = 'internal scratch']
  #allocation2 [shape = 'f32[8,256]{1,0:T(8,128)}', space=vmem, size = 0x2000, scoped, tag = 'scratch operand']
  %s0 = inlined_call_operand.hbm [shape: f32[8,256], index: 0, kind: input, shape index: {}]
  %s1 = inlined_call_operand.hbm [shape: bf16[256,4096], index: 1, kind: input, shape index: {}]
  %s2 = inlined_call_operand.hbm [shape: f32[1,4096], index: 2, kind: input, shape index: {}]
  %s3 = inlined_call_operand.hbm [shape: bf16[4096,256], index: 3, kind: input, shape index: {}]
  %s4 = inlined_call_operand.hbm [shape: f32[1,256], index: 4, kind: input, shape index: {}]
  %s5 = inlined_call_operand.hbm [shape: bf16[256,1152], index: 5, kind: input, shape index: {}]
  %s6 = inlined_call_operand.hbm [shape: f32[1,1152], index: 6, kind: input, shape index: {}]
  %s7 = inlined_call_operand.hbm [shape: bf16[1024,128], index: 7, kind: input, shape index: {}]
  %s8 = inlined_call_operand.hbm [shape: f32[1,128], index: 8, kind: input, shape index: {}]
  %s9 = inlined_call_operand.hbm [shape: f32[8,128], index: 9, kind: output, shape index: {0}]
  %s10 = inlined_call_operand.hbm [shape: f32[8,128], index: 10, kind: output, shape index: {1}]
  %s11 = inlined_call_operand.hbm [shape: f32[8,256], index: 11, kind: output, shape index: {2}]
  %12 = xla_tuple %s9, %s10, %s11
  %s13 = sld [smem:[#allocation0]]
  $region129: #{tpu_custom_call.1} parent=0
    _
  %s15 = ssub.s32 1, %s13
  %s16 = scalar_select 0, %s15, %s13
  $region1: #{tpu_custom_call.1} parent=0
    #allocation3 [shape = 'u8[8192]{0}', space=vmem, size = 0x2000, scoped, tag = 'input window, operand 0, single buffered']
    #allocation4 [shape = 's32[2]{0}', space=sflag, size = 0x8, scoped, tag = 'scoped memory for tpu_custom_call.1']
    #allocation5 [shape = 's32[2]{0}', space=sflag, size = 0x8, scoped, tag = 'scoped memory for tpu_custom_call.1']
    #allocation6 [shape = 'u8[1048576]{0}', space=vmem, size = 0x100000, scoped, tag = 'input window, operand 1']
    #allocation7 [shape = 's32[2]{0}', space=sflag, size = 0x8, scoped, tag = 'scoped memory for tpu_custom_call.1']
    #allocation8 [shape = 'u8[8192]{0}', space=vmem, size = 0x2000, scoped, tag = 'input window, operand 2']
    #allocation9 [shape = 'u8[1048576]{0}', space=vmem, size = 0x100000, scoped, tag = 'input window, operand 3']
    #allocation10 [shape = 's32[2]{0}', space=sflag, size = 0x8, scoped, tag = 'scoped memory for tpu_custom_call.1']
    #allocation11 [shape = 'u8[1024]{0}', space=vmem, size = 0x400, scoped, tag = 'input window, operand 4, single buffered']
    #allocation12 [shape = 'u8[589824]{0}', space=vmem, size = 0x90000, scoped, tag = 'input window, operand 5, single buffered']
    #allocation13 [shape = 's32[1]{0}', space=sflag, size = 0x4, scoped, tag = 'scoped memory for tpu_custom_call.1']
    #allocation14 [shape = 'u8[4608]{0}', space=vmem, size = 0x1400, scoped, tag = 'input window, operand 6, single buffered']
    #allocation15 [shape = 'u8[262144]{0}', space=vmem, size = 0x40000, scoped, tag = 'input window, operand 7, single buffered']
    #allocation16 [shape = 's32[1]{0}', space=sflag, size = 0x4, scoped, tag = 'scoped memory for tpu_custom_call.1']
    #allocation17 [shape = 'u8[512]{0}', space=vmem, size = 0x400, scoped, tag = 'input window, operand 8, single buffered']
    #allocation18 [shape = 'u8[4096]{0}', space=vmem, size = 0x1000, scoped, tag = 'output window, operand 0, single buffered']
    #allocation19 [shape = 'u8[4096]{0}', space=vmem, size = 0x1000, scoped, tag = 'output window, operand 1, single buffered']
    #allocation20 [shape = 's32[1]{0}', space=sflag, size = 0x4, scoped, tag = 'scoped memory for tpu_custom_call.1']
    #allocation21 [shape = 'u8[8192]{0}', space=vmem, size = 0x2000, scoped, tag = 'output window, operand 2, single buffered']
    %17 = vsyncpa [#allocation4], 0
    %18 = vsyncpa [#allocation7], 0
    %s19 = scalar_lea.sflag [#allocation7], 1
    %20 = vsyncpa %s19, 0
    %21 = vsyncpa [#allocation10], 0
    %s22 = scalar_lea.sflag [#allocation10], 1
    %23 = vsyncpa %s22, 0
    %24 = vsyncpa [#allocation13], 0
    %25 = vsyncpa [#allocation16], 0
    %26 = vsyncpa [#allocation5], 0
    %27 = vsyncpa [#allocation20], 0
    loop: start=0, step=1, limit=6
    $region2: #{tpu_custom_call.1} parent=1 // loop_pre_header
      _
    $region3: #{tpu_custom_call.1} parent=1 // loop_header
      %s29 = sphi 0, %s33
      %p30 = scmp.ge.s32.totalorder %s29, 6
      %s36 = sphi 0, %s48
      %s37 = sphi 0, %s44
      %s38 = sphi 0, %s36
      %s39 = sphi 0, %s37
      %s40 = sphi 0, %s38
      %s41 = sphi 0, %s39
      %s51 = sphi 0, %s53
      %s54 = sphi 0, %s51
      %s55 = sphi 0, %s54
      %s71 = sphi 0, %s55
      %s77 = sphi 0, %s79
      %s80 = sphi 0, %s77
      %s81 = sphi 0, %s80
      %s97 = sphi 0, %s81
      %s103 = sphi 0, %s105
      %s106 = sphi 0, %s103
      %s107 = sphi 0, %s106
      %s123 = sphi 0, %s107
      %s129 = sphi 0, %s131
      %s132 = sphi 0, %s129
      %s133 = sphi 0, %s132
      %s149 = sphi 0, %s133
      %s153 = sphi 0, %s153
      %s155 = sphi 0, %s153
      %s156 = sphi 0, %s155
      %s170 = sphi 0, %s156
      %s174 = sphi 0, %s174
      %s176 = sphi 0, %s174
      %s177 = sphi 0, %s176
      %s191 = sphi 0, %s177
      %s195 = sphi 0, %s195
      %s197 = sphi 0, %s195
      %s198 = sphi 0, %s197
      %s212 = sphi 0, %s198
      %s216 = sphi 0, %s216
      %s218 = sphi 0, %s216
      %s219 = sphi 0, %s218
      %s233 = sphi 0, %s219
      %s237 = sphi 0, %s237
      %s239 = sphi 0, %s237
      %s240 = sphi 0, %s239
      %s254 = sphi 0, %s240
      %s260 = sphi 0, %s262
      %s263 = sphi 0, %s260
      %s264 = sphi 0, %s263
      %s280 = sphi 0, %s264
      %s286 = sphi 0, %s288
      %s289 = sphi 0, %s286
      %s290 = sphi 0, %s289
      %s306 = sphi 0, %s290
      %s312 = sphi 0, %s314
      %s315 = sphi 0, %s312
      %s316 = sphi 0, %s315
      %s332 = sphi 0, %s316
    $region4: #{tpu_custom_call.1} parent=1 // loop_header_branch
      %32 = sbr.rel (%p30) target = $region8
    $region5: #{tpu_custom_call.1} parent=1 // loop_body
      %s34 = ssub.s32 %s29, 1
      %s35 = ssub.s32 %s29, 2
      %s42 = sadd.s32 1, %s37
      %p43 = scmp.ge.s32.totalorder %s42, 4
      %s44 = scalar_select %p43, 0, %s42
      %s45 = sadd.s32 1, %s36
      %s46 = scalar_select %p43, %s45, %s36
      %p47 = scmp.ge.s32.totalorder %s46, 1
      %s48 = scalar_select %p47, 0, %s46
      %s49 = ssub.s32 %s36, %s48
      %p50 = scmp.eq.s32.totalorder %s49, 0
      %s52 = sadd.s32 %s51, 1
      %s53 = scalar_select %p50, %s51, %s52
      %p56 = pneg %p50
      %p57 = scmp.eq.s32.totalorder %s29, 3
      %p58 = por %p56, %p57
      %p59 = scmp.ne.s32.totalorder %s51, %s54
      %p60 = scmp.eq.s32.totalorder %s29, 0
      %p61 = por %p59, %p60
      %p62 = scmp.ne.s32.totalorder %s51, %s54
      %p63 = scmp.eq.s32.totalorder %s34, 3
      %p64 = por %p62, %p63
      %p65 = scmp.ne.s32.totalorder %s54, %s55
      %p66 = scmp.eq.s32.totalorder %s34, 0
      %p67 = por %p65, %p66
      %p68 = scmp.ne.s32.totalorder %s54, %s55
      %p69 = scmp.eq.s32.totalorder %s35, 3
      %p70 = por %p68, %p69
      %p72 = scmp.ne.s32.totalorder %s55, %s71
      %p73 = scmp.eq.s32.totalorder %s35, 0
      %p74 = por %p72, %p73
      %s75 = ssub.s32 %s37, %s44
      %p76 = scmp.eq.s32.totalorder %s75, 0
      %s78 = sadd.s32 %s77, 1
      %s79 = scalar_select %p76, %s77, %s78
      %p82 = pneg %p76
      %p83 = scmp.eq.s32.totalorder %s29, 3
      %p84 = por %p82, %p83
      %p85 = scmp.ne.s32.totalorder %s77, %s80
      %p86 = scmp.eq.s32.totalorder %s29, 0
      %p87 = por %p85, %p86
      %p88 = scmp.ne.s32.totalorder %s77, %s80
      %p89 = scmp.eq.s32.totalorder %s34, 3
      %p90 = por %p88, %p89
      %p91 = scmp.ne.s32.totalorder %s80, %s81
      %p92 = scmp.eq.s32.totalorder %s34, 0
      %p93 = por %p91, %p92
      %p94 = scmp.ne.s32.totalorder %s80, %s81
      %p95 = scmp.eq.s32.totalorder %s35, 3
      %p96 = por %p94, %p95
      %p98 = scmp.ne.s32.totalorder %s81, %s97
      %p99 = scmp.eq.s32.totalorder %s35, 0
      %p100 = por %p98, %p99
      %s101 = ssub.s32 %s37, %s44
      %p102 = scmp.eq.s32.totalorder %s101, 0
      %s104 = sadd.s32 %s103, 1
      %s105 = scalar_select %p102, %s103, %s104
      %p108 = pneg %p102
      %p109 = scmp.eq.s32.totalorder %s29, 3
      %p110 = por %p108, %p109
      %p111 = scmp.ne.s32.totalorder %s103, %s106
      %p112 = scmp.eq.s32.totalorder %s29, 0
      %p113 = por %p111, %p112
      %p114 = scmp.ne.s32.totalorder %s103, %s106
      %p115 = scmp.eq.s32.totalorder %s34, 3
      %p116 = por %p114, %p115
      %p117 = scmp.ne.s32.totalorder %s106, %s107
      %p118 = scmp.eq.s32.totalorder %s34, 0
      %p119 = por %p117, %p118
      %p120 = scmp.ne.s32.totalorder %s106, %s107
      %p121 = scmp.eq.s32.totalorder %s35, 3
      %p122 = por %p120, %p121
      %p124 = scmp.ne.s32.totalorder %s107, %s123
      %p125 = scmp.eq.s32.totalorder %s35, 0
      %p126 = por %p124, %p125
      %s127 = ssub.s32 %s37, %s44
      %p128 = scmp.eq.s32.totalorder %s127, 0
      %s130 = sadd.s32 %s129, 1
      %s131 = scalar_select %p128, %s129, %s130
      %p134 = pneg %p128
      %p135 = scmp.eq.s32.totalorder %s29, 3
      %p136 = por %p134, %p135
      %p137 = scmp.ne.s32.totalorder %s129, %s132
      %p138 = scmp.eq.s32.totalorder %s29, 0
      %p139 = por %p137, %p138
      %p140 = scmp.ne.s32.totalorder %s129, %s132
      %p141 = scmp.eq.s32.totalorder %s34, 3
      %p142 = por %p140, %p141
      %p143 = scmp.ne.s32.totalorder %s132, %s133
      %p144 = scmp.eq.s32.totalorder %s34, 0
      %p145 = por %p143, %p144
      %p146 = scmp.ne.s32.totalorder %s132, %s133
      %p147 = scmp.eq.s32.totalorder %s35, 3
      %p148 = por %p146, %p147
      %p150 = scmp.ne.s32.totalorder %s133, %s149
      %p151 = scmp.eq.s32.totalorder %s35, 0
      %p152 = por %p150, %p151
      %s154 = sadd.s32 %s153, 1
      %p157 = scmp.eq.s32.totalorder %s29, 3
      %p158 = scmp.ne.s32.totalorder %s153, %s155
      %p159 = scmp.eq.s32.totalorder %s29, 0
      %p160 = por %p158, %p159
      %p161 = scmp.ne.s32.totalorder %s153, %s155
      %p162 = scmp.eq.s32.totalorder %s34, 3
      %p163 = por %p161, %p162
      %p164 = scmp.ne.s32.totalorder %s155, %s156
      %p165 = scmp.eq.s32.totalorder %s34, 0
      %p166 = por %p164, %p165
      %p167 = scmp.ne.s32.totalorder %s155, %s156
      %p168 = scmp.eq.s32.totalorder %s35, 3
      %p169 = por %p167, %p168
      %p171 = scmp.ne.s32.totalorder %s156, %s170
      %p172 = scmp.eq.s32.totalorder %s35, 0
      %p173 = por %p171, %p172
      %s175 = sadd.s32 %s174, 1
      %p178 = scmp.eq.s32.totalorder %s29, 3
      %p179 = scmp.ne.s32.totalorder %s174, %s176
      %p180 = scmp.eq.s32.totalorder %s29, 0
      %p181 = por %p179, %p180
      %p182 = scmp.ne.s32.totalorder %s174, %s176
      %p183 = scmp.eq.s32.totalorder %s34, 3
      %p184 = por %p182, %p183
      %p185 = scmp.ne.s32.totalorder %s176, %s177
      %p186 = scmp.eq.s32.totalorder %s34, 0
      %p187 = por %p185, %p186
      %p188 = scmp.ne.s32.totalorder %s176, %s177
      %p189 = scmp.eq.s32.totalorder %s35, 3
      %p190 = por %p188, %p189
      %p192 = scmp.ne.s32.totalorder %s177, %s191
      %p193 = scmp.eq.s32.totalorder %s35, 0
      %p194 = por %p192, %p193
      %s196 = sadd.s32 %s195, 1
      %p199 = scmp.eq.s32.totalorder %s29, 3
      %p200 = scmp.ne.s32.totalorder %s195, %s197
      %p201 = scmp.eq.s32.totalorder %s29, 0
      %p202 = por %p200, %p201
      %p203 = scmp.ne.s32.totalorder %s195, %s197
      %p204 = scmp.eq.s32.totalorder %s34, 3
      %p205 = por %p203, %p204
      %p206 = scmp.ne.s32.totalorder %s197, %s198
      %p207 = scmp.eq.s32.totalorder %s34, 0
      %p208 = por %p206, %p207
      %p209 = scmp.ne.s32.totalorder %s197, %s198
      %p210 = scmp.eq.s32.totalorder %s35, 3
      %p211 = por %p209, %p210
      %p213 = scmp.ne.s32.totalorder %s198, %s212
      %p214 = scmp.eq.s32.totalorder %s35, 0
      %p215 = por %p213, %p214
      %s217 = sadd.s32 %s216, 1
      %p220 = scmp.eq.s32.totalorder %s29, 3
      %p221 = scmp.ne.s32.totalorder %s216, %s218
      %p222 = scmp.eq.s32.totalorder %s29, 0
      %p223 = por %p221, %p222
      %p224 = scmp.ne.s32.totalorder %s216, %s218
      %p225 = scmp.eq.s32.totalorder %s34, 3
      %p226 = por %p224, %p225
      %p227 = scmp.ne.s32.totalorder %s218, %s219
      %p228 = scmp.eq.s32.totalorder %s34, 0
      %p229 = por %p227, %p228
      %p230 = scmp.ne.s32.totalorder %s218, %s219
      %p231 = scmp.eq.s32.totalorder %s35, 3
      %p232 = por %p230, %p231
      %p234 = scmp.ne.s32.totalorder %s219, %s233
      %p235 = scmp.eq.s32.totalorder %s35, 0
      %p236 = por %p234, %p235
      %s238 = sadd.s32 %s237, 1
      %p241 = scmp.eq.s32.totalorder %s29, 3
      %p242 = scmp.ne.s32.totalorder %s237, %s239
      %p243 = scmp.eq.s32.totalorder %s29, 0
      %p244 = por %p242, %p243
      %p245 = scmp.ne.s32.totalorder %s237, %s239
      %p246 = scmp.eq.s32.totalorder %s34, 3
      %p247 = por %p245, %p246
      %p248 = scmp.ne.s32.totalorder %s239, %s240
      %p249 = scmp.eq.s32.totalorder %s34, 0
      %p250 = por %p248, %p249
      %p251 = scmp.ne.s32.totalorder %s239, %s240
      %p252 = scmp.eq.s32.totalorder %s35, 3
      %p253 = por %p251, %p252
      %p255 = scmp.ne.s32.totalorder %s240, %s254
      %p256 = scmp.eq.s32.totalorder %s35, 0
      %p257 = por %p255, %p256
      %s258 = ssub.s32 %s36, %s48
      %p259 = scmp.eq.s32.totalorder %s258, 0
      %s261 = sadd.s32 %s260, 1
      %s262 = scalar_select %p259, %s260, %s261
      %p265 = pneg %p259
      %p266 = scmp.eq.s32.totalorder %s29, 3
      %p267 = por %p265, %p266
      %p268 = scmp.ne.s32.totalorder %s260, %s263
      %p269 = scmp.eq.s32.totalorder %s29, 0
      %p270 = por %p268, %p269
      %p271 = scmp.ne.s32.totalorder %s260, %s263
      %p272 = scmp.eq.s32.totalorder %s34, 3
      %p273 = por %p271, %p272
      %p274 = scmp.ne.s32.totalorder %s263, %s264
      %p275 = scmp.eq.s32.totalorder %s34, 0
      %p276 = por %p274, %p275
      %p277 = scmp.ne.s32.totalorder %s263, %s264
      %p278 = scmp.eq.s32.totalorder %s35, 3
      %p279 = por %p277, %p278
      %p281 = scmp.ne.s32.totalorder %s264, %s280
      %p282 = scmp.eq.s32.totalorder %s35, 0
      %p283 = por %p281, %p282
      %s284 = ssub.s32 %s36, %s48
      %p285 = scmp.eq.s32.totalorder %s284, 0
      %s287 = sadd.s32 %s286, 1
      %s288 = scalar_select %p285, %s286, %s287
      %p291 = pneg %p285
      %p292 = scmp.eq.s32.totalorder %s29, 3
      %p293 = por %p291, %p292
      %p294 = scmp.ne.s32.totalorder %s286, %s289
      %p295 = scmp.eq.s32.totalorder %s29, 0
      %p296 = por %p294, %p295
      %p297 = scmp.ne.s32.totalorder %s286, %s289
      %p298 = scmp.eq.s32.totalorder %s34, 3
      %p299 = por %p297, %p298
      %p300 = scmp.ne.s32.totalorder %s289, %s290
      %p301 = scmp.eq.s32.totalorder %s34, 0
      %p302 = por %p300, %p301
      %p303 = scmp.ne.s32.totalorder %s289, %s290
      %p304 = scmp.eq.s32.totalorder %s35, 3
      %p305 = por %p303, %p304
      %p307 = scmp.ne.s32.totalorder %s290, %s306
      %p308 = scmp.eq.s32.totalorder %s35, 0
      %p309 = por %p307, %p308
      %s310 = ssub.s32 %s36, %s48
      %p311 = scmp.eq.s32.totalorder %s310, 0
      %s313 = sadd.s32 %s312, 1
      %s314 = scalar_select %p311, %s312, %s313
      %p317 = pneg %p311
      %p318 = scmp.eq.s32.totalorder %s29, 3
      %p319 = por %p317, %p318
      %p320 = scmp.ne.s32.totalorder %s312, %s315
      %p321 = scmp.eq.s32.totalorder %s29, 0
      %p322 = por %p320, %p321
      %p323 = scmp.ne.s32.totalorder %s312, %s315
      %p324 = scmp.eq.s32.totalorder %s34, 3
      %p325 = por %p323, %p324
      %p326 = scmp.ne.s32.totalorder %s315, %s316
      %p327 = scmp.eq.s32.totalorder %s34, 0
      %p328 = por %p326, %p327
      %p329 = scmp.ne.s32.totalorder %s315, %s316
      %p330 = scmp.eq.s32.totalorder %s35, 3
      %p331 = por %p329, %p330
      %p333 = scmp.ne.s32.totalorder %s316, %s332
      %p334 = scmp.eq.s32.totalorder %s35, 0
      %p335 = por %p333, %p334
      %p336 = scmp.le.s32.totalorder 1, %s29
      %p337 = scmp.lt.s32.totalorder %s29, 5
      %p338 = pnand %p336, %p337
      %p339 = pneg %p338
      // Predicated region
      $region9: #{tpu_custom_call.1} parent=5 // pred_check
        _
      $region10: #{tpu_custom_call.1} parent=5 // pred_check_branch
        %341 = sbr.rel (%p338) target = $region12
      $region11: #{tpu_custom_call.1} parent=5 // pred_region
        %s342 = ssub.s32 %s29, 1
        // Predicated region
        $region13: #{tpu_custom_call.1} parent=11 // pred_check
          %p343 = pneg %p67
        $region14: #{tpu_custom_call.1} parent=11 // pred_check_branch
          %345 = sbr.rel (%p343) target = $region16
        $region15: #{tpu_custom_call.1} parent=11 // pred_region
          %s347 = ssub.s32 256, 256
          %348 = vsyncadd [#allocation4], %s347
          %s349 = smul.addr %s38, 2
          %s350 = smul.addr %s349, 128
          %s351 = scalar_lea.hbm %s0, %s350
          %s353 = sshll.u32 [#allocation3], 4
          %s354 = int_to_ptr.vmem [resolvable:$true] %s353
          %356 = dma.hbm_to_vmem [thread:$0]  %s351, 256, %s354, [#allocation4]
        $region16: #{tpu_custom_call.1} parent=11 // pred_fallthru
          _
        // Predicated region
        $region17: #{tpu_custom_call.1} parent=11 // pred_check
          %p357 = pneg %p166
        $region18: #{tpu_custom_call.1} parent=11 // pred_check_branch
          %359 = sbr.rel (%p357) target = $region20
        $region19: #{tpu_custom_call.1} parent=11 // pred_region
          %s361 = ssub.s32 32, 32
          %362 = vsyncadd [#allocation10], %s361
          %s364 = sshll.u32 [#allocation11], 4
          %s365 = int_to_ptr.vmem [resolvable:$true] %s364
          %367 = dma.hbm_to_vmem [thread:$0]  %s4, 32, %s365, [#allocation10]
        $region20: #{tpu_custom_call.1} parent=11 // pred_fallthru
          _
        // Predicated region
        $region21: #{tpu_custom_call.1} parent=11 // pred_check
          %p368 = pneg %p187
        $region22: #{tpu_custom_call.1} parent=11 // pred_check_branch
          %370 = sbr.rel (%p368) target = $region24
        $region23: #{tpu_custom_call.1} parent=11 // pred_region
          %s372 = ssub.s32 18432, 18432
          %373 = vsyncadd [#allocation13], %s372
          %s374 = sshll.u32 [#allocation12], 4
          %s375 = int_to_ptr.vmem [resolvable:$true] %s374
          %380 = dma.hbm_to_vmem [thread:$0]  %s5, 18432, %s375, [#allocation13], 576, 576, 36
        $region24: #{tpu_custom_call.1} parent=11 // pred_fallthru
          _
        // Predicated region
        $region25: #{tpu_custom_call.1} parent=11 // pred_check
          %p381 = pneg %p208
        $region26: #{tpu_custom_call.1} parent=11 // pred_check_branch
          %383 = sbr.rel (%p381) target = $region28
        $region27: #{tpu_custom_call.1} parent=11 // pred_region
          %s385 = ssub.s32 144, 144
          %386 = vsyncadd [#allocation13], %s385
          %s388 = sshll.u32 [#allocation14], 4
          %s389 = int_to_ptr.vmem [resolvable:$true] %s388
          %391 = dma.hbm_to_vmem [thread:$0]  %s6, 144, %s389, [#allocation13]
        $region28: #{tpu_custom_call.1} parent=11 // pred_fallthru
          _
        // Predicated region
        $region29: #{tpu_custom_call.1} parent=11 // pred_check
          %p392 = pneg %p229
        $region30: #{tpu_custom_call.1} parent=11 // pred_check_branch
          %394 = sbr.rel (%p392) target = $region32
        $region31: #{tpu_custom_call.1} parent=11 // pred_region
          %s396 = ssub.s32 8192, 8192
          %397 = vsyncadd [#allocation16], %s396
          %s398 = sshll.u32 [#allocation15], 4
          %s399 = int_to_ptr.vmem [resolvable:$true] %s398
          %404 = dma.hbm_to_vmem [thread:$0]  %s7, 8192, %s399, [#allocation16], 64, 64, 4
        $region32: #{tpu_custom_call.1} parent=11 // pred_fallthru
          _
        // Predicated region
        $region33: #{tpu_custom_call.1} parent=11 // pred_check
          %p405 = pneg %p250
        $region34: #{tpu_custom_call.1} parent=11 // pred_check_branch
          %407 = sbr.rel (%p405) target = $region36
        $region35: #{tpu_custom_call.1} parent=11 // pred_region
          %s409 = ssub.s32 16, 16
          %410 = vsyncadd [#allocation16], %s409
          %s412 = sshll.u32 [#allocation17], 4
          %s413 = int_to_ptr.vmem [resolvable:$true] %s412
          %415 = dma.hbm_to_vmem [thread:$0]  %s8, 16, %s413, [#allocation16]
        $region36: #{tpu_custom_call.1} parent=11 // pred_fallthru
          _
      $region12: #{tpu_custom_call.1} parent=5 // pred_fallthru
        _
      %p416 = scmp.lt.s32.totalorder %s29, 4
      // Predicated region
      $region37: #{tpu_custom_call.1} parent=5 // pred_check
        %p417 = pneg %p416
      $region38: #{tpu_custom_call.1} parent=5 // pred_check_branch
        %419 = sbr.rel (%p417) target = $region40
      $region39: #{tpu_custom_call.1} parent=5 // pred_region
        // Predicated region
        $region41: #{tpu_custom_call.1} parent=39 // pred_check
          %p420 = pneg %p87
        $region42: #{tpu_custom_call.1} parent=39 // pred_check_branch
          %422 = sbr.rel (%p420) target = $region44
        $region43: #{tpu_custom_call.1} parent=39 // pred_region
          %s423 = sand.u32 %s29, 1
          %s424 = scalar_lea.sflag [#allocation7], %s423
          %s425 = sand.u32 %s77, 1
          %s426 = smul.addr %s425, 1024
          %s427 = scalar_lea.vmem [#allocation6], %s426
          %s428 = smul.u32 8, %s37
          %s430 = ssub.s32 16384, 16384
          %431 = vsyncadd %s424, %s430
          %s432 = smul.addr %s428, 64
          %s433 = scalar_lea.hbm %s1, %s432
          %s434 = sshll.u32 %s427, 4
          %s435 = int_to_ptr.vmem [resolvable:$true] %s434
          %440 = dma.hbm_to_vmem [thread:$0]  %s433, 16384, %s435, %s424, 2048, 512, 32
        $region44: #{tpu_custom_call.1} parent=39 // pred_fallthru
          _
        // Predicated region
        $region45: #{tpu_custom_call.1} parent=39 // pred_check
          %p441 = pneg %p113
        $region46: #{tpu_custom_call.1} parent=39 // pred_check_branch
          %443 = sbr.rel (%p441) target = $region48
        $region47: #{tpu_custom_call.1} parent=39 // pred_region
          %s444 = sand.u32 %s29, 1
          %s445 = scalar_lea.sflag [#allocation7], %s444
          %s446 = sand.u32 %s103, 1
          %s447 = smul.addr %s446, 8
          %s448 = scalar_lea.vmem [#allocation8], %s447
          %s449 = smul.u32 8, %s37
          %s451 = ssub.s32 128, 128
          %452 = vsyncadd %s445, %s451
          %s453 = smul.addr %s449, 16
          %s454 = scalar_lea.hbm %s2, %s453
          %s456 = sshll.u32 %s448, 4
          %s457 = int_to_ptr.vmem [resolvable:$true] %s456
          %459 = dma.hbm_to_vmem [thread:$0]  %s454, 128, %s457, %s445
        $region48: #{tpu_custom_call.1} parent=39 // pred_fallthru
          _
        // Predicated region
        $region49: #{tpu_custom_call.1} parent=39 // pred_check
          %p460 = pneg %p139
        $region50: #{tpu_custom_call.1} parent=39 // pred_check_branch
          %462 = sbr.rel (%p460) target = $region52
        $region51: #{tpu_custom_call.1} parent=39 // pred_region
          %s463 = sand.u32 %s29, 1
          %s464 = scalar_lea.sflag [#allocation10], %s463
          %s465 = sand.u32 %s129, 1
          %s466 = smul.addr %s465, 1024
          %s467 = scalar_lea.vmem [#allocation9], %s466
          %s468 = smul.u32 128, %s37
          %s470 = ssub.s32 16384, 16384
          %471 = vsyncadd %s464, %s470
          %s472 = smul.addr %s468, 2
          %s473 = smul.addr %s472, 64
          %s474 = scalar_lea.hbm %s3, %s473
          %s475 = sshll.u32 %s467, 4
          %s476 = int_to_ptr.vmem [resolvable:$true] %s475
          %481 = dma.hbm_to_vmem [thread:$0]  %s474, 16384, %s476, %s464, 128, 128, 8
        $region52: #{tpu_custom_call.1} parent=39 // pred_fallthru
          _
      $region40: #{tpu_custom_call.1} parent=5 // pred_fallthru
        _
      %p482 = scmp.le.s32.totalorder 1, %s29
      %p483 = scmp.lt.s32.totalorder %s29, 5
      %p484 = pnand %p482, %p483
      %p485 = pneg %p484
      // Predicated region
      $region53: #{tpu_custom_call.1} parent=5 // pred_check
        _
      $region54: #{tpu_custom_call.1} parent=5 // pred_check_branch
        %487 = sbr.rel (%p484) target = $region56
      $region55: #{tpu_custom_call.1} parent=5 // pred_region
        %s488 = ssub.s32 %s29, 1
        // Predicated region
        $region57: #{tpu_custom_call.1} parent=55 // pred_check
          %p489 = pneg %p67
        $region58: #{tpu_custom_call.1} parent=55 // pred_check_branch
          %491 = sbr.rel (%p489) target = $region60
        $region59: #{tpu_custom_call.1} parent=55 // pred_region
          %492 = dma.done [#allocation4], 256
        $region60: #{tpu_custom_call.1} parent=55 // pred_fallthru
          _
        %s493 = sand.u32 %s34, 1
        %s494 = scalar_lea.sflag [#allocation7], %s493
        %s495 = sand.u32 %s80, 1
        %s496 = smul.addr %s495, 1024
        %s497 = scalar_lea.vmem [#allocation6], %s496
        // Predicated region
        $region61: #{tpu_custom_call.1} parent=55 // pred_check
          %p498 = pneg %p93
        $region62: #{tpu_custom_call.1} parent=55 // pred_check_branch
          %500 = sbr.rel (%p498) target = $region64
        $region63: #{tpu_custom_call.1} parent=55 // pred_region
          %501 = dma.done %s494, 16384
        $region64: #{tpu_custom_call.1} parent=55 // pred_fallthru
          _
        %s502 = sand.u32 %s34, 1
        %s503 = scalar_lea.sflag [#allocation7], %s502
        %s504 = sand.u32 %s106, 1
        %s505 = smul.addr %s504, 8
        %s506 = scalar_lea.vmem [#allocation8], %s505
        // Predicated region
        $region65: #{tpu_custom_call.1} parent=55 // pred_check
          %p507 = pneg %p119
        $region66: #{tpu_custom_call.1} parent=55 // pred_check_branch
          %509 = sbr.rel (%p507) target = $region68
        $region67: #{tpu_custom_call.1} parent=55 // pred_region
          %510 = dma.done %s503, 128
        $region68: #{tpu_custom_call.1} parent=55 // pred_fallthru
          _
        %s511 = sand.u32 %s34, 1
        %s512 = scalar_lea.sflag [#allocation10], %s511
        %s513 = sand.u32 %s132, 1
        %s514 = smul.addr %s513, 1024
        %s515 = scalar_lea.vmem [#allocation9], %s514
        // Predicated region
        $region69: #{tpu_custom_call.1} parent=55 // pred_check
          %p516 = pneg %p145
        $region70: #{tpu_custom_call.1} parent=55 // pred_check_branch
          %518 = sbr.rel (%p516) target = $region72
        $region71: #{tpu_custom_call.1} parent=55 // pred_region
          %519 = dma.done %s512, 16384
        $region72: #{tpu_custom_call.1} parent=55 // pred_fallthru
          _
        // Predicated region
        $region73: #{tpu_custom_call.1} parent=55 // pred_check
          %p520 = pneg %p166
        $region74: #{tpu_custom_call.1} parent=55 // pred_check_branch
          %522 = sbr.rel (%p520) target = $region76
        $region75: #{tpu_custom_call.1} parent=55 // pred_region
          %523 = dma.done [#allocation10], 32
        $region76: #{tpu_custom_call.1} parent=55 // pred_fallthru
          _
        // Predicated region
        $region77: #{tpu_custom_call.1} parent=55 // pred_check
          %p524 = pneg %p187
        $region78: #{tpu_custom_call.1} parent=55 // pred_check_branch
          %526 = sbr.rel (%p524) target = $region80
        $region79: #{tpu_custom_call.1} parent=55 // pred_region
          %527 = dma.done [#allocation13], 18432
        $region80: #{tpu_custom_call.1} parent=55 // pred_fallthru
          _
        // Predicated region
        $region81: #{tpu_custom_call.1} parent=55 // pred_check
          %p528 = pneg %p208
        $region82: #{tpu_custom_call.1} parent=55 // pred_check_branch
          %530 = sbr.rel (%p528) target = $region84
        $region83: #{tpu_custom_call.1} parent=55 // pred_region
          %531 = dma.done [#allocation13], 144
        $region84: #{tpu_custom_call.1} parent=55 // pred_fallthru
          _
        // Predicated region
        $region85: #{tpu_custom_call.1} parent=55 // pred_check
          %p532 = pneg %p229
        $region86: #{tpu_custom_call.1} parent=55 // pred_check_branch
          %534 = sbr.rel (%p532) target = $region88
        $region87: #{tpu_custom_call.1} parent=55 // pred_region
          %535 = dma.done [#allocation16], 8192
        $region88: #{tpu_custom_call.1} parent=55 // pred_fallthru
          _
        // Predicated region
        $region89: #{tpu_custom_call.1} parent=55 // pred_check
          %p536 = pneg %p250
        $region90: #{tpu_custom_call.1} parent=55 // pred_check_branch
          %538 = sbr.rel (%p536) target = $region92
        $region91: #{tpu_custom_call.1} parent=55 // pred_region
          %539 = dma.done [#allocation16], 16
        $region92: #{tpu_custom_call.1} parent=55 // pred_fallthru
          _
        %p540 = pneg %p67
        %p541 = pneg %p64
        %s542 = sand.u32 %s34, 1
        %s543 = scalar_lea.sflag [#allocation7], %s542
        %s544 = sand.u32 %s80, 1
        %s545 = smul.addr %s544, 1024
        %s546 = scalar_lea.vmem [#allocation6], %s545
        %p547 = pneg %p93
        %p548 = pneg %p90
        %s549 = sand.u32 %s34, 1
        %s550 = scalar_lea.sflag [#allocation7], %s549
        %s551 = sand.u32 %s106, 1
        %s552 = smul.addr %s551, 8
        %s553 = scalar_lea.vmem [#allocation8], %s552
        %p554 = pneg %p119
        %p555 = pneg %p116
        %s556 = sand.u32 %s34, 1
        %s557 = scalar_lea.sflag [#allocation10], %s556
        %s558 = sand.u32 %s132, 1
        %s559 = smul.addr %s558, 1024
        %s560 = scalar_lea.vmem [#allocation9], %s559
        %p561 = pneg %p145
        %p562 = pneg %p142
        %p563 = pneg %p166
        %p564 = pneg %p163
        %p565 = pneg %p187
        %p566 = pneg %p184
        %p567 = pneg %p208
        %p568 = pneg %p205
        %p569 = pneg %p229
        %p570 = pneg %p226
        %p571 = pneg %p250
        %p572 = pneg %p247
        %p573 = pneg %p276
        %p574 = pneg %p273
        %p575 = pneg %p302
        %p576 = pneg %p299
        %p577 = pneg %p328
        %p578 = pneg %p325
        %s579 = smul.u32 8, %s39
        %s580 = smul.u32 8, %s39
        %s581 = smul.u32 128, %s39
        %p583 = scmp.eq.s32.totalorder %s39, 0
        // Predicated region
        $region93: #{tpu_custom_call.1} parent=55 // pred_check
          %p584 = pneg %p583
        $region94: #{tpu_custom_call.1} parent=55 // pred_check_branch
          %586 = sbr.rel (%p584) target = $region96
        $region95: #{tpu_custom_call.1} parent=55 // pred_region
          %587 = vst [vmem:[#allocation2] sm:$0xff] 0.0
          %588 = vst [vmem:[#allocation2 + $0x8] sm:$0xff] 0.0
        $region96: #{tpu_custom_call.1} parent=55 // pred_fallthru
          _
        %v589 = vld [vmem:[#allocation3] sm:$0xff]
        %v590 = vld [vmem:[#allocation3 + $0x8] sm:$0xff]
        %v591 = vpack.c.bf16 %v589, %v589
        %v592 = vpack.c.bf16 %v590, %v590
        %v593 = vld [vmem:[%s497] sm:$0xff]
        %v594 = vld [vmem:[%s497 + $0x8] sm:$0xff]
        %v595 = vld [vmem:[%s497 + $0x10] sm:$0xff]
        %v596 = vld [vmem:[%s497 + $0x18] sm:$0xff]
        %v597 = vld [vmem:[%s497 + $0x20] sm:$0xff]
        %v598 = vld [vmem:[%s497 + $0x28] sm:$0xff]
        %v599 = vld [vmem:[%s497 + $0x30] sm:$0xff]
        %v600 = vld [vmem:[%s497 + $0x38] sm:$0xff]
        %v601 = vld [vmem:[%s497 + $0x40] sm:$0xff]
        %v602 = vld [vmem:[%s497 + $0x48] sm:$0xff]
        %v603 = vld [vmem:[%s497 + $0x50] sm:$0xff]
        %v604 = vld [vmem:[%s497 + $0x58] sm:$0xff]
        %v605 = vld [vmem:[%s497 + $0x60] sm:$0xff]
        %v606 = vld [vmem:[%s497 + $0x68] sm:$0xff]
        %v607 = vld [vmem:[%s497 + $0x70] sm:$0xff]
        %v608 = vld [vmem:[%s497 + $0x78] sm:$0xff]
        %v609 = vld [vmem:[%s497 + $0x80] sm:$0xff]
        %v610 = vld [vmem:[%s497 + $0x88] sm:$0xff]
        %v611 = vld [vmem:[%s497 + $0x90] sm:$0xff]
        %v612 = vld [vmem:[%s497 + $0x98] sm:$0xff]
        %v613 = vld [vmem:[%s497 + $0xa0] sm:$0xff]
        %v614 = vld [vmem:[%s497 + $0xa8] sm:$0xff]
        %v615 = vld [vmem:[%s497 + $0xb0] sm:$0xff]
        %v616 = vld [vmem:[%s497 + $0xb8] sm:$0xff]
        %v617 = vld [vmem:[%s497 + $0xc0] sm:$0xff]
        %v618 = vld [vmem:[%s497 + $0xc8] sm:$0xff]
        %v619 = vld [vmem:[%s497 + $0xd0] sm:$0xff]
        %v620 = vld [vmem:[%s497 + $0xd8] sm:$0xff]
        %v621 = vld [vmem:[%s497 + $0xe0] sm:$0xff]
        %v622 = vld [vmem:[%s497 + $0xe8] sm:$0xff]
        %v623 = vld [vmem:[%s497 + $0xf0] sm:$0xff]
        %v624 = vld [vmem:[%s497 + $0xf8] sm:$0xff]
        %v625 = vld [vmem:[%s497 + $0x100] sm:$0xff]
        %v626 = vld [vmem:[%s497 + $0x108] sm:$0xff]
        %v627 = vld [vmem:[%s497 + $0x110] sm:$0xff]
        %v628 = vld [vmem:[%s497 + $0x118] sm:$0xff]
        %v629 = vld [vmem:[%s497 + $0x120] sm:$0xff]
        %v630 = vld [vmem:[%s497 + $0x128] sm:$0xff]
        %v631 = vld [vmem:[%s497 + $0x130] sm:$0xff]
        %v632 = vld [vmem:[%s497 + $0x138] sm:$0xff]
        %v633 = vld [vmem:[%s497 + $0x140] sm:$0xff]
        %v634 = vld [vmem:[%s497 + $0x148] sm:$0xff]
        %v635 = vld [vmem:[%s497 + $0x150] sm:$0xff]
        %v636 = vld [vmem:[%s497 + $0x158] sm:$0xff]
        %v637 = vld [vmem:[%s497 + $0x160] sm:$0xff]
        %v638 = vld [vmem:[%s497 + $0x168] sm:$0xff]
        %v639 = vld [vmem:[%s497 + $0x170] sm:$0xff]
        %v640 = vld [vmem:[%s497 + $0x178] sm:$0xff]
        %v641 = vld [vmem:[%s497 + $0x180] sm:$0xff]
        %v642 = vld [vmem:[%s497 + $0x188] sm:$0xff]
        %v643 = vld [vmem:[%s497 + $0x190] sm:$0xff]
        %v644 = vld [vmem:[%s497 + $0x198] sm:$0xff]
        %v645 = vld [vmem:[%s497 + $0x1a0] sm:$0xff]
        %v646 = vld [vmem:[%s497 + $0x1a8] sm:$0xff]
        %v647 = vld [vmem:[%s497 + $0x1b0] sm:$0xff]
        %v648 = vld [vmem:[%s497 + $0x1b8] sm:$0xff]
        %v649 = vld [vmem:[%s497 + $0x1c0] sm:$0xff]
        %v650 = vld [vmem:[%s497 + $0x1c8] sm:$0xff]
        %v651 = vld [vmem:[%s497 + $0x1d0] sm:$0xff]
        %v652 = vld [vmem:[%s497 + $0x1d8] sm:$0xff]
        %v653 = vld [vmem:[%s497 + $0x1e0] sm:$0xff]
        %v654 = vld [vmem:[%s497 + $0x1e8] sm:$0xff]
        %v655 = vld [vmem:[%s497 + $0x1f0] sm:$0xff]
        %v656 = vld [vmem:[%s497 + $0x1f8] sm:$0xff]
        %v657 = vld [vmem:[%s497 + $0x200] sm:$0xff]
        %v658 = vld [vmem:[%s497 + $0x208] sm:$0xff]
        %v659 = vld [vmem:[%s497 + $0x210] sm:$0xff]
        %v660 = vld [vmem:[%s497 + $0x218] sm:$0xff]
        %v661 = vld [vmem:[%s497 + $0x220] sm:$0xff]
        %v662 = vld [vmem:[%s497 + $0x228] sm:$0xff]
        %v663 = vld [vmem:[%s497 + $0x230] sm:$0xff]
        %v664 = vld [vmem:[%s497 + $0x238] sm:$0xff]
        %v665 = vld [vmem:[%s497 + $0x240] sm:$0xff]
        %v666 = vld [vmem:[%s497 + $0x248] sm:$0xff]
        %v667 = vld [vmem:[%s497 + $0x250] sm:$0xff]
        %v668 = vld [vmem:[%s497 + $0x258] sm:$0xff]
        %v669 = vld [vmem:[%s497 + $0x260] sm:$0xff]
        %v670 = vld [vmem:[%s497 + $0x268] sm:$0xff]
        %v671 = vld [vmem:[%s497 + $0x270] sm:$0xff]
        %v672 = vld [vmem:[%s497 + $0x278] sm:$0xff]
        %v673 = vld [vmem:[%s497 + $0x280] sm:$0xff]
        %v674 = vld [vmem:[%s497 + $0x288] sm:$0xff]
        %v675 = vld [vmem:[%s497 + $0x290] sm:$0xff]
        %v676 = vld [vmem:[%s497 + $0x298] sm:$0xff]
        %v677 = vld [vmem:[%s497 + $0x2a0] sm:$0xff]
        %v678 = vld [vmem:[%s497 + $0x2a8] sm:$0xff]
        %v679 = vld [vmem:[%s497 + $0x2b0] sm:$0xff]
        %v680 = vld [vmem:[%s497 + $0x2b8] sm:$0xff]
        %v681 = vld [vmem:[%s497 + $0x2c0] sm:$0xff]
        %v682 = vld [vmem:[%s497 + $0x2c8] sm:$0xff]
        %v683 = vld [vmem:[%s497 + $0x2d0] sm:$0xff]
        %v684 = vld [vmem:[%s497 + $0x2d8] sm:$0xff]
        %v685 = vld [vmem:[%s497 + $0x2e0] sm:$0xff]
        %v686 = vld [vmem:[%s497 + $0x2e8] sm:$0xff]
        %v687 = vld [vmem:[%s497 + $0x2f0] sm:$0xff]
        %v688 = vld [vmem:[%s497 + $0x2f8] sm:$0xff]
        %v689 = vld [vmem:[%s497 + $0x300] sm:$0xff]
        %v690 = vld [vmem:[%s497 + $0x308] sm:$0xff]
        %v691 = vld [vmem:[%s497 + $0x310] sm:$0xff]
        %v692 = vld [vmem:[%s497 + $0x318] sm:$0xff]
        %v693 = vld [vmem:[%s497 + $0x320] sm:$0xff]
        %v694 = vld [vmem:[%s497 + $0x328] sm:$0xff]
        %v695 = vld [vmem:[%s497 + $0x330] sm:$0xff]
        %v696 = vld [vmem:[%s497 + $0x338] sm:$0xff]
        %v697 = vld [vmem:[%s497 + $0x340] sm:$0xff]
        %v698 = vld [vmem:[%s497 + $0x348] sm:$0xff]
        %v699 = vld [vmem:[%s497 + $0x350] sm:$0xff]
        %v700 = vld [vmem:[%s497 + $0x358] sm:$0xff]
        %v701 = vld [vmem:[%s497 + $0x360] sm:$0xff]
        %v702 = vld [vmem:[%s497 + $0x368] sm:$0xff]
        %v703 = vld [vmem:[%s497 + $0x370] sm:$0xff]
        %v704 = vld [vmem:[%s497 + $0x378] sm:$0xff]
        %v705 = vld [vmem:[%s497 + $0x380] sm:$0xff]
        %v706 = vld [vmem:[%s497 + $0x388] sm:$0xff]
        %v707 = vld [vmem:[%s497 + $0x390] sm:$0xff]
        %v708 = vld [vmem:[%s497 + $0x398] sm:$0xff]
        %v709 = vld [vmem:[%s497 + $0x3a0] sm:$0xff]
        %v710 = vld [vmem:[%s497 + $0x3a8] sm:$0xff]
        %v711 = vld [vmem:[%s497 + $0x3b0] sm:$0xff]
        %v712 = vld [vmem:[%s497 + $0x3b8] sm:$0xff]
        %v713 = vld [vmem:[%s497 + $0x3c0] sm:$0xff]
        %v714 = vld [vmem:[%s497 + $0x3c8] sm:$0xff]
        %v715 = vld [vmem:[%s497 + $0x3d0] sm:$0xff]
        %v716 = vld [vmem:[%s497 + $0x3d8] sm:$0xff]
        %v717 = vld [vmem:[%s497 + $0x3e0] sm:$0xff]
        %v718 = vld [vmem:[%s497 + $0x3e8] sm:$0xff]
        %v719 = vld [vmem:[%s497 + $0x3f0] sm:$0xff]
        %v720 = vld [vmem:[%s497 + $0x3f8] sm:$0xff]
        %v721 = vld [vmem:[%s506] sm:$0xff]
        %v723 = vlaneseq
        %v724 = vshrl.u32 %v723, 7
        %v725 = vsub.s32 0, %v724
        %v726 = vrot.slane %v721, %v725
        %v727 = vlaneseq
        %v728 = vshrl.u32 %v727, 7
        %v729 = vsub.s32 1, %v728
        %v730 = vrot.slane %v721, %v729
        %v731 = vlaneseq
        %v732 = vshrl.u32 %v731, 7
        %v733 = vsub.s32 2, %v732
        %v734 = vrot.slane %v721, %v733
        %v735 = vlaneseq
        %v736 = vshrl.u32 %v735, 7
        %v737 = vsub.s32 3, %v736
        %v738 = vrot.slane %v721, %v737
        %v739 = vlaneseq
        %v740 = vshrl.u32 %v739, 7
        %v741 = vsub.s32 4, %v740
        %v742 = vrot.slane %v721, %v741
        %v743 = vlaneseq
        %v744 = vshrl.u32 %v743, 7
        %v745 = vsub.s32 5, %v744
        %v746 = vrot.slane %v721, %v745
        %v747 = vlaneseq
        %v748 = vshrl.u32 %v747, 7
        %v749 = vsub.s32 6, %v748
        %v750 = vrot.slane %v721, %v749
        %v751 = vlaneseq
        %v752 = vshrl.u32 %v751, 7
        %v753 = vsub.s32 7, %v752
        %v754 = vrot.slane %v721, %v753
        %v891 = vunpack.c.l.b16 %v593
        %v892 = vunpack.c.h.b16 %v593
        %v893 = vunpack.c.l.b16 %v594
        %v894 = vunpack.c.h.b16 %v594
        %v895 = vunpack.c.l.b16 %v595
        %v896 = vunpack.c.h.b16 %v595
        %v897 = vunpack.c.l.b16 %v596
        %v898 = vunpack.c.h.b16 %v596
        %v899 = vunpack.c.l.b16 %v597
        %v900 = vunpack.c.h.b16 %v597
        %v901 = vunpack.c.l.b16 %v598
        %v902 = vunpack.c.h.b16 %v598
        %v903 = vunpack.c.l.b16 %v599
        %v904 = vunpack.c.h.b16 %v599
        %v905 = vunpack.c.l.b16 %v600
        %v906 = vunpack.c.h.b16 %v600
        %v907 = vunpack.c.l.b16 %v601
        %v908 = vunpack.c.h.b16 %v601
        %v909 = vunpack.c.l.b16 %v602
        %v910 = vunpack.c.h.b16 %v602
        %v911 = vunpack.c.l.b16 %v603
        %v912 = vunpack.c.h.b16 %v603
        %v913 = vunpack.c.l.b16 %v604
        %v914 = vunpack.c.h.b16 %v604
        %v915 = vunpack.c.l.b16 %v605
        %v916 = vunpack.c.h.b16 %v605
        %v917 = vunpack.c.l.b16 %v606
        %v918 = vunpack.c.h.b16 %v606
        %v919 = vunpack.c.l.b16 %v607
        %v920 = vunpack.c.h.b16 %v607
        %v921 = vunpack.c.l.b16 %v608
        %v922 = vunpack.c.h.b16 %v608
        %v923 = vunpack.c.l.b16 %v609
        %v924 = vunpack.c.h.b16 %v609
        %v925 = vunpack.c.l.b16 %v610
        %v926 = vunpack.c.h.b16 %v610
        %v927 = vunpack.c.l.b16 %v611
        %v928 = vunpack.c.h.b16 %v611
        %v929 = vunpack.c.l.b16 %v612
        %v930 = vunpack.c.h.b16 %v612
        %v931 = vunpack.c.l.b16 %v613
        %v932 = vunpack.c.h.b16 %v613
        %v933 = vunpack.c.l.b16 %v614
        %v934 = vunpack.c.h.b16 %v614
        %v935 = vunpack.c.l.b16 %v615
        %v936 = vunpack.c.h.b16 %v615
        %v937 = vunpack.c.l.b16 %v616
        %v938 = vunpack.c.h.b16 %v616
        %v939 = vunpack.c.l.b16 %v617
        %v940 = vunpack.c.h.b16 %v617
        %v941 = vunpack.c.l.b16 %v618
        %v942 = vunpack.c.h.b16 %v618
        %v943 = vunpack.c.l.b16 %v619
        %v944 = vunpack.c.h.b16 %v619
        %v945 = vunpack.c.l.b16 %v620
        %v946 = vunpack.c.h.b16 %v620
        %v947 = vunpack.c.l.b16 %v621
        %v948 = vunpack.c.h.b16 %v621
        %v949 = vunpack.c.l.b16 %v622
        %v950 = vunpack.c.h.b16 %v622
        %v951 = vunpack.c.l.b16 %v623
        %v952 = vunpack.c.h.b16 %v623
        %v953 = vunpack.c.l.b16 %v624
        %v954 = vunpack.c.h.b16 %v624
        %v955 = vunpack.c.l.b16 %v625
        %v956 = vunpack.c.h.b16 %v625
        %v957 = vunpack.c.l.b16 %v626
        %v958 = vunpack.c.h.b16 %v626
        %v959 = vunpack.c.l.b16 %v627
        %v960 = vunpack.c.h.b16 %v627
        %v961 = vunpack.c.l.b16 %v628
        %v962 = vunpack.c.h.b16 %v628
        %v963 = vunpack.c.l.b16 %v629
        %v964 = vunpack.c.h.b16 %v629
        %v965 = vunpack.c.l.b16 %v630
        %v966 = vunpack.c.h.b16 %v630
        %v967 = vunpack.c.l.b16 %v631
        %v968 = vunpack.c.h.b16 %v631
        %v969 = vunpack.c.l.b16 %v632
        %v970 = vunpack.c.h.b16 %v632
        %v971 = vunpack.c.l.b16 %v633
        %v972 = vunpack.c.h.b16 %v633
        %v973 = vunpack.c.l.b16 %v634
        %v974 = vunpack.c.h.b16 %v634
        %v975 = vunpack.c.l.b16 %v635
        %v976 = vunpack.c.h.b16 %v635
        %v977 = vunpack.c.l.b16 %v636
        %v978 = vunpack.c.h.b16 %v636
        %v979 = vunpack.c.l.b16 %v637
        %v980 = vunpack.c.h.b16 %v637
        %v981 = vunpack.c.l.b16 %v638
        %v982 = vunpack.c.h.b16 %v638
        %v983 = vunpack.c.l.b16 %v639
        %v984 = vunpack.c.h.b16 %v639
        %v985 = vunpack.c.l.b16 %v640
        %v986 = vunpack.c.h.b16 %v640
        %v987 = vunpack.c.l.b16 %v641
        %v988 = vunpack.c.h.b16 %v641
        %v989 = vunpack.c.l.b16 %v642
        %v990 = vunpack.c.h.b16 %v642
        %v991 = vunpack.c.l.b16 %v643
        %v992 = vunpack.c.h.b16 %v643
        %v993 = vunpack.c.l.b16 %v644
        %v994 = vunpack.c.h.b16 %v644
        %v995 = vunpack.c.l.b16 %v645
        %v996 = vunpack.c.h.b16 %v645
        %v997 = vunpack.c.l.b16 %v646
        %v998 = vunpack.c.h.b16 %v646
        %v999 = vunpack.c.l.b16 %v647
        %v1000 = vunpack.c.h.b16 %v647
        %v1001 = vunpack.c.l.b16 %v648
        %v1002 = vunpack.c.h.b16 %v648
        %v1003 = vunpack.c.l.b16 %v649
        %v1004 = vunpack.c.h.b16 %v649
        %v1005 = vunpack.c.l.b16 %v650
        %v1006 = vunpack.c.h.b16 %v650
        %v1007 = vunpack.c.l.b16 %v651
        %v1008 = vunpack.c.h.b16 %v651
        %v1009 = vunpack.c.l.b16 %v652
        %v1010 = vunpack.c.h.b16 %v652
        %v1011 = vunpack.c.l.b16 %v653
        %v1012 = vunpack.c.h.b16 %v653
        %v1013 = vunpack.c.l.b16 %v654
        %v1014 = vunpack.c.h.b16 %v654
        %v1015 = vunpack.c.l.b16 %v655
        %v1016 = vunpack.c.h.b16 %v655
        %v1017 = vunpack.c.l.b16 %v656
        %v1018 = vunpack.c.h.b16 %v656
        %v1019 = vunpack.c.l.b16 %v657
        %v1020 = vunpack.c.h.b16 %v657
        %v1021 = vunpack.c.l.b16 %v658
        %v1022 = vunpack.c.h.b16 %v658
        %v1023 = vunpack.c.l.b16 %v659
        %v1024 = vunpack.c.h.b16 %v659
        %v1025 = vunpack.c.l.b16 %v660
        %v1026 = vunpack.c.h.b16 %v660
        %v1027 = vunpack.c.l.b16 %v661
        %v1028 = vunpack.c.h.b16 %v661
        %v1029 = vunpack.c.l.b16 %v662
        %v1030 = vunpack.c.h.b16 %v662
        %v1031 = vunpack.c.l.b16 %v663
        %v1032 = vunpack.c.h.b16 %v663
        %v1033 = vunpack.c.l.b16 %v664
        %v1034 = vunpack.c.h.b16 %v664
        %v1035 = vunpack.c.l.b16 %v665
        %v1036 = vunpack.c.h.b16 %v665
        %v1037 = vunpack.c.l.b16 %v666
        %v1038 = vunpack.c.h.b16 %v666
        %v1039 = vunpack.c.l.b16 %v667
        %v1040 = vunpack.c.h.b16 %v667
        %v1041 = vunpack.c.l.b16 %v668
        %v1042 = vunpack.c.h.b16 %v668
        %v1043 = vunpack.c.l.b16 %v669
        %v1044 = vunpack.c.h.b16 %v669
        %v1045 = vunpack.c.l.b16 %v670
        %v1046 = vunpack.c.h.b16 %v670
        %v1047 = vunpack.c.l.b16 %v671
        %v1048 = vunpack.c.h.b16 %v671
        %v1049 = vunpack.c.l.b16 %v672
        %v1050 = vunpack.c.h.b16 %v672
        %v1051 = vunpack.c.l.b16 %v673
        %v1052 = vunpack.c.h.b16 %v673
        %v1053 = vunpack.c.l.b16 %v674
        %v1054 = vunpack.c.h.b16 %v674
        %v1055 = vunpack.c.l.b16 %v675
        %v1056 = vunpack.c.h.b16 %v675
        %v1057 = vunpack.c.l.b16 %v676
        %v1058 = vunpack.c.h.b16 %v676
        %v1059 = vunpack.c.l.b16 %v677
        %v1060 = vunpack.c.h.b16 %v677
        %v1061 = vunpack.c.l.b16 %v678
        %v1062 = vunpack.c.h.b16 %v678
        %v1063 = vunpack.c.l.b16 %v679
        %v1064 = vunpack.c.h.b16 %v679
        %v1065 = vunpack.c.l.b16 %v680
        %v1066 = vunpack.c.h.b16 %v680
        %v1067 = vunpack.c.l.b16 %v681
        %v1068 = vunpack.c.h.b16 %v681
        %v1069 = vunpack.c.l.b16 %v682
        %v1070 = vunpack.c.h.b16 %v682
        %v1071 = vunpack.c.l.b16 %v683
        %v1072 = vunpack.c.h.b16 %v683
        %v1073 = vunpack.c.l.b16 %v684
        %v1074 = vunpack.c.h.b16 %v684
        %v1075 = vunpack.c.l.b16 %v685
        %v1076 = vunpack.c.h.b16 %v685
        %v1077 = vunpack.c.l.b16 %v686
        %v1078 = vunpack.c.h.b16 %v686
        %v1079 = vunpack.c.l.b16 %v687
        %v1080 = vunpack.c.h.b16 %v687
        %v1081 = vunpack.c.l.b16 %v688
        %v1082 = vunpack.c.h.b16 %v688
        %v1083 = vunpack.c.l.b16 %v689
        %v1084 = vunpack.c.h.b16 %v689
        %v1085 = vunpack.c.l.b16 %v690
        %v1086 = vunpack.c.h.b16 %v690
        %v1087 = vunpack.c.l.b16 %v691
        %v1088 = vunpack.c.h.b16 %v691
        %v1089 = vunpack.c.l.b16 %v692
        %v1090 = vunpack.c.h.b16 %v692
        %v1091 = vunpack.c.l.b16 %v693
        %v1092 = vunpack.c.h.b16 %v693
        %v1093 = vunpack.c.l.b16 %v694
        %v1094 = vunpack.c.h.b16 %v694
        %v1095 = vunpack.c.l.b16 %v695
        %v1096 = vunpack.c.h.b16 %v695
        %v1097 = vunpack.c.l.b16 %v696
        %v1098 = vunpack.c.h.b16 %v696
        %v1099 = vunpack.c.l.b16 %v697
        %v1100 = vunpack.c.h.b16 %v697
        %v1101 = vunpack.c.l.b16 %v698
        %v1102 = vunpack.c.h.b16 %v698
        %v1103 = vunpack.c.l.b16 %v699
        %v1104 = vunpack.c.h.b16 %v699
        %v1105 = vunpack.c.l.b16 %v700
        %v1106 = vunpack.c.h.b16 %v700
        %v1107 = vunpack.c.l.b16 %v701
        %v1108 = vunpack.c.h.b16 %v701
        %v1109 = vunpack.c.l.b16 %v702
        %v1110 = vunpack.c.h.b16 %v702
        %v1111 = vunpack.c.l.b16 %v703
        %v1112 = vunpack.c.h.b16 %v703
        %v1113 = vunpack.c.l.b16 %v704
        %v1114 = vunpack.c.h.b16 %v704
        %v1115 = vunpack.c.l.b16 %v705
        %v1116 = vunpack.c.h.b16 %v705
        %v1117 = vunpack.c.l.b16 %v706
        %v1118 = vunpack.c.h.b16 %v706
        %v1119 = vunpack.c.l.b16 %v707
        %v1120 = vunpack.c.h.b16 %v707
        %v1121 = vunpack.c.l.b16 %v708
        %v1122 = vunpack.c.h.b16 %v708
        %v1123 = vunpack.c.l.b16 %v709
        %v1124 = vunpack.c.h.b16 %v709
        %v1125 = vunpack.c.l.b16 %v710
        %v1126 = vunpack.c.h.b16 %v710
        %v1127 = vunpack.c.l.b16 %v711
        %v1128 = vunpack.c.h.b16 %v711
        %v1129 = vunpack.c.l.b16 %v712
        %v1130 = vunpack.c.h.b16 %v712
        %v1131 = vunpack.c.l.b16 %v713
        %v1132 = vunpack.c.h.b16 %v713
        %v1133 = vunpack.c.l.b16 %v714
        %v1134 = vunpack.c.h.b16 %v714
        %v1135 = vunpack.c.l.b16 %v715
        %v1136 = vunpack.c.h.b16 %v715
        %v1137 = vunpack.c.l.b16 %v716
        %v1138 = vunpack.c.h.b16 %v716
        %v1139 = vunpack.c.l.b16 %v717
        %v1140 = vunpack.c.h.b16 %v717
        %v1141 = vunpack.c.l.b16 %v718
        %v1142 = vunpack.c.h.b16 %v718
        %v1143 = vunpack.c.l.b16 %v719
        %v1144 = vunpack.c.h.b16 %v719
        %v1145 = vunpack.c.l.b16 %v720
        %v1146 = vunpack.c.h.b16 %v720
        %v1147 = vpack.c.b16 %v899, %v891
        %v1148 = vpack.c.b16 %v900, %v892
        %v1149 = vpack.c.b16 %v901, %v893
        %v1150 = vpack.c.b16 %v902, %v894
        %v1151 = vpack.c.b16 %v903, %v895
        %v1152 = vpack.c.b16 %v904, %v896
        %v1153 = vpack.c.b16 %v905, %v897
        %v1154 = vpack.c.b16 %v906, %v898
        %v1155 = vpack.c.b16 %v915, %v907
        %v1156 = vpack.c.b16 %v916, %v908
        %v1157 = vpack.c.b16 %v917, %v909
        %v1158 = vpack.c.b16 %v918, %v910
        %v1159 = vpack.c.b16 %v919, %v911
        %v1160 = vpack.c.b16 %v920, %v912
        %v1161 = vpack.c.b16 %v921, %v913
        %v1162 = vpack.c.b16 %v922, %v914
        %v1163 = vpack.c.b16 %v931, %v923
        %v1164 = vpack.c.b16 %v932, %v924
        %v1165 = vpack.c.b16 %v933, %v925
        %v1166 = vpack.c.b16 %v934, %v926
        %v1167 = vpack.c.b16 %v935, %v927
        %v1168 = vpack.c.b16 %v936, %v928
        %v1169 = vpack.c.b16 %v937, %v929
        %v1170 = vpack.c.b16 %v938, %v930
        %v1171 = vpack.c.b16 %v947, %v939
        %v1172 = vpack.c.b16 %v948, %v940
        %v1173 = vpack.c.b16 %v949, %v941
        %v1174 = vpack.c.b16 %v950, %v942
        %v1175 = vpack.c.b16 %v951, %v943
        %v1176 = vpack.c.b16 %v952, %v944
        %v1177 = vpack.c.b16 %v953, %v945
        %v1178 = vpack.c.b16 %v954, %v946
        %v1179 = vpack.c.b16 %v963, %v955
        %v1180 = vpack.c.b16 %v964, %v956
        %v1181 = vpack.c.b16 %v965, %v957
        %v1182 = vpack.c.b16 %v966, %v958
        %v1183 = vpack.c.b16 %v967, %v959
        %v1184 = vpack.c.b16 %v968, %v960
        %v1185 = vpack.c.b16 %v969, %v961
        %v1186 = vpack.c.b16 %v970, %v962
        %v1187 = vpack.c.b16 %v979, %v971
        %v1188 = vpack.c.b16 %v980, %v972
        %v1189 = vpack.c.b16 %v981, %v973
        %v1190 = vpack.c.b16 %v982, %v974
        %v1191 = vpack.c.b16 %v983, %v975
        %v1192 = vpack.c.b16 %v984, %v976
        %v1193 = vpack.c.b16 %v985, %v977
        %v1194 = vpack.c.b16 %v986, %v978
        %v1195 = vpack.c.b16 %v995, %v987
        %v1196 = vpack.c.b16 %v996, %v988
        %v1197 = vpack.c.b16 %v997, %v989
        %v1198 = vpack.c.b16 %v998, %v990
        %v1199 = vpack.c.b16 %v999, %v991
        %v1200 = vpack.c.b16 %v1000, %v992
        %v1201 = vpack.c.b16 %v1001, %v993
        %v1202 = vpack.c.b16 %v1002, %v994
        %v1203 = vpack.c.b16 %v1011, %v1003
        %v1204 = vpack.c.b16 %v1012, %v1004
        %v1205 = vpack.c.b16 %v1013, %v1005
        %v1206 = vpack.c.b16 %v1014, %v1006
        %v1207 = vpack.c.b16 %v1015, %v1007
        %v1208 = vpack.c.b16 %v1016, %v1008
        %v1209 = vpack.c.b16 %v1017, %v1009
        %v1210 = vpack.c.b16 %v1018, %v1010
        %v1211 = vpack.c.b16 %v1027, %v1019
        %v1212 = vpack.c.b16 %v1028, %v1020
        %v1213 = vpack.c.b16 %v1029, %v1021
        %v1214 = vpack.c.b16 %v1030, %v1022
        %v1215 = vpack.c.b16 %v1031, %v1023
        %v1216 = vpack.c.b16 %v1032, %v1024
        %v1217 = vpack.c.b16 %v1033, %v1025
        %v1218 = vpack.c.b16 %v1034, %v1026
        %v1219 = vpack.c.b16 %v1043, %v1035
        %v1220 = vpack.c.b16 %v1044, %v1036
        %v1221 = vpack.c.b16 %v1045, %v1037
        %v1222 = vpack.c.b16 %v1046, %v1038
        %v1223 = vpack.c.b16 %v1047, %v1039
        %v1224 = vpack.c.b16 %v1048, %v1040
        %v1225 = vpack.c.b16 %v1049, %v1041
        %v1226 = vpack.c.b16 %v1050, %v1042
        %v1227 = vpack.c.b16 %v1059, %v1051
        %v1228 = vpack.c.b16 %v1060, %v1052
        %v1229 = vpack.c.b16 %v1061, %v1053
        %v1230 = vpack.c.b16 %v1062, %v1054
        %v1231 = vpack.c.b16 %v1063, %v1055
        %v1232 = vpack.c.b16 %v1064, %v1056
        %v1233 = vpack.c.b16 %v1065, %v1057
        %v1234 = vpack.c.b16 %v1066, %v1058
        %v1235 = vpack.c.b16 %v1075, %v1067
        %v1236 = vpack.c.b16 %v1076, %v1068
        %v1237 = vpack.c.b16 %v1077, %v1069
        %v1238 = vpack.c.b16 %v1078, %v1070
        %v1239 = vpack.c.b16 %v1079, %v1071
        %v1240 = vpack.c.b16 %v1080, %v1072
        %v1241 = vpack.c.b16 %v1081, %v1073
        %v1242 = vpack.c.b16 %v1082, %v1074
        %v1243 = vpack.c.b16 %v1091, %v1083
        %v1244 = vpack.c.b16 %v1092, %v1084
        %v1245 = vpack.c.b16 %v1093, %v1085
        %v1246 = vpack.c.b16 %v1094, %v1086
        %v1247 = vpack.c.b16 %v1095, %v1087
        %v1248 = vpack.c.b16 %v1096, %v1088
        %v1249 = vpack.c.b16 %v1097, %v1089
        %v1250 = vpack.c.b16 %v1098, %v1090
        %v1251 = vpack.c.b16 %v1107, %v1099
        %v1252 = vpack.c.b16 %v1108, %v1100
        %v1253 = vpack.c.b16 %v1109, %v1101
        %v1254 = vpack.c.b16 %v1110, %v1102
        %v1255 = vpack.c.b16 %v1111, %v1103
        %v1256 = vpack.c.b16 %v1112, %v1104
        %v1257 = vpack.c.b16 %v1113, %v1105
        %v1258 = vpack.c.b16 %v1114, %v1106
        %v1259 = vpack.c.b16 %v1123, %v1115
        %v1260 = vpack.c.b16 %v1124, %v1116
        %v1261 = vpack.c.b16 %v1125, %v1117
        %v1262 = vpack.c.b16 %v1126, %v1118
        %v1263 = vpack.c.b16 %v1127, %v1119
        %v1264 = vpack.c.b16 %v1128, %v1120
        %v1265 = vpack.c.b16 %v1129, %v1121
        %v1266 = vpack.c.b16 %v1130, %v1122
        %v1267 = vpack.c.b16 %v1139, %v1131
        %v1268 = vpack.c.b16 %v1140, %v1132
        %v1269 = vpack.c.b16 %v1141, %v1133
        %v1270 = vpack.c.b16 %v1142, %v1134
        %v1271 = vpack.c.b16 %v1143, %v1135
        %v1272 = vpack.c.b16 %v1144, %v1136
        %v1273 = vpack.c.b16 %v1145, %v1137
        %v1274 = vpack.c.b16 %v1146, %v1138
        %1403 = vmatprep.subr.bf16.mxu0 %v1148
        %1404 = vmatpush1.bf16.msra.mxu0 %v1147
        %1405 = vmatprep.subr.bf16.mxu0 %v1156
        %1406 = vmatpush1.bf16.msra.mxu0 %v1155
        %1407 = vmatprep.subr.bf16.mxu0 %v1164
        %1408 = vmatpush1.bf16.msra.mxu0 %v1163
        %1409 = vmatprep.subr.bf16.mxu0 %v1172
        %1410 = vmatpush1.bf16.msra.mxu0 %v1171
        %1411 = vmatprep.subr.bf16.mxu0 %v1180
        %1412 = vmatpush1.bf16.msra.mxu0 %v1179
        %1413 = vmatprep.subr.bf16.mxu0 %v1188
        %1414 = vmatpush1.bf16.msra.mxu0 %v1187
        %1415 = vmatprep.subr.bf16.mxu0 %v1196
        %1416 = vmatpush1.bf16.msra.mxu0 %v1195
        %1417 = vmatprep.subr.bf16.mxu0 %v1204
        %1418 = vmatpush1.bf16.msra.mxu0 %v1203
        %1419 = vmatprep.subr.bf16.mxu0 %v1212
        %1420 = vmatpush1.bf16.msra.mxu0 %v1211
        %1421 = vmatprep.subr.bf16.mxu0 %v1220
        %1422 = vmatpush1.bf16.msra.mxu0 %v1219
        %1423 = vmatprep.subr.bf16.mxu0 %v1228
        %1424 = vmatpush1.bf16.msra.mxu0 %v1227
        %1425 = vmatprep.subr.bf16.mxu0 %v1236
        %1426 = vmatpush1.bf16.msra.mxu0 %v1235
        %1427 = vmatprep.subr.bf16.mxu0 %v1244
        %1428 = vmatpush1.bf16.msra.mxu0 %v1243
        %1429 = vmatprep.subr.bf16.mxu0 %v1252
        %1430 = vmatpush1.bf16.msra.mxu0 %v1251
        %1431 = vmatprep.subr.bf16.mxu0 %v1260
        %1432 = vmatpush1.bf16.msra.mxu0 %v1259
        %1433 = vmatprep.subr.bf16.mxu0 %v1268
        %1434 = vmatpush1.bf16.msra.mxu0 %v1267
        %1435 = vmatprep.mubr.bf16.mxu0 %v592
        %1436 = vmatmul.mubr.bf16.gmra.mrb[0].mxu0 %v591
        %v1437 = vpop.f32.mrb[0].mxu0
        %v1438 = vadd.f32 %v726, %v1437
        %v1439 = vpop.f32.mrb[0].mxu0
        %v1440 = vadd.f32 %v730, %v1439
        %v1441 = vpop.f32.mrb[0].mxu0
        %v1442 = vpop.f32.mrb[0].mxu0
        %1443 = vdwg.mxu0
        %1444 = vmatprep.subr.bf16.mxu0 %v1150
        %1445 = vmatpush1.bf16.msra.mxu0 %v1149
        %1446 = vmatprep.subr.bf16.mxu0 %v1158
        %1447 = vmatpush1.bf16.msra.mxu0 %v1157
        %1448 = vmatprep.subr.bf16.mxu0 %v1166
        %1449 = vmatpush1.bf16.msra.mxu0 %v1165
        %1450 = vmatprep.subr.bf16.mxu0 %v1174
        %1451 = vmatpush1.bf16.msra.mxu0 %v1173
        %1452 = vmatprep.subr.bf16.mxu0 %v1182
        %1453 = vmatpush1.bf16.msra.mxu0 %v1181
        %1454 = vmatprep.subr.bf16.mxu0 %v1190
        %1455 = vmatpush1.bf16.msra.mxu0 %v1189
        %1456 = vmatprep.subr.bf16.mxu0 %v1198
        %1457 = vmatpush1.bf16.msra.mxu0 %v1197
        %1458 = vmatprep.subr.bf16.mxu0 %v1206
        %1459 = vmatpush1.bf16.msra.mxu0 %v1205
        %1460 = vmatprep.subr.bf16.mxu0 %v1214
        %1461 = vmatpush1.bf16.msra.mxu0 %v1213
        %1462 = vmatprep.subr.bf16.mxu0 %v1222
        %1463 = vmatpush1.bf16.msra.mxu0 %v1221
        %1464 = vmatprep.subr.bf16.mxu0 %v1230
        %1465 = vmatpush1.bf16.msra.mxu0 %v1229
        %1466 = vmatprep.subr.bf16.mxu0 %v1238
        %1467 = vmatpush1.bf16.msra.mxu0 %v1237
        %1468 = vmatprep.subr.bf16.mxu0 %v1246
        %1469 = vmatpush1.bf16.msra.mxu0 %v1245
        %1470 = vmatprep.subr.bf16.mxu0 %v1254
        %1471 = vmatpush1.bf16.msra.mxu0 %v1253
        %1472 = vmatprep.subr.bf16.mxu0 %v1262
        %1473 = vmatpush1.bf16.msra.mxu0 %v1261
        %1474 = vmatprep.subr.bf16.mxu0 %v1270
        %1475 = vmatpush1.bf16.msra.mxu0 %v1269
        %1476 = vmatprep.mubr.bf16.mxu0 %v592
        %1477 = vmatmul.mubr.bf16.gmra.mrb[0].mxu0 %v591
        %v1478 = vpop.f32.mrb[0].mxu0
        %v1479 = vadd.f32 %v734, %v1478
        %v1480 = vpop.f32.mrb[0].mxu0
        %v1481 = vadd.f32 %v738, %v1480
        %v1482 = vpop.f32.mrb[0].mxu0
        %v1483 = vpop.f32.mrb[0].mxu0
        %1484 = vdwg.mxu0
        %1485 = vmatprep.subr.bf16.mxu0 %v1152
        %1486 = vmatpush1.bf16.msra.mxu0 %v1151
        %1487 = vmatprep.subr.bf16.mxu0 %v1160
        %1488 = vmatpush1.bf16.msra.mxu0 %v1159
        %1489 = vmatprep.subr.bf16.mxu0 %v1168
        %1490 = vmatpush1.bf16.msra.mxu0 %v1167
        %1491 = vmatprep.subr.bf16.mxu0 %v1176
        %1492 = vmatpush1.bf16.msra.mxu0 %v1175
        %1493 = vmatprep.subr.bf16.mxu0 %v1184
        %1494 = vmatpush1.bf16.msra.mxu0 %v1183
        %1495 = vmatprep.subr.bf16.mxu0 %v1192
        %1496 = vmatpush1.bf16.msra.mxu0 %v1191
        %1497 = vmatprep.subr.bf16.mxu0 %v1200
        %1498 = vmatpush1.bf16.msra.mxu0 %v1199
        %1499 = vmatprep.subr.bf16.mxu0 %v1208
        %1500 = vmatpush1.bf16.msra.mxu0 %v1207
        %1501 = vmatprep.subr.bf16.mxu0 %v1216
        %1502 = vmatpush1.bf16.msra.mxu0 %v1215
        %1503 = vmatprep.subr.bf16.mxu0 %v1224
        %1504 = vmatpush1.bf16.msra.mxu0 %v1223
        %1505 = vmatprep.subr.bf16.mxu0 %v1232
        %1506 = vmatpush1.bf16.msra.mxu0 %v1231
        %1507 = vmatprep.subr.bf16.mxu0 %v1240
        %1508 = vmatpush1.bf16.msra.mxu0 %v1239
        %1509 = vmatprep.subr.bf16.mxu0 %v1248
        %1510 = vmatpush1.bf16.msra.mxu0 %v1247
        %1511 = vmatprep.subr.bf16.mxu0 %v1256
        %1512 = vmatpush1.bf16.msra.mxu0 %v1255
        %1513 = vmatprep.subr.bf16.mxu0 %v1264
        %1514 = vmatpush1.bf16.msra.mxu0 %v1263
        %1515 = vmatprep.subr.bf16.mxu0 %v1272
        %1516 = vmatpush1.bf16.msra.mxu0 %v1271
        %1517 = vmatprep.mubr.bf16.mxu0 %v592
        %1518 = vmatmul.mubr.bf16.gmra.mrb[0].mxu0 %v591
        %v1519 = vpop.f32.mrb[0].mxu0
        %v1520 = vadd.f32 %v742, %v1519
        %v1521 = vpop.f32.mrb[0].mxu0
        %v1522 = vadd.f32 %v746, %v1521
        %v1523 = vpop.f32.mrb[0].mxu0
        %v1524 = vpop.f32.mrb[0].mxu0
        %1525 = vdwg.mxu0
        %1526 = vmatprep.subr.bf16.mxu0 %v1154
        %1527 = vmatpush1.bf16.msra.mxu0 %v1153
        %1528 = vmatprep.subr.bf16.mxu0 %v1162
        %1529 = vmatpush1.bf16.msra.mxu0 %v1161
        %1530 = vmatprep.subr.bf16.mxu0 %v1170
        %1531 = vmatpush1.bf16.msra.mxu0 %v1169
        %1532 = vmatprep.subr.bf16.mxu0 %v1178
        %1533 = vmatpush1.bf16.msra.mxu0 %v1177
        %1534 = vmatprep.subr.bf16.mxu0 %v1186
        %1535 = vmatpush1.bf16.msra.mxu0 %v1185
        %1536 = vmatprep.subr.bf16.mxu0 %v1194
        %1537 = vmatpush1.bf16.msra.mxu0 %v1193
        %1538 = vmatprep.subr.bf16.mxu0 %v1202
        %1539 = vmatpush1.bf16.msra.mxu0 %v1201
        %1540 = vmatprep.subr.bf16.mxu0 %v1210
        %1541 = vmatpush1.bf16.msra.mxu0 %v1209
        %1542 = vmatprep.subr.bf16.mxu0 %v1218
        %1543 = vmatpush1.bf16.msra.mxu0 %v1217
        %1544 = vmatprep.subr.bf16.mxu0 %v1226
        %1545 = vmatpush1.bf16.msra.mxu0 %v1225
        %1546 = vmatprep.subr.bf16.mxu0 %v1234
        %1547 = vmatpush1.bf16.msra.mxu0 %v1233
        %1548 = vmatprep.subr.bf16.mxu0 %v1242
        %1549 = vmatpush1.bf16.msra.mxu0 %v1241
        %1550 = vmatprep.subr.bf16.mxu0 %v1250
        %1551 = vmatpush1.bf16.msra.mxu0 %v1249
        %1552 = vmatprep.subr.bf16.mxu0 %v1258
        %1553 = vmatpush1.bf16.msra.mxu0 %v1257
        %1554 = vmatprep.subr.bf16.mxu0 %v1266
        %1555 = vmatpush1.bf16.msra.mxu0 %v1265
        %1556 = vmatprep.subr.bf16.mxu0 %v1274
        %1557 = vmatpush1.bf16.msra.mxu0 %v1273
        %1558 = vmatprep.mubr.bf16.mxu0 %v592
        %1559 = vmatmul.mubr.bf16.gmra.mrb[0].mxu0 %v591
        %v1560 = vpop.f32.mrb[0].mxu0
        %v1561 = vadd.f32 %v750, %v1560
        %v1562 = vpop.f32.mrb[0].mxu0
        %v1563 = vadd.f32 %v754, %v1562
        %v1564 = vpop.f32.mrb[0].mxu0
        %v1565 = vpop.f32.mrb[0].mxu0
        %1566 = vdwg.mxu0
        %vm1567 = vcmp.gt.f32.partialorder %v1438, 0.0
        %vm1568 = vcmp.gt.f32.partialorder %v1440, 0.0
        %vm1569 = vcmp.gt.f32.partialorder %v1479, 0.0
        %vm1570 = vcmp.gt.f32.partialorder %v1481, 0.0
        %vm1571 = vcmp.gt.f32.partialorder %v1520, 0.0
        %vm1572 = vcmp.gt.f32.partialorder %v1522, 0.0
        %vm1573 = vcmp.gt.f32.partialorder %v1561, 0.0
        %vm1574 = vcmp.gt.f32.partialorder %v1563, 0.0
        %v1575 = vmul.f32 %v1438, 0.2
        %v1576 = vmul.f32 %v1440, 0.2
        %v1577 = vmul.f32 %v1479, 0.2
        %v1578 = vmul.f32 %v1481, 0.2
        %v1579 = vmul.f32 %v1520, 0.2
        %v1580 = vmul.f32 %v1522, 0.2
        %v1581 = vmul.f32 %v1561, 0.2
        %v1582 = vmul.f32 %v1563, 0.2
        %v1583 = vsel %vm1567, %v1438, %v1575
        %v1584 = vsel %vm1568, %v1440, %v1576
        %v1585 = vsel %vm1569, %v1479, %v1577
        %v1586 = vsel %vm1570, %v1481, %v1578
        %v1587 = vsel %vm1571, %v1520, %v1579
        %v1588 = vsel %vm1572, %v1522, %v1580
        %v1589 = vsel %vm1573, %v1561, %v1581
        %v1590 = vsel %vm1574, %v1563, %v1582
        %v1591 = vpack.c.bf16 %v1583, %v1583
        %v1592 = vpack.c.bf16 %v1584, %v1584
        %v1593 = vpack.c.bf16 %v1585, %v1585
        %v1594 = vpack.c.bf16 %v1586, %v1586
        %v1595 = vpack.c.bf16 %v1587, %v1587
        %v1596 = vpack.c.bf16 %v1588, %v1588
        %v1597 = vpack.c.bf16 %v1589, %v1589
        %v1598 = vpack.c.bf16 %v1590, %v1590
        %v1599 = vld [vmem:[#allocation2] sm:$0xff]
        %v1600 = vld [vmem:[#allocation2 + $0x8] sm:$0xff]
        %v1601 = vld [vmem:[%s515] sm:$0xff]
        %v1602 = vld [vmem:[%s515 + $0x8] sm:$0xff]
        %v1603 = vld [vmem:[%s515 + $0x10] sm:$0xff]
        %v1604 = vld [vmem:[%s515 + $0x18] sm:$0xff]
        %v1605 = vld [vmem:[%s515 + $0x20] sm:$0xff]
        %v1606 = vld [vmem:[%s515 + $0x28] sm:$0xff]
        %v1607 = vld [vmem:[%s515 + $0x30] sm:$0xff]
        %v1608 = vld [vmem:[%s515 + $0x38] sm:$0xff]
        %v1609 = vld [vmem:[%s515 + $0x40] sm:$0xff]
        %v1610 = vld [vmem:[%s515 + $0x48] sm:$0xff]
        %v1611 = vld [vmem:[%s515 + $0x50] sm:$0xff]
        %v1612 = vld [vmem:[%s515 + $0x58] sm:$0xff]
        %v1613 = vld [vmem:[%s515 + $0x60] sm:$0xff]
        %v1614 = vld [vmem:[%s515 + $0x68] sm:$0xff]
        %v1615 = vld [vmem:[%s515 + $0x70] sm:$0xff]
        %v1616 = vld [vmem:[%s515 + $0x78] sm:$0xff]
        %v1617 = vld [vmem:[%s515 + $0x80] sm:$0xff]
        %v1618 = vld [vmem:[%s515 + $0x88] sm:$0xff]
        %v1619 = vld [vmem:[%s515 + $0x90] sm:$0xff]
        %v1620 = vld [vmem:[%s515 + $0x98] sm:$0xff]
        %v1621 = vld [vmem:[%s515 + $0xa0] sm:$0xff]
        %v1622 = vld [vmem:[%s515 + $0xa8] sm:$0xff]
        %v1623 = vld [vmem:[%s515 + $0xb0] sm:$0xff]
        %v1624 = vld [vmem:[%s515 + $0xb8] sm:$0xff]
        %v1625 = vld [vmem:[%s515 + $0xc0] sm:$0xff]
        %v1626 = vld [vmem:[%s515 + $0xc8] sm:$0xff]
        %v1627 = vld [vmem:[%s515 + $0xd0] sm:$0xff]
        %v1628 = vld [vmem:[%s515 + $0xd8] sm:$0xff]
        %v1629 = vld [vmem:[%s515 + $0xe0] sm:$0xff]
        %v1630 = vld [vmem:[%s515 + $0xe8] sm:$0xff]
        %v1631 = vld [vmem:[%s515 + $0xf0] sm:$0xff]
        %v1632 = vld [vmem:[%s515 + $0xf8] sm:$0xff]
        %v1633 = vld [vmem:[%s515 + $0x100] sm:$0xff]
        %v1634 = vld [vmem:[%s515 + $0x108] sm:$0xff]
        %v1635 = vld [vmem:[%s515 + $0x110] sm:$0xff]
        %v1636 = vld [vmem:[%s515 + $0x118] sm:$0xff]
        %v1637 = vld [vmem:[%s515 + $0x120] sm:$0xff]
        %v1638 = vld [vmem:[%s515 + $0x128] sm:$0xff]
        %v1639 = vld [vmem:[%s515 + $0x130] sm:$0xff]
        %v1640 = vld [vmem:[%s515 + $0x138] sm:$0xff]
        %v1641 = vld [vmem:[%s515 + $0x140] sm:$0xff]
        %v1642 = vld [vmem:[%s515 + $0x148] sm:$0xff]
        %v1643 = vld [vmem:[%s515 + $0x150] sm:$0xff]
        %v1644 = vld [vmem:[%s515 + $0x158] sm:$0xff]
        %v1645 = vld [vmem:[%s515 + $0x160] sm:$0xff]
        %v1646 = vld [vmem:[%s515 + $0x168] sm:$0xff]
        %v1647 = vld [vmem:[%s515 + $0x170] sm:$0xff]
        %v1648 = vld [vmem:[%s515 + $0x178] sm:$0xff]
        %v1649 = vld [vmem:[%s515 + $0x180] sm:$0xff]
        %v1650 = vld [vmem:[%s515 + $0x188] sm:$0xff]
        %v1651 = vld [vmem:[%s515 + $0x190] sm:$0xff]
        %v1652 = vld [vmem:[%s515 + $0x198] sm:$0xff]
        %v1653 = vld [vmem:[%s515 + $0x1a0] sm:$0xff]
        %v1654 = vld [vmem:[%s515 + $0x1a8] sm:$0xff]
        %v1655 = vld [vmem:[%s515 + $0x1b0] sm:$0xff]
        %v1656 = vld [vmem:[%s515 + $0x1b8] sm:$0xff]
        %v1657 = vld [vmem:[%s515 + $0x1c0] sm:$0xff]
        %v1658 = vld [vmem:[%s515 + $0x1c8] sm:$0xff]
        %v1659 = vld [vmem:[%s515 + $0x1d0] sm:$0xff]
        %v1660 = vld [vmem:[%s515 + $0x1d8] sm:$0xff]
        %v1661 = vld [vmem:[%s515 + $0x1e0] sm:$0xff]
        %v1662 = vld [vmem:[%s515 + $0x1e8] sm:$0xff]
        %v1663 = vld [vmem:[%s515 + $0x1f0] sm:$0xff]
        %v1664 = vld [vmem:[%s515 + $0x1f8] sm:$0xff]
        %v1665 = vld [vmem:[%s515 + $0x200] sm:$0xff]
        %v1666 = vld [vmem:[%s515 + $0x208] sm:$0xff]
        %v1667 = vld [vmem:[%s515 + $0x210] sm:$0xff]
        %v1668 = vld [vmem:[%s515 + $0x218] sm:$0xff]
        %v1669 = vld [vmem:[%s515 + $0x220] sm:$0xff]
        %v1670 = vld [vmem:[%s515 + $0x228] sm:$0xff]
        %v1671 = vld [vmem:[%s515 + $0x230] sm:$0xff]
        %v1672 = vld [vmem:[%s515 + $0x238] sm:$0xff]
        %v1673 = vld [vmem:[%s515 + $0x240] sm:$0xff]
        %v1674 = vld [vmem:[%s515 + $0x248] sm:$0xff]
        %v1675 = vld [vmem:[%s515 + $0x250] sm:$0xff]
        %v1676 = vld [vmem:[%s515 + $0x258] sm:$0xff]
        %v1677 = vld [vmem:[%s515 + $0x260] sm:$0xff]
        %v1678 = vld [vmem:[%s515 + $0x268] sm:$0xff]
        %v1679 = vld [vmem:[%s515 + $0x270] sm:$0xff]
        %v1680 = vld [vmem:[%s515 + $0x278] sm:$0xff]
        %v1681 = vld [vmem:[%s515 + $0x280] sm:$0xff]
        %v1682 = vld [vmem:[%s515 + $0x288] sm:$0xff]
        %v1683 = vld [vmem:[%s515 + $0x290] sm:$0xff]
        %v1684 = vld [vmem:[%s515 + $0x298] sm:$0xff]
        %v1685 = vld [vmem:[%s515 + $0x2a0] sm:$0xff]
        %v1686 = vld [vmem:[%s515 + $0x2a8] sm:$0xff]
        %v1687 = vld [vmem:[%s515 + $0x2b0] sm:$0xff]
        %v1688 = vld [vmem:[%s515 + $0x2b8] sm:$0xff]
        %v1689 = vld [vmem:[%s515 + $0x2c0] sm:$0xff]
        %v1690 = vld [vmem:[%s515 + $0x2c8] sm:$0xff]
        %v1691 = vld [vmem:[%s515 + $0x2d0] sm:$0xff]
        %v1692 = vld [vmem:[%s515 + $0x2d8] sm:$0xff]
        %v1693 = vld [vmem:[%s515 + $0x2e0] sm:$0xff]
        %v1694 = vld [vmem:[%s515 + $0x2e8] sm:$0xff]
        %v1695 = vld [vmem:[%s515 + $0x2f0] sm:$0xff]
        %v1696 = vld [vmem:[%s515 + $0x2f8] sm:$0xff]
        %v1697 = vld [vmem:[%s515 + $0x300] sm:$0xff]
        %v1698 = vld [vmem:[%s515 + $0x308] sm:$0xff]
        %v1699 = vld [vmem:[%s515 + $0x310] sm:$0xff]
        %v1700 = vld [vmem:[%s515 + $0x318] sm:$0xff]
        %v1701 = vld [vmem:[%s515 + $0x320] sm:$0xff]
        %v1702 = vld [vmem:[%s515 + $0x328] sm:$0xff]
        %v1703 = vld [vmem:[%s515 + $0x330] sm:$0xff]
        %v1704 = vld [vmem:[%s515 + $0x338] sm:$0xff]
        %v1705 = vld [vmem:[%s515 + $0x340] sm:$0xff]
        %v1706 = vld [vmem:[%s515 + $0x348] sm:$0xff]
        %v1707 = vld [vmem:[%s515 + $0x350] sm:$0xff]
        %v1708 = vld [vmem:[%s515 + $0x358] sm:$0xff]
        %v1709 = vld [vmem:[%s515 + $0x360] sm:$0xff]
        %v1710 = vld [vmem:[%s515 + $0x368] sm:$0xff]
        %v1711 = vld [vmem:[%s515 + $0x370] sm:$0xff]
        %v1712 = vld [vmem:[%s515 + $0x378] sm:$0xff]
        %v1713 = vld [vmem:[%s515 + $0x380] sm:$0xff]
        %v1714 = vld [vmem:[%s515 + $0x388] sm:$0xff]
        %v1715 = vld [vmem:[%s515 + $0x390] sm:$0xff]
        %v1716 = vld [vmem:[%s515 + $0x398] sm:$0xff]
        %v1717 = vld [vmem:[%s515 + $0x3a0] sm:$0xff]
        %v1718 = vld [vmem:[%s515 + $0x3a8] sm:$0xff]
        %v1719 = vld [vmem:[%s515 + $0x3b0] sm:$0xff]
        %v1720 = vld [vmem:[%s515 + $0x3b8] sm:$0xff]
        %v1721 = vld [vmem:[%s515 + $0x3c0] sm:$0xff]
        %v1722 = vld [vmem:[%s515 + $0x3c8] sm:$0xff]
        %v1723 = vld [vmem:[%s515 + $0x3d0] sm:$0xff]
        %v1724 = vld [vmem:[%s515 + $0x3d8] sm:$0xff]
        %v1725 = vld [vmem:[%s515 + $0x3e0] sm:$0xff]
        %v1726 = vld [vmem:[%s515 + $0x3e8] sm:$0xff]
        %v1727 = vld [vmem:[%s515 + $0x3f0] sm:$0xff]
        %v1728 = vld [vmem:[%s515 + $0x3f8] sm:$0xff]
        %v1857 = vunpack.c.l.b16 %v1601
        %v1858 = vunpack.c.h.b16 %v1601
        %v1859 = vunpack.c.l.b16 %v1602
        %v1860 = vunpack.c.h.b16 %v1602
        %v1861 = vunpack.c.l.b16 %v1603
        %v1862 = vunpack.c.h.b16 %v1603
        %v1863 = vunpack.c.l.b16 %v1604
        %v1864 = vunpack.c.h.b16 %v1604
        %v1865 = vunpack.c.l.b16 %v1605
        %v1866 = vunpack.c.h.b16 %v1605
        %v1867 = vunpack.c.l.b16 %v1606
        %v1868 = vunpack.c.h.b16 %v1606
        %v1869 = vunpack.c.l.b16 %v1607
        %v1870 = vunpack.c.h.b16 %v1607
        %v1871 = vunpack.c.l.b16 %v1608
        %v1872 = vunpack.c.h.b16 %v1608
        %v1873 = vunpack.c.l.b16 %v1609
        %v1874 = vunpack.c.h.b16 %v1609
        %v1875 = vunpack.c.l.b16 %v1610
        %v1876 = vunpack.c.h.b16 %v1610
        %v1877 = vunpack.c.l.b16 %v1611
        %v1878 = vunpack.c.h.b16 %v1611
        %v1879 = vunpack.c.l.b16 %v1612
        %v1880 = vunpack.c.h.b16 %v1612
        %v1881 = vunpack.c.l.b16 %v1613
        %v1882 = vunpack.c.h.b16 %v1613
        %v1883 = vunpack.c.l.b16 %v1614
        %v1884 = vunpack.c.h.b16 %v1614
        %v1885 = vunpack.c.l.b16 %v1615
        %v1886 = vunpack.c.h.b16 %v1615
        %v1887 = vunpack.c.l.b16 %v1616
        %v1888 = vunpack.c.h.b16 %v1616
        %v1889 = vunpack.c.l.b16 %v1617
        %v1890 = vunpack.c.h.b16 %v1617
        %v1891 = vunpack.c.l.b16 %v1618
        %v1892 = vunpack.c.h.b16 %v1618
        %v1893 = vunpack.c.l.b16 %v1619
        %v1894 = vunpack.c.h.b16 %v1619
        %v1895 = vunpack.c.l.b16 %v1620
        %v1896 = vunpack.c.h.b16 %v1620
        %v1897 = vunpack.c.l.b16 %v1621
        %v1898 = vunpack.c.h.b16 %v1621
        %v1899 = vunpack.c.l.b16 %v1622
        %v1900 = vunpack.c.h.b16 %v1622
        %v1901 = vunpack.c.l.b16 %v1623
        %v1902 = vunpack.c.h.b16 %v1623
        %v1903 = vunpack.c.l.b16 %v1624
        %v1904 = vunpack.c.h.b16 %v1624
        %v1905 = vunpack.c.l.b16 %v1625
        %v1906 = vunpack.c.h.b16 %v1625
        %v1907 = vunpack.c.l.b16 %v1626
        %v1908 = vunpack.c.h.b16 %v1626
        %v1909 = vunpack.c.l.b16 %v1627
        %v1910 = vunpack.c.h.b16 %v1627
        %v1911 = vunpack.c.l.b16 %v1628
        %v1912 = vunpack.c.h.b16 %v1628
        %v1913 = vunpack.c.l.b16 %v1629
        %v1914 = vunpack.c.h.b16 %v1629
        %v1915 = vunpack.c.l.b16 %v1630
        %v1916 = vunpack.c.h.b16 %v1630
        %v1917 = vunpack.c.l.b16 %v1631
        %v1918 = vunpack.c.h.b16 %v1631
        %v1919 = vunpack.c.l.b16 %v1632
        %v1920 = vunpack.c.h.b16 %v1632
        %v1921 = vunpack.c.l.b16 %v1633
        %v1922 = vunpack.c.h.b16 %v1633
        %v1923 = vunpack.c.l.b16 %v1634
        %v1924 = vunpack.c.h.b16 %v1634
        %v1925 = vunpack.c.l.b16 %v1635
        %v1926 = vunpack.c.h.b16 %v1635
        %v1927 = vunpack.c.l.b16 %v1636
        %v1928 = vunpack.c.h.b16 %v1636
        %v1929 = vunpack.c.l.b16 %v1637
        %v1930 = vunpack.c.h.b16 %v1637
        %v1931 = vunpack.c.l.b16 %v1638
        %v1932 = vunpack.c.h.b16 %v1638
        %v1933 = vunpack.c.l.b16 %v1639
        %v1934 = vunpack.c.h.b16 %v1639
        %v1935 = vunpack.c.l.b16 %v1640
        %v1936 = vunpack.c.h.b16 %v1640
        %v1937 = vunpack.c.l.b16 %v1641
        %v1938 = vunpack.c.h.b16 %v1641
        %v1939 = vunpack.c.l.b16 %v1642
        %v1940 = vunpack.c.h.b16 %v1642
        %v1941 = vunpack.c.l.b16 %v1643
        %v1942 = vunpack.c.h.b16 %v1643
        %v1943 = vunpack.c.l.b16 %v1644
        %v1944 = vunpack.c.h.b16 %v1644
        %v1945 = vunpack.c.l.b16 %v1645
        %v1946 = vunpack.c.h.b16 %v1645
        %v1947 = vunpack.c.l.b16 %v1646
        %v1948 = vunpack.c.h.b16 %v1646
        %v1949 = vunpack.c.l.b16 %v1647
        %v1950 = vunpack.c.h.b16 %v1647
        %v1951 = vunpack.c.l.b16 %v1648
        %v1952 = vunpack.c.h.b16 %v1648
        %v1953 = vunpack.c.l.b16 %v1649
        %v1954 = vunpack.c.h.b16 %v1649
        %v1955 = vunpack.c.l.b16 %v1650
        %v1956 = vunpack.c.h.b16 %v1650
        %v1957 = vunpack.c.l.b16 %v1651
        %v1958 = vunpack.c.h.b16 %v1651
        %v1959 = vunpack.c.l.b16 %v1652
        %v1960 = vunpack.c.h.b16 %v1652
        %v1961 = vunpack.c.l.b16 %v1653
        %v1962 = vunpack.c.h.b16 %v1653
        %v1963 = vunpack.c.l.b16 %v1654
        %v1964 = vunpack.c.h.b16 %v1654
        %v1965 = vunpack.c.l.b16 %v1655
        %v1966 = vunpack.c.h.b16 %v1655
        %v1967 = vunpack.c.l.b16 %v1656
        %v1968 = vunpack.c.h.b16 %v1656
        %v1969 = vunpack.c.l.b16 %v1657
        %v1970 = vunpack.c.h.b16 %v1657
        %v1971 = vunpack.c.l.b16 %v1658
        %v1972 = vunpack.c.h.b16 %v1658
        %v1973 = vunpack.c.l.b16 %v1659
        %v1974 = vunpack.c.h.b16 %v1659
        %v1975 = vunpack.c.l.b16 %v1660
        %v1976 = vunpack.c.h.b16 %v1660
        %v1977 = vunpack.c.l.b16 %v1661
        %v1978 = vunpack.c.h.b16 %v1661
        %v1979 = vunpack.c.l.b16 %v1662
        %v1980 = vunpack.c.h.b16 %v1662
        %v1981 = vunpack.c.l.b16 %v1663
        %v1982 = vunpack.c.h.b16 %v1663
        %v1983 = vunpack.c.l.b16 %v1664
        %v1984 = vunpack.c.h.b16 %v1664
        %v1985 = vunpack.c.l.b16 %v1665
        %v1986 = vunpack.c.h.b16 %v1665
        %v1987 = vunpack.c.l.b16 %v1666
        %v1988 = vunpack.c.h.b16 %v1666
        %v1989 = vunpack.c.l.b16 %v1667
        %v1990 = vunpack.c.h.b16 %v1667
        %v1991 = vunpack.c.l.b16 %v1668
        %v1992 = vunpack.c.h.b16 %v1668
        %v1993 = vunpack.c.l.b16 %v1669
        %v1994 = vunpack.c.h.b16 %v1669
        %v1995 = vunpack.c.l.b16 %v1670
        %v1996 = vunpack.c.h.b16 %v1670
        %v1997 = vunpack.c.l.b16 %v1671
        %v1998 = vunpack.c.h.b16 %v1671
        %v1999 = vunpack.c.l.b16 %v1672
        %v2000 = vunpack.c.h.b16 %v1672
        %v2001 = vunpack.c.l.b16 %v1673
        %v2002 = vunpack.c.h.b16 %v1673
        %v2003 = vunpack.c.l.b16 %v1674
        %v2004 = vunpack.c.h.b16 %v1674
        %v2005 = vunpack.c.l.b16 %v1675
        %v2006 = vunpack.c.h.b16 %v1675
        %v2007 = vunpack.c.l.b16 %v1676
        %v2008 = vunpack.c.h.b16 %v1676
        %v2009 = vunpack.c.l.b16 %v1677
        %v2010 = vunpack.c.h.b16 %v1677
        %v2011 = vunpack.c.l.b16 %v1678
        %v2012 = vunpack.c.h.b16 %v1678
        %v2013 = vunpack.c.l.b16 %v1679
        %v2014 = vunpack.c.h.b16 %v1679
        %v2015 = vunpack.c.l.b16 %v1680
        %v2016 = vunpack.c.h.b16 %v1680
        %v2017 = vunpack.c.l.b16 %v1681
        %v2018 = vunpack.c.h.b16 %v1681
        %v2019 = vunpack.c.l.b16 %v1682
        %v2020 = vunpack.c.h.b16 %v1682
        %v2021 = vunpack.c.l.b16 %v1683
        %v2022 = vunpack.c.h.b16 %v1683
        %v2023 = vunpack.c.l.b16 %v1684
        %v2024 = vunpack.c.h.b16 %v1684
        %v2025 = vunpack.c.l.b16 %v1685
        %v2026 = vunpack.c.h.b16 %v1685
        %v2027 = vunpack.c.l.b16 %v1686
        %v2028 = vunpack.c.h.b16 %v1686
        %v2029 = vunpack.c.l.b16 %v1687
        %v2030 = vunpack.c.h.b16 %v1687
        %v2031 = vunpack.c.l.b16 %v1688
        %v2032 = vunpack.c.h.b16 %v1688
        %v2033 = vunpack.c.l.b16 %v1689
        %v2034 = vunpack.c.h.b16 %v1689
        %v2035 = vunpack.c.l.b16 %v1690
        %v2036 = vunpack.c.h.b16 %v1690
        %v2037 = vunpack.c.l.b16 %v1691
        %v2038 = vunpack.c.h.b16 %v1691
        %v2039 = vunpack.c.l.b16 %v1692
        %v2040 = vunpack.c.h.b16 %v1692
        %v2041 = vunpack.c.l.b16 %v1693
        %v2042 = vunpack.c.h.b16 %v1693
        %v2043 = vunpack.c.l.b16 %v1694
        %v2044 = vunpack.c.h.b16 %v1694
        %v2045 = vunpack.c.l.b16 %v1695
        %v2046 = vunpack.c.h.b16 %v1695
        %v2047 = vunpack.c.l.b16 %v1696
        %v2048 = vunpack.c.h.b16 %v1696
        %v2049 = vunpack.c.l.b16 %v1697
        %v2050 = vunpack.c.h.b16 %v1697
        %v2051 = vunpack.c.l.b16 %v1698
        %v2052 = vunpack.c.h.b16 %v1698
        %v2053 = vunpack.c.l.b16 %v1699
        %v2054 = vunpack.c.h.b16 %v1699
        %v2055 = vunpack.c.l.b16 %v1700
        %v2056 = vunpack.c.h.b16 %v1700
        %v2057 = vunpack.c.l.b16 %v1701
        %v2058 = vunpack.c.h.b16 %v1701
        %v2059 = vunpack.c.l.b16 %v1702
        %v2060 = vunpack.c.h.b16 %v1702
        %v2061 = vunpack.c.l.b16 %v1703
        %v2062 = vunpack.c.h.b16 %v1703
        %v2063 = vunpack.c.l.b16 %v1704
        %v2064 = vunpack.c.h.b16 %v1704
        %v2065 = vunpack.c.l.b16 %v1705
        %v2066 = vunpack.c.h.b16 %v1705
        %v2067 = vunpack.c.l.b16 %v1706
        %v2068 = vunpack.c.h.b16 %v1706
        %v2069 = vunpack.c.l.b16 %v1707
        %v2070 = vunpack.c.h.b16 %v1707
        %v2071 = vunpack.c.l.b16 %v1708
        %v2072 = vunpack.c.h.b16 %v1708
        %v2073 = vunpack.c.l.b16 %v1709
        %v2074 = vunpack.c.h.b16 %v1709
        %v2075 = vunpack.c.l.b16 %v1710
        %v2076 = vunpack.c.h.b16 %v1710
        %v2077 = vunpack.c.l.b16 %v1711
        %v2078 = vunpack.c.h.b16 %v1711
        %v2079 = vunpack.c.l.b16 %v1712
        %v2080 = vunpack.c.h.b16 %v1712
        %v2081 = vunpack.c.l.b16 %v1713
        %v2082 = vunpack.c.h.b16 %v1713
        %v2083 = vunpack.c.l.b16 %v1714
        %v2084 = vunpack.c.h.b16 %v1714
        %v2085 = vunpack.c.l.b16 %v1715
        %v2086 = vunpack.c.h.b16 %v1715
        %v2087 = vunpack.c.l.b16 %v1716
        %v2088 = vunpack.c.h.b16 %v1716
        %v2089 = vunpack.c.l.b16 %v1717
        %v2090 = vunpack.c.h.b16 %v1717
        %v2091 = vunpack.c.l.b16 %v1718
        %v2092 = vunpack.c.h.b16 %v1718
        %v2093 = vunpack.c.l.b16 %v1719
        %v2094 = vunpack.c.h.b16 %v1719
        %v2095 = vunpack.c.l.b16 %v1720
        %v2096 = vunpack.c.h.b16 %v1720
        %v2097 = vunpack.c.l.b16 %v1721
        %v2098 = vunpack.c.h.b16 %v1721
        %v2099 = vunpack.c.l.b16 %v1722
        %v2100 = vunpack.c.h.b16 %v1722
        %v2101 = vunpack.c.l.b16 %v1723
        %v2102 = vunpack.c.h.b16 %v1723
        %v2103 = vunpack.c.l.b16 %v1724
        %v2104 = vunpack.c.h.b16 %v1724
        %v2105 = vunpack.c.l.b16 %v1725
        %v2106 = vunpack.c.h.b16 %v1725
        %v2107 = vunpack.c.l.b16 %v1726
        %v2108 = vunpack.c.h.b16 %v1726
        %v2109 = vunpack.c.l.b16 %v1727
        %v2110 = vunpack.c.h.b16 %v1727
        %v2111 = vunpack.c.l.b16 %v1728
        %v2112 = vunpack.c.h.b16 %v1728
        %v2113 = vpack.c.b16 %v1859, %v1857
        %v2114 = vpack.c.b16 %v1860, %v1858
        %v2115 = vpack.c.b16 %v1863, %v1861
        %v2116 = vpack.c.b16 %v1864, %v1862
        %v2117 = vpack.c.b16 %v1867, %v1865
        %v2118 = vpack.c.b16 %v1868, %v1866
        %v2119 = vpack.c.b16 %v1871, %v1869
        %v2120 = vpack.c.b16 %v1872, %v1870
        %v2121 = vpack.c.b16 %v1875, %v1873
        %v2122 = vpack.c.b16 %v1876, %v1874
        %v2123 = vpack.c.b16 %v1879, %v1877
        %v2124 = vpack.c.b16 %v1880, %v1878
        %v2125 = vpack.c.b16 %v1883, %v1881
        %v2126 = vpack.c.b16 %v1884, %v1882
        %v2127 = vpack.c.b16 %v1887, %v1885
        %v2128 = vpack.c.b16 %v1888, %v1886
        %v2129 = vpack.c.b16 %v1891, %v1889
        %v2130 = vpack.c.b16 %v1892, %v1890
        %v2131 = vpack.c.b16 %v1895, %v1893
        %v2132 = vpack.c.b16 %v1896, %v1894
        %v2133 = vpack.c.b16 %v1899, %v1897
        %v2134 = vpack.c.b16 %v1900, %v1898
        %v2135 = vpack.c.b16 %v1903, %v1901
        %v2136 = vpack.c.b16 %v1904, %v1902
        %v2137 = vpack.c.b16 %v1907, %v1905
        %v2138 = vpack.c.b16 %v1908, %v1906
        %v2139 = vpack.c.b16 %v1911, %v1909
        %v2140 = vpack.c.b16 %v1912, %v1910
        %v2141 = vpack.c.b16 %v1915, %v1913
        %v2142 = vpack.c.b16 %v1916, %v1914
        %v2143 = vpack.c.b16 %v1919, %v1917
        %v2144 = vpack.c.b16 %v1920, %v1918
        %v2145 = vpack.c.b16 %v1923, %v1921
        %v2146 = vpack.c.b16 %v1924, %v1922
        %v2147 = vpack.c.b16 %v1927, %v1925
        %v2148 = vpack.c.b16 %v1928, %v1926
        %v2149 = vpack.c.b16 %v1931, %v1929
        %v2150 = vpack.c.b16 %v1932, %v1930
        %v2151 = vpack.c.b16 %v1935, %v1933
        %v2152 = vpack.c.b16 %v1936, %v1934
        %v2153 = vpack.c.b16 %v1939, %v1937
        %v2154 = vpack.c.b16 %v1940, %v1938
        %v2155 = vpack.c.b16 %v1943, %v1941
        %v2156 = vpack.c.b16 %v1944, %v1942
        %v2157 = vpack.c.b16 %v1947, %v1945
        %v2158 = vpack.c.b16 %v1948, %v1946
        %v2159 = vpack.c.b16 %v1951, %v1949
        %v2160 = vpack.c.b16 %v1952, %v1950
        %v2161 = vpack.c.b16 %v1955, %v1953
        %v2162 = vpack.c.b16 %v1956, %v1954
        %v2163 = vpack.c.b16 %v1959, %v1957
        %v2164 = vpack.c.b16 %v1960, %v1958
        %v2165 = vpack.c.b16 %v1963, %v1961
        %v2166 = vpack.c.b16 %v1964, %v1962
        %v2167 = vpack.c.b16 %v1967, %v1965
        %v2168 = vpack.c.b16 %v1968, %v1966
        %v2169 = vpack.c.b16 %v1971, %v1969
        %v2170 = vpack.c.b16 %v1972, %v1970
        %v2171 = vpack.c.b16 %v1975, %v1973
        %v2172 = vpack.c.b16 %v1976, %v1974
        %v2173 = vpack.c.b16 %v1979, %v1977
        %v2174 = vpack.c.b16 %v1980, %v1978
        %v2175 = vpack.c.b16 %v1983, %v1981
        %v2176 = vpack.c.b16 %v1984, %v1982
        %v2177 = vpack.c.b16 %v1987, %v1985
        %v2178 = vpack.c.b16 %v1988, %v1986
        %v2179 = vpack.c.b16 %v1991, %v1989
        %v2180 = vpack.c.b16 %v1992, %v1990
        %v2181 = vpack.c.b16 %v1995, %v1993
        %v2182 = vpack.c.b16 %v1996, %v1994
        %v2183 = vpack.c.b16 %v1999, %v1997
        %v2184 = vpack.c.b16 %v2000, %v1998
        %v2185 = vpack.c.b16 %v2003, %v2001
        %v2186 = vpack.c.b16 %v2004, %v2002
        %v2187 = vpack.c.b16 %v2007, %v2005
        %v2188 = vpack.c.b16 %v2008, %v2006
        %v2189 = vpack.c.b16 %v2011, %v2009
        %v2190 = vpack.c.b16 %v2012, %v2010
        %v2191 = vpack.c.b16 %v2015, %v2013
        %v2192 = vpack.c.b16 %v2016, %v2014
        %v2193 = vpack.c.b16 %v2019, %v2017
        %v2194 = vpack.c.b16 %v2020, %v2018
        %v2195 = vpack.c.b16 %v2023, %v2021
        %v2196 = vpack.c.b16 %v2024, %v2022
        %v2197 = vpack.c.b16 %v2027, %v2025
        %v2198 = vpack.c.b16 %v2028, %v2026
        %v2199 = vpack.c.b16 %v2031, %v2029
        %v2200 = vpack.c.b16 %v2032, %v2030
        %v2201 = vpack.c.b16 %v2035, %v2033
        %v2202 = vpack.c.b16 %v2036, %v2034
        %v2203 = vpack.c.b16 %v2039, %v2037
        %v2204 = vpack.c.b16 %v2040, %v2038
        %v2205 = vpack.c.b16 %v2043, %v2041
        %v2206 = vpack.c.b16 %v2044, %v2042
        %v2207 = vpack.c.b16 %v2047, %v2045
        %v2208 = vpack.c.b16 %v2048, %v2046
        %v2209 = vpack.c.b16 %v2051, %v2049
        %v2210 = vpack.c.b16 %v2052, %v2050
        %v2211 = vpack.c.b16 %v2055, %v2053
        %v2212 = vpack.c.b16 %v2056, %v2054
        %v2213 = vpack.c.b16 %v2059, %v2057
        %v2214 = vpack.c.b16 %v2060, %v2058
        %v2215 = vpack.c.b16 %v2063, %v2061
        %v2216 = vpack.c.b16 %v2064, %v2062
        %v2217 = vpack.c.b16 %v2067, %v2065
        %v2218 = vpack.c.b16 %v2068, %v2066
        %v2219 = vpack.c.b16 %v2071, %v2069
        %v2220 = vpack.c.b16 %v2072, %v2070
        %v2221 = vpack.c.b16 %v2075, %v2073
        %v2222 = vpack.c.b16 %v2076, %v2074
        %v2223 = vpack.c.b16 %v2079, %v2077
        %v2224 = vpack.c.b16 %v2080, %v2078
        %v2225 = vpack.c.b16 %v2083, %v2081
        %v2226 = vpack.c.b16 %v2084, %v2082
        %v2227 = vpack.c.b16 %v2087, %v2085
        %v2228 = vpack.c.b16 %v2088, %v2086
        %v2229 = vpack.c.b16 %v2091, %v2089
        %v2230 = vpack.c.b16 %v2092, %v2090
        %v2231 = vpack.c.b16 %v2095, %v2093
        %v2232 = vpack.c.b16 %v2096, %v2094
        %v2233 = vpack.c.b16 %v2099, %v2097
        %v2234 = vpack.c.b16 %v2100, %v2098
        %v2235 = vpack.c.b16 %v2103, %v2101
        %v2236 = vpack.c.b16 %v2104, %v2102
        %v2237 = vpack.c.b16 %v2107, %v2105
        %v2238 = vpack.c.b16 %v2108, %v2106
        %v2239 = vpack.c.b16 %v2111, %v2109
        %v2240 = vpack.c.b16 %v2112, %v2110
        %2369 = vmatprep.subr.bf16.mxu0 %v2114
        %2370 = vmatpush1.bf16.msra.mxu0 %v2113
        %2371 = vmatprep.subr.bf16.mxu0 %v2116
        %2372 = vmatpush1.bf16.msra.mxu0 %v2115
        %2373 = vmatprep.subr.bf16.mxu0 %v2118
        %2374 = vmatpush1.bf16.msra.mxu0 %v2117
        %2375 = vmatprep.subr.bf16.mxu0 %v2120
        %2376 = vmatpush1.bf16.msra.mxu0 %v2119
        %2377 = vmatprep.subr.bf16.mxu0 %v2122
        %2378 = vmatpush1.bf16.msra.mxu0 %v2121
        %2379 = vmatprep.subr.bf16.mxu0 %v2124
        %2380 = vmatpush1.bf16.msra.mxu0 %v2123
        %2381 = vmatprep.subr.bf16.mxu0 %v2126
        %2382 = vmatpush1.bf16.msra.mxu0 %v2125
        %2383 = vmatprep.subr.bf16.mxu0 %v2128
        %2384 = vmatpush1.bf16.msra.mxu0 %v2127
        %2385 = vmatprep.subr.bf16.mxu0 %v2130
        %2386 = vmatpush1.bf16.msra.mxu0 %v2129
        %2387 = vmatprep.subr.bf16.mxu0 %v2132
        %2388 = vmatpush1.bf16.msra.mxu0 %v2131
        %2389 = vmatprep.subr.bf16.mxu0 %v2134
        %2390 = vmatpush1.bf16.msra.mxu0 %v2133
        %2391 = vmatprep.subr.bf16.mxu0 %v2136
        %2392 = vmatpush1.bf16.msra.mxu0 %v2135
        %2393 = vmatprep.subr.bf16.mxu0 %v2138
        %2394 = vmatpush1.bf16.msra.mxu0 %v2137
        %2395 = vmatprep.subr.bf16.mxu0 %v2140
        %2396 = vmatpush1.bf16.msra.mxu0 %v2139
        %2397 = vmatprep.subr.bf16.mxu0 %v2142
        %2398 = vmatpush1.bf16.msra.mxu0 %v2141
        %2399 = vmatprep.subr.bf16.mxu0 %v2144
        %2400 = vmatpush1.bf16.msra.mxu0 %v2143
        %2401 = vmatprep.mubr.bf16.mxu0 %v1592
        %2402 = vmatmul.mubr.bf16.gmra.mrb[0].mxu0 %v1591
        %v2403 = vpop.f32.mrb[0].mxu0
        %v2404 = vadd.f32 0.0, %v2403
        %v2405 = vpop.f32.mrb[0].mxu0
        %v2406 = vadd.f32 0.0, %v2405
        %v2407 = vpop.f32.mrb[0].mxu0
        %v2408 = vpop.f32.mrb[0].mxu0
        %2409 = vdwg.mxu0
        %2410 = vmatprep.subr.bf16.mxu0 %v2146
        %2411 = vmatpush1.bf16.msra.mxu0 %v2145
        %2412 = vmatprep.subr.bf16.mxu0 %v2148
        %2413 = vmatpush1.bf16.msra.mxu0 %v2147
        %2414 = vmatprep.subr.bf16.mxu0 %v2150
        %2415 = vmatpush1.bf16.msra.mxu0 %v2149
        %2416 = vmatprep.subr.bf16.mxu0 %v2152
        %2417 = vmatpush1.bf16.msra.mxu0 %v2151
        %2418 = vmatprep.subr.bf16.mxu0 %v2154
        %2419 = vmatpush1.bf16.msra.mxu0 %v2153
        %2420 = vmatprep.subr.bf16.mxu0 %v2156
        %2421 = vmatpush1.bf16.msra.mxu0 %v2155
        %2422 = vmatprep.subr.bf16.mxu0 %v2158
        %2423 = vmatpush1.bf16.msra.mxu0 %v2157
        %2424 = vmatprep.subr.bf16.mxu0 %v2160
        %2425 = vmatpush1.bf16.msra.mxu0 %v2159
        %2426 = vmatprep.subr.bf16.mxu0 %v2162
        %2427 = vmatpush1.bf16.msra.mxu0 %v2161
        %2428 = vmatprep.subr.bf16.mxu0 %v2164
        %2429 = vmatpush1.bf16.msra.mxu0 %v2163
        %2430 = vmatprep.subr.bf16.mxu0 %v2166
        %2431 = vmatpush1.bf16.msra.mxu0 %v2165
        %2432 = vmatprep.subr.bf16.mxu0 %v2168
        %2433 = vmatpush1.bf16.msra.mxu0 %v2167
        %2434 = vmatprep.subr.bf16.mxu0 %v2170
        %2435 = vmatpush1.bf16.msra.mxu0 %v2169
        %2436 = vmatprep.subr.bf16.mxu0 %v2172
        %2437 = vmatpush1.bf16.msra.mxu0 %v2171
        %2438 = vmatprep.subr.bf16.mxu0 %v2174
        %2439 = vmatpush1.bf16.msra.mxu0 %v2173
        %2440 = vmatprep.subr.bf16.mxu0 %v2176
        %2441 = vmatpush1.bf16.msra.mxu0 %v2175
        %2442 = vmatprep.mubr.bf16.mxu0 %v1594
        %2443 = vmatmul.mubr.bf16.gmra.mrb[0].mxu0 %v1593
        %v2444 = vpop.f32.mrb[0].mxu0
        %v2445 = vadd.f32 %v2404, %v2444
        %v2446 = vpop.f32.mrb[0].mxu0
        %v2447 = vadd.f32 %v2406, %v2446
        %v2448 = vpop.f32.mrb[0].mxu0
        %v2449 = vpop.f32.mrb[0].mxu0
        %2450 = vdwg.mxu0
        %2451 = vmatprep.subr.bf16.mxu0 %v2178
        %2452 = vmatpush1.bf16.msra.mxu0 %v2177
        %2453 = vmatprep.subr.bf16.mxu0 %v2180
        %2454 = vmatpush1.bf16.msra.mxu0 %v2179
        %2455 = vmatprep.subr.bf16.mxu0 %v2182
        %2456 = vmatpush1.bf16.msra.mxu0 %v2181
        %2457 = vmatprep.subr.bf16.mxu0 %v2184
        %2458 = vmatpush1.bf16.msra.mxu0 %v2183
        %2459 = vmatprep.subr.bf16.mxu0 %v2186
        %2460 = vmatpush1.bf16.msra.mxu0 %v2185
        %2461 = vmatprep.subr.bf16.mxu0 %v2188
        %2462 = vmatpush1.bf16.msra.mxu0 %v2187
        %2463 = vmatprep.subr.bf16.mxu0 %v2190
        %2464 = vmatpush1.bf16.msra.mxu0 %v2189
        %2465 = vmatprep.subr.bf16.mxu0 %v2192
        %2466 = vmatpush1.bf16.msra.mxu0 %v2191
        %2467 = vmatprep.subr.bf16.mxu0 %v2194
        %2468 = vmatpush1.bf16.msra.mxu0 %v2193
        %2469 = vmatprep.subr.bf16.mxu0 %v2196
        %2470 = vmatpush1.bf16.msra.mxu0 %v2195
        %2471 = vmatprep.subr.bf16.mxu0 %v2198
        %2472 = vmatpush1.bf16.msra.mxu0 %v2197
        %2473 = vmatprep.subr.bf16.mxu0 %v2200
        %2474 = vmatpush1.bf16.msra.mxu0 %v2199
        %2475 = vmatprep.subr.bf16.mxu0 %v2202
        %2476 = vmatpush1.bf16.msra.mxu0 %v2201
        %2477 = vmatprep.subr.bf16.mxu0 %v2204
        %2478 = vmatpush1.bf16.msra.mxu0 %v2203
        %2479 = vmatprep.subr.bf16.mxu0 %v2206
        %2480 = vmatpush1.bf16.msra.mxu0 %v2205
        %2481 = vmatprep.subr.bf16.mxu0 %v2208
        %2482 = vmatpush1.bf16.msra.mxu0 %v2207
        %2483 = vmatprep.mubr.bf16.mxu0 %v1596
        %2484 = vmatmul.mubr.bf16.gmra.mrb[0].mxu0 %v1595
        %v2485 = vpop.f32.mrb[0].mxu0
        %v2486 = vadd.f32 %v2445, %v2485
        %v2487 = vpop.f32.mrb[0].mxu0
        %v2488 = vadd.f32 %v2447, %v2487
        %v2489 = vpop.f32.mrb[0].mxu0
        %v2490 = vpop.f32.mrb[0].mxu0
        %2491 = vdwg.mxu0
        %2492 = vmatprep.subr.bf16.mxu0 %v2210
        %2493 = vmatpush1.bf16.msra.mxu0 %v2209
        %2494 = vmatprep.subr.bf16.mxu0 %v2212
        %2495 = vmatpush1.bf16.msra.mxu0 %v2211
        %2496 = vmatprep.subr.bf16.mxu0 %v2214
        %2497 = vmatpush1.bf16.msra.mxu0 %v2213
        %2498 = vmatprep.subr.bf16.mxu0 %v2216
        %2499 = vmatpush1.bf16.msra.mxu0 %v2215
        %2500 = vmatprep.subr.bf16.mxu0 %v2218
        %2501 = vmatpush1.bf16.msra.mxu0 %v2217
        %2502 = vmatprep.subr.bf16.mxu0 %v2220
        %2503 = vmatpush1.bf16.msra.mxu0 %v2219
        %2504 = vmatprep.subr.bf16.mxu0 %v2222
        %2505 = vmatpush1.bf16.msra.mxu0 %v2221
        %2506 = vmatprep.subr.bf16.mxu0 %v2224
        %2507 = vmatpush1.bf16.msra.mxu0 %v2223
        %2508 = vmatprep.subr.bf16.mxu0 %v2226
        %2509 = vmatpush1.bf16.msra.mxu0 %v2225
        %2510 = vmatprep.subr.bf16.mxu0 %v2228
        %2511 = vmatpush1.bf16.msra.mxu0 %v2227
        %2512 = vmatprep.subr.bf16.mxu0 %v2230
        %2513 = vmatpush1.bf16.msra.mxu0 %v2229
        %2514 = vmatprep.subr.bf16.mxu0 %v2232
        %2515 = vmatpush1.bf16.msra.mxu0 %v2231
        %2516 = vmatprep.subr.bf16.mxu0 %v2234
        %2517 = vmatpush1.bf16.msra.mxu0 %v2233
        %2518 = vmatprep.subr.bf16.mxu0 %v2236
        %2519 = vmatpush1.bf16.msra.mxu0 %v2235
        %2520 = vmatprep.subr.bf16.mxu0 %v2238
        %2521 = vmatpush1.bf16.msra.mxu0 %v2237
        %2522 = vmatprep.subr.bf16.mxu0 %v2240
        %2523 = vmatpush1.bf16.msra.mxu0 %v2239
        %2524 = vmatprep.mubr.bf16.mxu0 %v1598
        %2525 = vmatmul.mubr.bf16.gmra.mrb[0].mxu0 %v1597
        %v2526 = vpop.f32.mrb[0].mxu0
        %v2527 = vadd.f32 %v2486, %v2526
        %v2528 = vpop.f32.mrb[0].mxu0
        %v2529 = vadd.f32 %v2488, %v2528
        %v2530 = vpop.f32.mrb[0].mxu0
        %v2531 = vpop.f32.mrb[0].mxu0
        %2532 = vdwg.mxu0
        %v2533 = vadd.f32 %v1599, %v2527
        %v2534 = vadd.f32 %v1600, %v2529
        %2535 = vst [vmem:[#allocation2] sm:$0xff] %v2533
        %2536 = vst [vmem:[#allocation2 + $0x8] sm:$0xff] %v2534
        %p2537 = scmp.eq.s32.totalorder %s39, 3
        // Predicated region
        $region97: #{tpu_custom_call.1} parent=55 // pred_check
          %p2538 = pneg %p2537
        $region98: #{tpu_custom_call.1} parent=55 // pred_check_branch
          %2540 = sbr.rel (%p2538) target = $region100
        $region99: #{tpu_custom_call.1} parent=55 // pred_region
          %v2541 = vld [vmem:[#allocation2] sm:$0xff]
          %v2542 = vld [vmem:[#allocation2 + $0x8] sm:$0xff]
          %v2543 = vld [vmem:[#allocation11] sm:$0x3]
          %v2545 = vlaneseq
          %v2546 = vshrl.u32 %v2545, 7
          %v2547 = vsub.s32 0, %v2546
          %v2548 = vrot.slane %v2543, %v2547
          %v2549 = vlaneseq
          %v2550 = vshrl.u32 %v2549, 7
          %v2551 = vsub.s32 1, %v2550
          %v2552 = vrot.slane %v2543, %v2551
          %v2555 = vadd.f32 %v2541, %v2548
          %v2556 = vadd.f32 %v2542, %v2552
          %vm2557 = vcmp.gt.f32.partialorder %v2555, 0.0
          %vm2558 = vcmp.gt.f32.partialorder %v2556, 0.0
          %v2559 = vmul.f32 %v2555, 0.2
          %v2560 = vmul.f32 %v2556, 0.2
          %v2561 = vsel %vm2557, %v2555, %v2559
          %v2562 = vsel %vm2558, %v2556, %v2560
          %2563 = vst [vmem:[#allocation21] sm:$0xff] %v2561
          %2564 = vst [vmem:[#allocation21 + $0x8] sm:$0xff] %v2562
          %v2565 = vpack.c.bf16 %v2561, %v2561
          %v2566 = vpack.c.bf16 %v2562, %v2562
          %v2567 = vld [vmem:[#allocation12] sm:$0xff]
          %v2568 = vld [vmem:[#allocation12 + $0x8] sm:$0xff]
          %v2569 = vld [vmem:[#allocation12 + $0x10] sm:$0xff]
          %v2570 = vld [vmem:[#allocation12 + $0x18] sm:$0xff]
          %v2571 = vld [vmem:[#allocation12 + $0x20] sm:$0xf]
          %v2572 = vld [vmem:[#allocation12 + $0x24] sm:$0xff]
          %v2573 = vld [vmem:[#allocation12 + $0x2c] sm:$0xff]
          %v2574 = vld [vmem:[#allocation12 + $0x34] sm:$0xff]
          %v2575 = vld [vmem:[#allocation12 + $0x3c] sm:$0xff]
          %v2576 = vld [vmem:[#allocation12 + $0x44] sm:$0xf]
          %v2577 = vld [vmem:[#allocation12 + $0x48] sm:$0xff]
          %v2578 = vld [vmem:[#allocation12 + $0x50] sm:$0xff]
          %v2579 = vld [vmem:[#allocation12 + $0x58] sm:$0xff]
          %v2580 = vld [vmem:[#allocation12 + $0x60] sm:$0xff]
          %v2581 = vld [vmem:[#allocation12 + $0x68] sm:$0xf]
          %v2582 = vld [vmem:[#allocation12 + $0x6c] sm:$0xff]
          %v2583 = vld [vmem:[#allocation12 + $0x74] sm:$0xff]
          %v2584 = vld [vmem:[#allocation12 + $0x7c] sm:$0xff]
          %v2585 = vld [vmem:[#allocation12 + $0x84] sm:$0xff]
          %v2586 = vld [vmem:[#allocation12 + $0x8c] sm:$0xf]
          %v2587 = vld [vmem:[#allocation12 + $0x90] sm:$0xff]
          %v2588 = vld [vmem:[#allocation12 + $0x98] sm:$0xff]
          %v2589 = vld [vmem:[#allocation12 + $0xa0] sm:$0xff]
          %v2590 = vld [vmem:[#allocation12 + $0xa8] sm:$0xff]
          %v2591 = vld [vmem:[#allocation12 + $0xb0] sm:$0xf]
          %v2592 = vld [vmem:[#allocation12 + $0xb4] sm:$0xff]
          %v2593 = vld [vmem:[#allocation12 + $0xbc] sm:$0xff]
          %v2594 = vld [vmem:[#allocation12 + $0xc4] sm:$0xff]
          %v2595 = vld [vmem:[#allocation12 + $0xcc] sm:$0xff]
          %v2596 = vld [vmem:[#allocation12 + $0xd4] sm:$0xf]
          %v2597 = vld [vmem:[#allocation12 + $0xd8] sm:$0xff]
          %v2598 = vld [vmem:[#allocation12 + $0xe0] sm:$0xff]
          %v2599 = vld [vmem:[#allocation12 + $0xe8] sm:$0xff]
          %v2600 = vld [vmem:[#allocation12 + $0xf0] sm:$0xff]
          %v2601 = vld [vmem:[#allocation12 + $0xf8] sm:$0xf]
          %v2602 = vld [vmem:[#allocation12 + $0xfc] sm:$0xff]
          %v2603 = vld [vmem:[#allocation12 + $0x104] sm:$0xff]
          %v2604 = vld [vmem:[#allocation12 + $0x10c] sm:$0xff]
          %v2605 = vld [vmem:[#allocation12 + $0x114] sm:$0xff]
          %v2606 = vld [vmem:[#allocation12 + $0x11c] sm:$0xf]
          %v2607 = vld [vmem:[#allocation12 + $0x120] sm:$0xff]
          %v2608 = vld [vmem:[#allocation12 + $0x128] sm:$0xff]
          %v2609 = vld [vmem:[#allocation12 + $0x130] sm:$0xff]
          %v2610 = vld [vmem:[#allocation12 + $0x138] sm:$0xff]
          %v2611 = vld [vmem:[#allocation12 + $0x140] sm:$0xf]
          %v2612 = vld [vmem:[#allocation12 + $0x144] sm:$0xff]
          %v2613 = vld [vmem:[#allocation12 + $0x14c] sm:$0xff]
          %v2614 = vld [vmem:[#allocation12 + $0x154] sm:$0xff]
          %v2615 = vld [vmem:[#allocation12 + $0x15c] sm:$0xff]
          %v2616 = vld [vmem:[#allocation12 + $0x164] sm:$0xf]
          %v2617 = vld [vmem:[#allocation12 + $0x168] sm:$0xff]
          %v2618 = vld [vmem:[#allocation12 + $0x170] sm:$0xff]
          %v2619 = vld [vmem:[#allocation12 + $0x178] sm:$0xff]
          %v2620 = vld [vmem:[#allocation12 + $0x180] sm:$0xff]
          %v2621 = vld [vmem:[#allocation12 + $0x188] sm:$0xf]
          %v2622 = vld [vmem:[#allocation12 + $0x18c] sm:$0xff]
          %v2623 = vld [vmem:[#allocation12 + $0x194] sm:$0xff]
          %v2624 = vld [vmem:[#allocation12 + $0x19c] sm:$0xff]
          %v2625 = vld [vmem:[#allocation12 + $0x1a4] sm:$0xff]
          %v2626 = vld [vmem:[#allocation12 + $0x1ac] sm:$0xf]
          %v2627 = vld [vmem:[#allocation12 + $0x1b0] sm:$0xff]
          %v2628 = vld [vmem:[#allocation12 + $0x1b8] sm:$0xff]
          %v2629 = vld [vmem:[#allocation12 + $0x1c0] sm:$0xff]
          %v2630 = vld [vmem:[#allocation12 + $0x1c8] sm:$0xff]
          %v2631 = vld [vmem:[#allocation12 + $0x1d0] sm:$0xf]
          %v2632 = vld [vmem:[#allocation12 + $0x1d4] sm:$0xff]
          %v2633 = vld [vmem:[#allocation12 + $0x1dc] sm:$0xff]
          %v2634 = vld [vmem:[#allocation12 + $0x1e4] sm:$0xff]
          %v2635 = vld [vmem:[#allocation12 + $0x1ec] sm:$0xff]
          %v2636 = vld [vmem:[#allocation12 + $0x1f4] sm:$0xf]
          %v2637 = vld [vmem:[#allocation12 + $0x1f8] sm:$0xff]
          %v2638 = vld [vmem:[#allocation12 + $0x200] sm:$0xff]
          %v2639 = vld [vmem:[#allocation12 + $0x208] sm:$0xff]
          %v2640 = vld [vmem:[#allocation12 + $0x210] sm:$0xff]
          %v2641 = vld [vmem:[#allocation12 + $0x218] sm:$0xf]
          %v2642 = vld [vmem:[#allocation12 + $0x21c] sm:$0xff]
          %v2643 = vld [vmem:[#allocation12 + $0x224] sm:$0xff]
          %v2644 = vld [vmem:[#allocation12 + $0x22c] sm:$0xff]
          %v2645 = vld [vmem:[#allocation12 + $0x234] sm:$0xff]
          %v2646 = vld [vmem:[#allocation12 + $0x23c] sm:$0xf]
          %v2647 = vld [vmem:[#allocation12 + $0x240] sm:$0xff]
          %v2648 = vld [vmem:[#allocation12 + $0x248] sm:$0xff]
          %v2649 = vld [vmem:[#allocation12 + $0x250] sm:$0xff]
          %v2650 = vld [vmem:[#allocation12 + $0x258] sm:$0xff]
          %v2651 = vld [vmem:[#allocation12 + $0x260] sm:$0xf]
          %v2652 = vld [vmem:[#allocation12 + $0x264] sm:$0xff]
          %v2653 = vld [vmem:[#allocation12 + $0x26c] sm:$0xff]
          %v2654 = vld [vmem:[#allocation12 + $0x274] sm:$0xff]
          %v2655 = vld [vmem:[#allocation12 + $0x27c] sm:$0xff]
          %v2656 = vld [vmem:[#allocation12 + $0x284] sm:$0xf]
          %v2657 = vld [vmem:[#allocation12 + $0x288] sm:$0xff]
          %v2658 = vld [vmem:[#allocation12 + $0x290] sm:$0xff]
          %v2659 = vld [vmem:[#allocation12 + $0x298] sm:$0xff]
          %v2660 = vld [vmem:[#allocation12 + $0x2a0] sm:$0xff]
          %v2661 = vld [vmem:[#allocation12 + $0x2a8] sm:$0xf]
          %v2662 = vld [vmem:[#allocation12 + $0x2ac] sm:$0xff]
          %v2663 = vld [vmem:[#allocation12 + $0x2b4] sm:$0xff]
          %v2664 = vld [vmem:[#allocation12 + $0x2bc] sm:$0xff]
          %v2665 = vld [vmem:[#allocation12 + $0x2c4] sm:$0xff]
          %v2666 = vld [vmem:[#allocation12 + $0x2cc] sm:$0xf]
          %v2667 = vld [vmem:[#allocation12 + $0x2d0] sm:$0xff]
          %v2668 = vld [vmem:[#allocation12 + $0x2d8] sm:$0xff]
          %v2669 = vld [vmem:[#allocation12 + $0x2e0] sm:$0xff]
          %v2670 = vld [vmem:[#allocation12 + $0x2e8] sm:$0xff]
          %v2671 = vld [vmem:[#allocation12 + $0x2f0] sm:$0xf]
          %v2672 = vld [vmem:[#allocation12 + $0x2f4] sm:$0xff]
          %v2673 = vld [vmem:[#allocation12 + $0x2fc] sm:$0xff]
          %v2674 = vld [vmem:[#allocation12 + $0x304] sm:$0xff]
          %v2675 = vld [vmem:[#allocation12 + $0x30c] sm:$0xff]
          %v2676 = vld [vmem:[#allocation12 + $0x314] sm:$0xf]
          %v2677 = vld [vmem:[#allocation12 + $0x318] sm:$0xff]
          %v2678 = vld [vmem:[#allocation12 + $0x320] sm:$0xff]
          %v2679 = vld [vmem:[#allocation12 + $0x328] sm:$0xff]
          %v2680 = vld [vmem:[#allocation12 + $0x330] sm:$0xff]
          %v2681 = vld [vmem:[#allocation12 + $0x338] sm:$0xf]
          %v2682 = vld [vmem:[#allocation12 + $0x33c] sm:$0xff]
          %v2683 = vld [vmem:[#allocation12 + $0x344] sm:$0xff]
          %v2684 = vld [vmem:[#allocation12 + $0x34c] sm:$0xff]
          %v2685 = vld [vmem:[#allocation12 + $0x354] sm:$0xff]
          %v2686 = vld [vmem:[#allocation12 + $0x35c] sm:$0xf]
          %v2687 = vld [vmem:[#allocation12 + $0x360] sm:$0xff]
          %v2688 = vld [vmem:[#allocation12 + $0x368] sm:$0xff]
          %v2689 = vld [vmem:[#allocation12 + $0x370] sm:$0xff]
          %v2690 = vld [vmem:[#allocation12 + $0x378] sm:$0xff]
          %v2691 = vld [vmem:[#allocation12 + $0x380] sm:$0xf]
          %v2692 = vld [vmem:[#allocation12 + $0x384] sm:$0xff]
          %v2693 = vld [vmem:[#allocation12 + $0x38c] sm:$0xff]
          %v2694 = vld [vmem:[#allocation12 + $0x394] sm:$0xff]
          %v2695 = vld [vmem:[#allocation12 + $0x39c] sm:$0xff]
          %v2696 = vld [vmem:[#allocation12 + $0x3a4] sm:$0xf]
          %v2697 = vld [vmem:[#allocation12 + $0x3a8] sm:$0xff]
          %v2698 = vld [vmem:[#allocation12 + $0x3b0] sm:$0xff]
          %v2699 = vld [vmem:[#allocation12 + $0x3b8] sm:$0xff]
          %v2700 = vld [vmem:[#allocation12 + $0x3c0] sm:$0xff]
          %v2701 = vld [vmem:[#allocation12 + $0x3c8] sm:$0xf]
          %v2702 = vld [vmem:[#allocation12 + $0x3cc] sm:$0xff]
          %v2703 = vld [vmem:[#allocation12 + $0x3d4] sm:$0xff]
          %v2704 = vld [vmem:[#allocation12 + $0x3dc] sm:$0xff]
          %v2705 = vld [vmem:[#allocation12 + $0x3e4] sm:$0xff]
          %v2706 = vld [vmem:[#allocation12 + $0x3ec] sm:$0xf]
          %v2707 = vld [vmem:[#allocation12 + $0x3f0] sm:$0xff]
          %v2708 = vld [vmem:[#allocation12 + $0x3f8] sm:$0xff]
          %v2709 = vld [vmem:[#allocation12 + $0x400] sm:$0xff]
          %v2710 = vld [vmem:[#allocation12 + $0x408] sm:$0xff]
          %v2711 = vld [vmem:[#allocation12 + $0x410] sm:$0xf]
          %v2712 = vld [vmem:[#allocation12 + $0x414] sm:$0xff]
          %v2713 = vld [vmem:[#allocation12 + $0x41c] sm:$0xff]
          %v2714 = vld [vmem:[#allocation12 + $0x424] sm:$0xff]
          %v2715 = vld [vmem:[#allocation12 + $0x42c] sm:$0xff]
          %v2716 = vld [vmem:[#allocation12 + $0x434] sm:$0xf]
          %v2717 = vld [vmem:[#allocation12 + $0x438] sm:$0xff]
          %v2718 = vld [vmem:[#allocation12 + $0x440] sm:$0xff]
          %v2719 = vld [vmem:[#allocation12 + $0x448] sm:$0xff]
          %v2720 = vld [vmem:[#allocation12 + $0x450] sm:$0xff]
          %v2721 = vld [vmem:[#allocation12 + $0x458] sm:$0xf]
          %v2722 = vld [vmem:[#allocation12 + $0x45c] sm:$0xff]
          %v2723 = vld [vmem:[#allocation12 + $0x464] sm:$0xff]
          %v2724 = vld [vmem:[#allocation12 + $0x46c] sm:$0xff]
          %v2725 = vld [vmem:[#allocation12 + $0x474] sm:$0xff]
          %v2726 = vld [vmem:[#allocation12 + $0x47c] sm:$0xf]
          %v2727 = vld [vmem:[#allocation14] sm:$0xff]
          %v2728 = vld [vmem:[#allocation14 + $0x8] sm:$0x1]
          %v2731 = vlaneseq
          %v2732 = vshrl.u32 %v2731, 7
          %v2733 = vsub.s32 0, %v2732
          %v2734 = vrot.slane %v2727, %v2733
          %v2735 = vlaneseq
          %v2736 = vshrl.u32 %v2735, 7
          %v2737 = vsub.s32 1, %v2736
          %v2738 = vrot.slane %v2727, %v2737
          %v2739 = vlaneseq
          %v2740 = vshrl.u32 %v2739, 7
          %v2741 = vsub.s32 2, %v2740
          %v2742 = vrot.slane %v2727, %v2741
          %v2743 = vlaneseq
          %v2744 = vshrl.u32 %v2743, 7
          %v2745 = vsub.s32 3, %v2744
          %v2746 = vrot.slane %v2727, %v2745
          %v2747 = vlaneseq
          %v2748 = vshrl.u32 %v2747, 7
          %v2749 = vsub.s32 4, %v2748
          %v2750 = vrot.slane %v2727, %v2749
          %v2751 = vlaneseq
          %v2752 = vshrl.u32 %v2751, 7
          %v2753 = vsub.s32 5, %v2752
          %v2754 = vrot.slane %v2727, %v2753
          %v2755 = vlaneseq
          %v2756 = vshrl.u32 %v2755, 7
          %v2757 = vsub.s32 6, %v2756
          %v2758 = vrot.slane %v2727, %v2757
          %v2759 = vlaneseq
          %v2760 = vshrl.u32 %v2759, 7
          %v2761 = vsub.s32 7, %v2760
          %v2762 = vrot.slane %v2727, %v2761
          %v2763 = vlaneseq
          %v2764 = vshrl.u32 %v2763, 7
          %v2765 = vsub.s32 0, %v2764
          %v2766 = vrot.slane %v2728, %v2765
          %v2936 = vunpack.c.l.b16 %v2567
          %v2937 = vunpack.c.h.b16 %v2567
          %v2938 = vunpack.c.l.b16 %v2568
          %v2939 = vunpack.c.h.b16 %v2568
          %v2940 = vunpack.c.l.b16 %v2569
          %v2941 = vunpack.c.h.b16 %v2569
          %v2942 = vunpack.c.l.b16 %v2570
          %v2943 = vunpack.c.h.b16 %v2570
          %v2944 = vunpack.c.l.b16 %v2571
          %v2945 = vunpack.c.l.b16 %v2572
          %v2946 = vunpack.c.h.b16 %v2572
          %v2947 = vunpack.c.l.b16 %v2573
          %v2948 = vunpack.c.h.b16 %v2573
          %v2949 = vunpack.c.l.b16 %v2574
          %v2950 = vunpack.c.h.b16 %v2574
          %v2951 = vunpack.c.l.b16 %v2575
          %v2952 = vunpack.c.h.b16 %v2575
          %v2953 = vunpack.c.l.b16 %v2576
          %v2954 = vunpack.c.l.b16 %v2577
          %v2955 = vunpack.c.h.b16 %v2577
          %v2956 = vunpack.c.l.b16 %v2578
          %v2957 = vunpack.c.h.b16 %v2578
          %v2958 = vunpack.c.l.b16 %v2579
          %v2959 = vunpack.c.h.b16 %v2579
          %v2960 = vunpack.c.l.b16 %v2580
          %v2961 = vunpack.c.h.b16 %v2580
          %v2962 = vunpack.c.l.b16 %v2581
          %v2963 = vunpack.c.l.b16 %v2582
          %v2964 = vunpack.c.h.b16 %v2582
          %v2965 = vunpack.c.l.b16 %v2583
          %v2966 = vunpack.c.h.b16 %v2583
          %v2967 = vunpack.c.l.b16 %v2584
          %v2968 = vunpack.c.h.b16 %v2584
          %v2969 = vunpack.c.l.b16 %v2585
          %v2970 = vunpack.c.h.b16 %v2585
          %v2971 = vunpack.c.l.b16 %v2586
          %v2972 = vunpack.c.l.b16 %v2587
          %v2973 = vunpack.c.h.b16 %v2587
          %v2974 = vunpack.c.l.b16 %v2588
          %v2975 = vunpack.c.h.b16 %v2588
          %v2976 = vunpack.c.l.b16 %v2589
          %v2977 = vunpack.c.h.b16 %v2589
          %v2978 = vunpack.c.l.b16 %v2590
          %v2979 = vunpack.c.h.b16 %v2590
          %v2980 = vunpack.c.l.b16 %v2591
          %v2981 = vunpack.c.l.b16 %v2592
          %v2982 = vunpack.c.h.b16 %v2592
          %v2983 = vunpack.c.l.b16 %v2593
          %v2984 = vunpack.c.h.b16 %v2593
          %v2985 = vunpack.c.l.b16 %v2594
          %v2986 = vunpack.c.h.b16 %v2594
          %v2987 = vunpack.c.l.b16 %v2595
          %v2988 = vunpack.c.h.b16 %v2595
          %v2989 = vunpack.c.l.b16 %v2596
          %v2990 = vunpack.c.l.b16 %v2597
          %v2991 = vunpack.c.h.b16 %v2597
          %v2992 = vunpack.c.l.b16 %v2598
          %v2993 = vunpack.c.h.b16 %v2598
          %v2994 = vunpack.c.l.b16 %v2599
          %v2995 = vunpack.c.h.b16 %v2599
          %v2996 = vunpack.c.l.b16 %v2600
          %v2997 = vunpack.c.h.b16 %v2600
          %v2998 = vunpack.c.l.b16 %v2601
          %v2999 = vunpack.c.l.b16 %v2602
          %v3000 = vunpack.c.h.b16 %v2602
          %v3001 = vunpack.c.l.b16 %v2603
          %v3002 = vunpack.c.h.b16 %v2603
          %v3003 = vunpack.c.l.b16 %v2604
          %v3004 = vunpack.c.h.b16 %v2604
          %v3005 = vunpack.c.l.b16 %v2605
          %v3006 = vunpack.c.h.b16 %v2605
          %v3007 = vunpack.c.l.b16 %v2606
          %v3008 = vunpack.c.l.b16 %v2607
          %v3009 = vunpack.c.h.b16 %v2607
          %v3010 = vunpack.c.l.b16 %v2608
          %v3011 = vunpack.c.h.b16 %v2608
          %v3012 = vunpack.c.l.b16 %v2609
          %v3013 = vunpack.c.h.b16 %v2609
          %v3014 = vunpack.c.l.b16 %v2610
          %v3015 = vunpack.c.h.b16 %v2610
          %v3016 = vunpack.c.l.b16 %v2611
          %v3017 = vunpack.c.l.b16 %v2612
          %v3018 = vunpack.c.h.b16 %v2612
          %v3019 = vunpack.c.l.b16 %v2613
          %v3020 = vunpack.c.h.b16 %v2613
          %v3021 = vunpack.c.l.b16 %v2614
          %v3022 = vunpack.c.h.b16 %v2614
          %v3023 = vunpack.c.l.b16 %v2615
          %v3024 = vunpack.c.h.b16 %v2615
          %v3025 = vunpack.c.l.b16 %v2616
          %v3026 = vunpack.c.l.b16 %v2617
          %v3027 = vunpack.c.h.b16 %v2617
          %v3028 = vunpack.c.l.b16 %v2618
          %v3029 = vunpack.c.h.b16 %v2618
          %v3030 = vunpack.c.l.b16 %v2619
          %v3031 = vunpack.c.h.b16 %v2619
          %v3032 = vunpack.c.l.b16 %v2620
          %v3033 = vunpack.c.h.b16 %v2620
          %v3034 = vunpack.c.l.b16 %v2621
          %v3035 = vunpack.c.l.b16 %v2622
          %v3036 = vunpack.c.h.b16 %v2622
          %v3037 = vunpack.c.l.b16 %v2623
          %v3038 = vunpack.c.h.b16 %v2623
          %v3039 = vunpack.c.l.b16 %v2624
          %v3040 = vunpack.c.h.b16 %v2624
          %v3041 = vunpack.c.l.b16 %v2625
          %v3042 = vunpack.c.h.b16 %v2625
          %v3043 = vunpack.c.l.b16 %v2626
          %v3044 = vunpack.c.l.b16 %v2627
          %v3045 = vunpack.c.h.b16 %v2627
          %v3046 = vunpack.c.l.b16 %v2628
          %v3047 = vunpack.c.h.b16 %v2628
          %v3048 = vunpack.c.l.b16 %v2629
          %v3049 = vunpack.c.h.b16 %v2629
          %v3050 = vunpack.c.l.b16 %v2630
          %v3051 = vunpack.c.h.b16 %v2630
          %v3052 = vunpack.c.l.b16 %v2631
          %v3053 = vunpack.c.l.b16 %v2632
          %v3054 = vunpack.c.h.b16 %v2632
          %v3055 = vunpack.c.l.b16 %v2633
          %v3056 = vunpack.c.h.b16 %v2633
          %v3057 = vunpack.c.l.b16 %v2634
          %v3058 = vunpack.c.h.b16 %v2634
          %v3059 = vunpack.c.l.b16 %v2635
          %v3060 = vunpack.c.h.b16 %v2635
          %v3061 = vunpack.c.l.b16 %v2636
          %v3062 = vunpack.c.l.b16 %v2637
          %v3063 = vunpack.c.h.b16 %v2637
          %v3064 = vunpack.c.l.b16 %v2638
          %v3065 = vunpack.c.h.b16 %v2638
          %v3066 = vunpack.c.l.b16 %v2639
          %v3067 = vunpack.c.h.b16 %v2639
          %v3068 = vunpack.c.l.b16 %v2640
          %v3069 = vunpack.c.h.b16 %v2640
          %v3070 = vunpack.c.l.b16 %v2641
          %v3071 = vunpack.c.l.b16 %v2642
          %v3072 = vunpack.c.h.b16 %v2642
          %v3073 = vunpack.c.l.b16 %v2643
          %v3074 = vunpack.c.h.b16 %v2643
          %v3075 = vunpack.c.l.b16 %v2644
          %v3076 = vunpack.c.h.b16 %v2644
          %v3077 = vunpack.c.l.b16 %v2645
          %v3078 = vunpack.c.h.b16 %v2645
          %v3079 = vunpack.c.l.b16 %v2646
          %v3080 = vunpack.c.l.b16 %v2647
          %v3081 = vunpack.c.h.b16 %v2647
          %v3082 = vunpack.c.l.b16 %v2648
          %v3083 = vunpack.c.h.b16 %v2648
          %v3084 = vunpack.c.l.b16 %v2649
          %v3085 = vunpack.c.h.b16 %v2649
          %v3086 = vunpack.c.l.b16 %v2650
          %v3087 = vunpack.c.h.b16 %v2650
          %v3088 = vunpack.c.l.b16 %v2651
          %v3089 = vunpack.c.l.b16 %v2652
          %v3090 = vunpack.c.h.b16 %v2652
          %v3091 = vunpack.c.l.b16 %v2653
          %v3092 = vunpack.c.h.b16 %v2653
          %v3093 = vunpack.c.l.b16 %v2654
          %v3094 = vunpack.c.h.b16 %v2654
          %v3095 = vunpack.c.l.b16 %v2655
          %v3096 = vunpack.c.h.b16 %v2655
          %v3097 = vunpack.c.l.b16 %v2656
          %v3098 = vunpack.c.l.b16 %v2657
          %v3099 = vunpack.c.h.b16 %v2657
          %v3100 = vunpack.c.l.b16 %v2658
          %v3101 = vunpack.c.h.b16 %v2658
          %v3102 = vunpack.c.l.b16 %v2659
          %v3103 = vunpack.c.h.b16 %v2659
          %v3104 = vunpack.c.l.b16 %v2660
          %v3105 = vunpack.c.h.b16 %v2660
          %v3106 = vunpack.c.l.b16 %v2661
          %v3107 = vunpack.c.l.b16 %v2662
          %v3108 = vunpack.c.h.b16 %v2662
          %v3109 = vunpack.c.l.b16 %v2663
          %v3110 = vunpack.c.h.b16 %v2663
          %v3111 = vunpack.c.l.b16 %v2664
          %v3112 = vunpack.c.h.b16 %v2664
          %v3113 = vunpack.c.l.b16 %v2665
          %v3114 = vunpack.c.h.b16 %v2665
          %v3115 = vunpack.c.l.b16 %v2666
          %v3116 = vunpack.c.l.b16 %v2667
          %v3117 = vunpack.c.h.b16 %v2667
          %v3118 = vunpack.c.l.b16 %v2668
          %v3119 = vunpack.c.h.b16 %v2668
          %v3120 = vunpack.c.l.b16 %v2669
          %v3121 = vunpack.c.h.b16 %v2669
          %v3122 = vunpack.c.l.b16 %v2670
          %v3123 = vunpack.c.h.b16 %v2670
          %v3124 = vunpack.c.l.b16 %v2671
          %v3125 = vunpack.c.l.b16 %v2672
          %v3126 = vunpack.c.h.b16 %v2672
          %v3127 = vunpack.c.l.b16 %v2673
          %v3128 = vunpack.c.h.b16 %v2673
          %v3129 = vunpack.c.l.b16 %v2674
          %v3130 = vunpack.c.h.b16 %v2674
          %v3131 = vunpack.c.l.b16 %v2675
          %v3132 = vunpack.c.h.b16 %v2675
          %v3133 = vunpack.c.l.b16 %v2676
          %v3134 = vunpack.c.l.b16 %v2677
          %v3135 = vunpack.c.h.b16 %v2677
          %v3136 = vunpack.c.l.b16 %v2678
          %v3137 = vunpack.c.h.b16 %v2678
          %v3138 = vunpack.c.l.b16 %v2679
          %v3139 = vunpack.c.h.b16 %v2679
          %v3140 = vunpack.c.l.b16 %v2680
          %v3141 = vunpack.c.h.b16 %v2680
          %v3142 = vunpack.c.l.b16 %v2681
          %v3143 = vunpack.c.l.b16 %v2682
          %v3144 = vunpack.c.h.b16 %v2682
          %v3145 = vunpack.c.l.b16 %v2683
          %v3146 = vunpack.c.h.b16 %v2683
          %v3147 = vunpack.c.l.b16 %v2684
          %v3148 = vunpack.c.h.b16 %v2684
          %v3149 = vunpack.c.l.b16 %v2685
          %v3150 = vunpack.c.h.b16 %v2685
          %v3151 = vunpack.c.l.b16 %v2686
          %v3152 = vunpack.c.l.b16 %v2687
          %v3153 = vunpack.c.h.b16 %v2687
          %v3154 = vunpack.c.l.b16 %v2688
          %v3155 = vunpack.c.h.b16 %v2688
          %v3156 = vunpack.c.l.b16 %v2689
          %v3157 = vunpack.c.h.b16 %v2689
          %v3158 = vunpack.c.l.b16 %v2690
          %v3159 = vunpack.c.h.b16 %v2690
          %v3160 = vunpack.c.l.b16 %v2691
          %v3161 = vunpack.c.l.b16 %v2692
          %v3162 = vunpack.c.h.b16 %v2692
          %v3163 = vunpack.c.l.b16 %v2693
          %v3164 = vunpack.c.h.b16 %v2693
          %v3165 = vunpack.c.l.b16 %v2694
          %v3166 = vunpack.c.h.b16 %v2694
          %v3167 = vunpack.c.l.b16 %v2695
          %v3168 = vunpack.c.h.b16 %v2695
          %v3169 = vunpack.c.l.b16 %v2696
          %v3170 = vunpack.c.l.b16 %v2697
          %v3171 = vunpack.c.h.b16 %v2697
          %v3172 = vunpack.c.l.b16 %v2698
          %v3173 = vunpack.c.h.b16 %v2698
          %v3174 = vunpack.c.l.b16 %v2699
          %v3175 = vunpack.c.h.b16 %v2699
          %v3176 = vunpack.c.l.b16 %v2700
          %v3177 = vunpack.c.h.b16 %v2700
          %v3178 = vunpack.c.l.b16 %v2701
          %v3179 = vunpack.c.l.b16 %v2702
          %v3180 = vunpack.c.h.b16 %v2702
          %v3181 = vunpack.c.l.b16 %v2703
          %v3182 = vunpack.c.h.b16 %v2703
          %v3183 = vunpack.c.l.b16 %v2704
          %v3184 = vunpack.c.h.b16 %v2704
          %v3185 = vunpack.c.l.b16 %v2705
          %v3186 = vunpack.c.h.b16 %v2705
          %v3187 = vunpack.c.l.b16 %v2706
          %v3188 = vunpack.c.l.b16 %v2707
          %v3189 = vunpack.c.h.b16 %v2707
          %v3190 = vunpack.c.l.b16 %v2708
          %v3191 = vunpack.c.h.b16 %v2708
          %v3192 = vunpack.c.l.b16 %v2709
          %v3193 = vunpack.c.h.b16 %v2709
          %v3194 = vunpack.c.l.b16 %v2710
          %v3195 = vunpack.c.h.b16 %v2710
          %v3196 = vunpack.c.l.b16 %v2711
          %v3197 = vunpack.c.l.b16 %v2712
          %v3198 = vunpack.c.h.b16 %v2712
          %v3199 = vunpack.c.l.b16 %v2713
          %v3200 = vunpack.c.h.b16 %v2713
          %v3201 = vunpack.c.l.b16 %v2714
          %v3202 = vunpack.c.h.b16 %v2714
          %v3203 = vunpack.c.l.b16 %v2715
          %v3204 = vunpack.c.h.b16 %v2715
          %v3205 = vunpack.c.l.b16 %v2716
          %v3206 = vunpack.c.l.b16 %v2717
          %v3207 = vunpack.c.h.b16 %v2717
          %v3208 = vunpack.c.l.b16 %v2718
          %v3209 = vunpack.c.h.b16 %v2718
          %v3210 = vunpack.c.l.b16 %v2719
          %v3211 = vunpack.c.h.b16 %v2719
          %v3212 = vunpack.c.l.b16 %v2720
          %v3213 = vunpack.c.h.b16 %v2720
          %v3214 = vunpack.c.l.b16 %v2721
          %v3215 = vunpack.c.l.b16 %v2722
          %v3216 = vunpack.c.h.b16 %v2722
          %v3217 = vunpack.c.l.b16 %v2723
          %v3218 = vunpack.c.h.b16 %v2723
          %v3219 = vunpack.c.l.b16 %v2724
          %v3220 = vunpack.c.h.b16 %v2724
          %v3221 = vunpack.c.l.b16 %v2725
          %v3222 = vunpack.c.h.b16 %v2725
          %v3223 = vunpack.c.l.b16 %v2726
          %v3224 = vpack.c.b16 %v2945, %v2936
          %v3225 = vpack.c.b16 %v2946, %v2937
          %v3226 = vpack.c.b16 %v2947, %v2938
          %v3227 = vpack.c.b16 %v2948, %v2939
          %v3228 = vpack.c.b16 %v2949, %v2940
          %v3229 = vpack.c.b16 %v2950, %v2941
          %v3230 = vpack.c.b16 %v2951, %v2942
          %v3231 = vpack.c.b16 %v2952, %v2943
          %v3232 = vpack.c.b16 %v2953, %v2944
          %v3233 = vpack.c.b16 %v2963, %v2954
          %v3234 = vpack.c.b16 %v2964, %v2955
          %v3235 = vpack.c.b16 %v2965, %v2956
          %v3236 = vpack.c.b16 %v2966, %v2957
          %v3237 = vpack.c.b16 %v2967, %v2958
          %v3238 = vpack.c.b16 %v2968, %v2959
          %v3239 = vpack.c.b16 %v2969, %v2960
          %v3240 = vpack.c.b16 %v2970, %v2961
          %v3241 = vpack.c.b16 %v2971, %v2962
          %v3242 = vpack.c.b16 %v2981, %v2972
          %v3243 = vpack.c.b16 %v2982, %v2973
          %v3244 = vpack.c.b16 %v2983, %v2974
          %v3245 = vpack.c.b16 %v2984, %v2975
          %v3246 = vpack.c.b16 %v2985, %v2976
          %v3247 = vpack.c.b16 %v2986, %v2977
          %v3248 = vpack.c.b16 %v2987, %v2978
          %v3249 = vpack.c.b16 %v2988, %v2979
          %v3250 = vpack.c.b16 %v2989, %v2980
          %v3251 = vpack.c.b16 %v2999, %v2990
          %v3252 = vpack.c.b16 %v3000, %v2991
          %v3253 = vpack.c.b16 %v3001, %v2992
          %v3254 = vpack.c.b16 %v3002, %v2993
          %v3255 = vpack.c.b16 %v3003, %v2994
          %v3256 = vpack.c.b16 %v3004, %v2995
          %v3257 = vpack.c.b16 %v3005, %v2996
          %v3258 = vpack.c.b16 %v3006, %v2997
          %v3259 = vpack.c.b16 %v3007, %v2998
          %v3260 = vpack.c.b16 %v3017, %v3008
          %v3261 = vpack.c.b16 %v3018, %v3009
          %v3262 = vpack.c.b16 %v3019, %v3010
          %v3263 = vpack.c.b16 %v3020, %v3011
          %v3264 = vpack.c.b16 %v3021, %v3012
          %v3265 = vpack.c.b16 %v3022, %v3013
          %v3266 = vpack.c.b16 %v3023, %v3014
          %v3267 = vpack.c.b16 %v3024, %v3015
          %v3268 = vpack.c.b16 %v3025, %v3016
          %v3269 = vpack.c.b16 %v3035, %v3026
          %v3270 = vpack.c.b16 %v3036, %v3027
          %v3271 = vpack.c.b16 %v3037, %v3028
          %v3272 = vpack.c.b16 %v3038, %v3029
          %v3273 = vpack.c.b16 %v3039, %v3030
          %v3274 = vpack.c.b16 %v3040, %v3031
          %v3275 = vpack.c.b16 %v3041, %v3032
          %v3276 = vpack.c.b16 %v3042, %v3033
          %v3277 = vpack.c.b16 %v3043, %v3034
          %v3278 = vpack.c.b16 %v3053, %v3044
          %v3279 = vpack.c.b16 %v3054, %v3045
          %v3280 = vpack.c.b16 %v3055, %v3046
          %v3281 = vpack.c.b16 %v3056, %v3047
          %v3282 = vpack.c.b16 %v3057, %v3048
          %v3283 = vpack.c.b16 %v3058, %v3049
          %v3284 = vpack.c.b16 %v3059, %v3050
          %v3285 = vpack.c.b16 %v3060, %v3051
          %v3286 = vpack.c.b16 %v3061, %v3052
          %v3287 = vpack.c.b16 %v3071, %v3062
          %v3288 = vpack.c.b16 %v3072, %v3063
          %v3289 = vpack.c.b16 %v3073, %v3064
          %v3290 = vpack.c.b16 %v3074, %v3065
          %v3291 = vpack.c.b16 %v3075, %v3066
          %v3292 = vpack.c.b16 %v3076, %v3067
          %v3293 = vpack.c.b16 %v3077, %v3068
          %v3294 = vpack.c.b16 %v3078, %v3069
          %v3295 = vpack.c.b16 %v3079, %v3070
          %v3296 = vpack.c.b16 %v3089, %v3080
          %v3297 = vpack.c.b16 %v3090, %v3081
          %v3298 = vpack.c.b16 %v3091, %v3082
          %v3299 = vpack.c.b16 %v3092, %v3083
          %v3300 = vpack.c.b16 %v3093, %v3084
          %v3301 = vpack.c.b16 %v3094, %v3085
          %v3302 = vpack.c.b16 %v3095, %v3086
          %v3303 = vpack.c.b16 %v3096, %v3087
          %v3304 = vpack.c.b16 %v3097, %v3088
          %v3305 = vpack.c.b16 %v3107, %v3098
          %v3306 = vpack.c.b16 %v3108, %v3099
          %v3307 = vpack.c.b16 %v3109, %v3100
          %v3308 = vpack.c.b16 %v3110, %v3101
          %v3309 = vpack.c.b16 %v3111, %v3102
          %v3310 = vpack.c.b16 %v3112, %v3103
          %v3311 = vpack.c.b16 %v3113, %v3104
          %v3312 = vpack.c.b16 %v3114, %v3105
          %v3313 = vpack.c.b16 %v3115, %v3106
          %v3314 = vpack.c.b16 %v3125, %v3116
          %v3315 = vpack.c.b16 %v3126, %v3117
          %v3316 = vpack.c.b16 %v3127, %v3118
          %v3317 = vpack.c.b16 %v3128, %v3119
          %v3318 = vpack.c.b16 %v3129, %v3120
          %v3319 = vpack.c.b16 %v3130, %v3121
          %v3320 = vpack.c.b16 %v3131, %v3122
          %v3321 = vpack.c.b16 %v3132, %v3123
          %v3322 = vpack.c.b16 %v3133, %v3124
          %v3323 = vpack.c.b16 %v3143, %v3134
          %v3324 = vpack.c.b16 %v3144, %v3135
          %v3325 = vpack.c.b16 %v3145, %v3136
          %v3326 = vpack.c.b16 %v3146, %v3137
          %v3327 = vpack.c.b16 %v3147, %v3138
          %v3328 = vpack.c.b16 %v3148, %v3139
          %v3329 = vpack.c.b16 %v3149, %v3140
          %v3330 = vpack.c.b16 %v3150, %v3141
          %v3331 = vpack.c.b16 %v3151, %v3142
          %v3332 = vpack.c.b16 %v3161, %v3152
          %v3333 = vpack.c.b16 %v3162, %v3153
          %v3334 = vpack.c.b16 %v3163, %v3154
          %v3335 = vpack.c.b16 %v3164, %v3155
          %v3336 = vpack.c.b16 %v3165, %v3156
          %v3337 = vpack.c.b16 %v3166, %v3157
          %v3338 = vpack.c.b16 %v3167, %v3158
          %v3339 = vpack.c.b16 %v3168, %v3159
          %v3340 = vpack.c.b16 %v3169, %v3160
          %v3341 = vpack.c.b16 %v3179, %v3170
          %v3342 = vpack.c.b16 %v3180, %v3171
          %v3343 = vpack.c.b16 %v3181, %v3172
          %v3344 = vpack.c.b16 %v3182, %v3173
          %v3345 = vpack.c.b16 %v3183, %v3174
          %v3346 = vpack.c.b16 %v3184, %v3175
          %v3347 = vpack.c.b16 %v3185, %v3176
          %v3348 = vpack.c.b16 %v3186, %v3177
          %v3349 = vpack.c.b16 %v3187, %v3178
          %v3350 = vpack.c.b16 %v3197, %v3188
          %v3351 = vpack.c.b16 %v3198, %v3189
          %v3352 = vpack.c.b16 %v3199, %v3190
          %v3353 = vpack.c.b16 %v3200, %v3191
          %v3354 = vpack.c.b16 %v3201, %v3192
          %v3355 = vpack.c.b16 %v3202, %v3193
          %v3356 = vpack.c.b16 %v3203, %v3194
          %v3357 = vpack.c.b16 %v3204, %v3195
          %v3358 = vpack.c.b16 %v3205, %v3196
          %v3359 = vpack.c.b16 %v3215, %v3206
          %v3360 = vpack.c.b16 %v3216, %v3207
          %v3361 = vpack.c.b16 %v3217, %v3208
          %v3362 = vpack.c.b16 %v3218, %v3209
          %v3363 = vpack.c.b16 %v3219, %v3210
          %v3364 = vpack.c.b16 %v3220, %v3211
          %v3365 = vpack.c.b16 %v3221, %v3212
          %v3366 = vpack.c.b16 %v3222, %v3213
          %v3367 = vpack.c.b16 %v3223, %v3214
          %3512 = vmatprep.subr.bf16.mxu0 %v3225
          %3513 = vmatpush1.bf16.msra.mxu0 %v3224
          %3514 = vmatprep.subr.bf16.mxu0 %v3234
          %3515 = vmatpush1.bf16.msra.mxu0 %v3233
          %3516 = vmatprep.subr.bf16.mxu0 %v3243
          %3517 = vmatpush1.bf16.msra.mxu0 %v3242
          %3518 = vmatprep.subr.bf16.mxu0 %v3252
          %3519 = vmatpush1.bf16.msra.mxu0 %v3251
          %3520 = vmatprep.subr.bf16.mxu0 %v3261
          %3521 = vmatpush1.bf16.msra.mxu0 %v3260
          %3522 = vmatprep.subr.bf16.mxu0 %v3270
          %3523 = vmatpush1.bf16.msra.mxu0 %v3269
          %3524 = vmatprep.subr.bf16.mxu0 %v3279
          %3525 = vmatpush1.bf16.msra.mxu0 %v3278
          %3526 = vmatprep.subr.bf16.mxu0 %v3288
          %3527 = vmatpush1.bf16.msra.mxu0 %v3287
          %3528 = vmatprep.subr.bf16.mxu0 %v3297
          %3529 = vmatpush1.bf16.msra.mxu0 %v3296
          %3530 = vmatprep.subr.bf16.mxu0 %v3306
          %3531 = vmatpush1.bf16.msra.mxu0 %v3305
          %3532 = vmatprep.subr.bf16.mxu0 %v3315
          %3533 = vmatpush1.bf16.msra.mxu0 %v3314
          %3534 = vmatprep.subr.bf16.mxu0 %v3324
          %3535 = vmatpush1.bf16.msra.mxu0 %v3323
          %3536 = vmatprep.subr.bf16.mxu0 %v3333
          %3537 = vmatpush1.bf16.msra.mxu0 %v3332
          %3538 = vmatprep.subr.bf16.mxu0 %v3342
          %3539 = vmatpush1.bf16.msra.mxu0 %v3341
          %3540 = vmatprep.subr.bf16.mxu0 %v3351
          %3541 = vmatpush1.bf16.msra.mxu0 %v3350
          %3542 = vmatprep.subr.bf16.mxu0 %v3360
          %3543 = vmatpush1.bf16.msra.mxu0 %v3359
          %3544 = vmatprep.mubr.bf16.mxu0 %v2566
          %3545 = vmatmul.mubr.bf16.gmra.mrb[0].mxu0 %v2565
          %v3546 = vpop.f32.mrb[0].mxu0
          %v3547 = vadd.f32 %v2734, %v3546
          %v3548 = vpop.f32.mrb[0].mxu0
          %v3549 = vadd.f32 %v2738, %v3548
          %v3550 = vpop.f32.mrb[0].mxu0
          %v3551 = vpop.f32.mrb[0].mxu0
          %3552 = vdwg.mxu0
          %3553 = vmatprep.subr.bf16.mxu0 %v3227
          %3554 = vmatpush1.bf16.msra.mxu0 %v3226
          %3555 = vmatprep.subr.bf16.mxu0 %v3236
          %3556 = vmatpush1.bf16.msra.mxu0 %v3235
          %3557 = vmatprep.subr.bf16.mxu0 %v3245
          %3558 = vmatpush1.bf16.msra.mxu0 %v3244
          %3559 = vmatprep.subr.bf16.mxu0 %v3254
          %3560 = vmatpush1.bf16.msra.mxu0 %v3253
          %3561 = vmatprep.subr.bf16.mxu0 %v3263
          %3562 = vmatpush1.bf16.msra.mxu0 %v3262
          %3563 = vmatprep.subr.bf16.mxu0 %v3272
          %3564 = vmatpush1.bf16.msra.mxu0 %v3271
          %3565 = vmatprep.subr.bf16.mxu0 %v3281
          %3566 = vmatpush1.bf16.msra.mxu0 %v3280
          %3567 = vmatprep.subr.bf16.mxu0 %v3290
          %3568 = vmatpush1.bf16.msra.mxu0 %v3289
          %3569 = vmatprep.subr.bf16.mxu0 %v3299
          %3570 = vmatpush1.bf16.msra.mxu0 %v3298
          %3571 = vmatprep.subr.bf16.mxu0 %v3308
          %3572 = vmatpush1.bf16.msra.mxu0 %v3307
          %3573 = vmatprep.subr.bf16.mxu0 %v3317
          %3574 = vmatpush1.bf16.msra.mxu0 %v3316
          %3575 = vmatprep.subr.bf16.mxu0 %v3326
          %3576 = vmatpush1.bf16.msra.mxu0 %v3325
          %3577 = vmatprep.subr.bf16.mxu0 %v3335
          %3578 = vmatpush1.bf16.msra.mxu0 %v3334
          %3579 = vmatprep.subr.bf16.mxu0 %v3344
          %3580 = vmatpush1.bf16.msra.mxu0 %v3343
          %3581 = vmatprep.subr.bf16.mxu0 %v3353
          %3582 = vmatpush1.bf16.msra.mxu0 %v3352
          %3583 = vmatprep.subr.bf16.mxu0 %v3362
          %3584 = vmatpush1.bf16.msra.mxu0 %v3361
          %3585 = vmatprep.mubr.bf16.mxu0 %v2566
          %3586 = vmatmul.mubr.bf16.gmra.mrb[0].mxu0 %v2565
          %v3587 = vpop.f32.mrb[0].mxu0
          %v3588 = vadd.f32 %v2742, %v3587
          %v3589 = vpop.f32.mrb[0].mxu0
          %v3590 = vadd.f32 %v2746, %v3589
          %v3591 = vpop.f32.mrb[0].mxu0
          %v3592 = vpop.f32.mrb[0].mxu0
          %3593 = vdwg.mxu0
          %3594 = vmatprep.subr.bf16.mxu0 %v3229
          %3595 = vmatpush1.bf16.msra.mxu0 %v3228
          %3596 = vmatprep.subr.bf16.mxu0 %v3238
          %3597 = vmatpush1.bf16.msra.mxu0 %v3237
          %3598 = vmatprep.subr.bf16.mxu0 %v3247
          %3599 = vmatpush1.bf16.msra.mxu0 %v3246
          %3600 = vmatprep.subr.bf16.mxu0 %v3256
          %3601 = vmatpush1.bf16.msra.mxu0 %v3255
          %3602 = vmatprep.subr.bf16.mxu0 %v3265
          %3603 = vmatpush1.bf16.msra.mxu0 %v3264
          %3604 = vmatprep.subr.bf16.mxu0 %v3274
          %3605 = vmatpush1.bf16.msra.mxu0 %v3273
          %3606 = vmatprep.subr.bf16.mxu0 %v3283
          %3607 = vmatpush1.bf16.msra.mxu0 %v3282
          %3608 = vmatprep.subr.bf16.mxu0 %v3292
          %3609 = vmatpush1.bf16.msra.mxu0 %v3291
          %3610 = vmatprep.subr.bf16.mxu0 %v3301
          %3611 = vmatpush1.bf16.msra.mxu0 %v3300
          %3612 = vmatprep.subr.bf16.mxu0 %v3310
          %3613 = vmatpush1.bf16.msra.mxu0 %v3309
          %3614 = vmatprep.subr.bf16.mxu0 %v3319
          %3615 = vmatpush1.bf16.msra.mxu0 %v3318
          %3616 = vmatprep.subr.bf16.mxu0 %v3328
          %3617 = vmatpush1.bf16.msra.mxu0 %v3327
          %3618 = vmatprep.subr.bf16.mxu0 %v3337
          %3619 = vmatpush1.bf16.msra.mxu0 %v3336
          %3620 = vmatprep.subr.bf16.mxu0 %v3346
          %3621 = vmatpush1.bf16.msra.mxu0 %v3345
          %3622 = vmatprep.subr.bf16.mxu0 %v3355
          %3623 = vmatpush1.bf16.msra.mxu0 %v3354
          %3624 = vmatprep.subr.bf16.mxu0 %v3364
          %3625 = vmatpush1.bf16.msra.mxu0 %v3363
          %3626 = vmatprep.mubr.bf16.mxu0 %v2566
          %3627 = vmatmul.mubr.bf16.gmra.mrb[0].mxu0 %v2565
          %v3628 = vpop.f32.mrb[0].mxu0
          %v3629 = vadd.f32 %v2750, %v3628
          %v3630 = vpop.f32.mrb[0].mxu0
          %v3631 = vadd.f32 %v2754, %v3630
          %v3632 = vpop.f32.mrb[0].mxu0
          %v3633 = vpop.f32.mrb[0].mxu0
          %3634 = vdwg.mxu0
          %3635 = vmatprep.subr.bf16.mxu0 %v3231
          %3636 = vmatpush1.bf16.msra.mxu0 %v3230
          %3637 = vmatprep.subr.bf16.mxu0 %v3240
          %3638 = vmatpush1.bf16.msra.mxu0 %v3239
          %3639 = vmatprep.subr.bf16.mxu0 %v3249
          %3640 = vmatpush1.bf16.msra.mxu0 %v3248
          %3641 = vmatprep.subr.bf16.mxu0 %v3258
          %3642 = vmatpush1.bf16.msra.mxu0 %v3257
          %3643 = vmatprep.subr.bf16.mxu0 %v3267
          %3644 = vmatpush1.bf16.msra.mxu0 %v3266
          %3645 = vmatprep.subr.bf16.mxu0 %v3276
          %3646 = vmatpush1.bf16.msra.mxu0 %v3275
          %3647 = vmatprep.subr.bf16.mxu0 %v3285
          %3648 = vmatpush1.bf16.msra.mxu0 %v3284
          %3649 = vmatprep.subr.bf16.mxu0 %v3294
          %3650 = vmatpush1.bf16.msra.mxu0 %v3293
          %3651 = vmatprep.subr.bf16.mxu0 %v3303
          %3652 = vmatpush1.bf16.msra.mxu0 %v3302
          %3653 = vmatprep.subr.bf16.mxu0 %v3312
          %3654 = vmatpush1.bf16.msra.mxu0 %v3311
          %3655 = vmatprep.subr.bf16.mxu0 %v3321
          %3656 = vmatpush1.bf16.msra.mxu0 %v3320
          %3657 = vmatprep.subr.bf16.mxu0 %v3330
          %3658 = vmatpush1.bf16.msra.mxu0 %v3329
          %3659 = vmatprep.subr.bf16.mxu0 %v3339
          %3660 = vmatpush1.bf16.msra.mxu0 %v3338
          %3661 = vmatprep.subr.bf16.mxu0 %v3348
          %3662 = vmatpush1.bf16.msra.mxu0 %v3347
          %3663 = vmatprep.subr.bf16.mxu0 %v3357
          %3664 = vmatpush1.bf16.msra.mxu0 %v3356
          %3665 = vmatprep.subr.bf16.mxu0 %v3366
          %3666 = vmatpush1.bf16.msra.mxu0 %v3365
          %3667 = vmatprep.mubr.bf16.mxu0 %v2566
          %3668 = vmatmul.mubr.bf16.gmra.mrb[0].mxu0 %v2565
          %v3669 = vpop.f32.mrb[0].mxu0
          %v3670 = vadd.f32 %v2758, %v3669
          %v3671 = vpop.f32.mrb[0].mxu0
          %v3672 = vadd.f32 %v2762, %v3671
          %v3673 = vpop.f32.mrb[0].mxu0
          %v3674 = vpop.f32.mrb[0].mxu0
          %3675 = vdwg.mxu0
          %3676 = vmatprep.subr.bf16.mxu0 0
          %3677 = vmatpush1.bf16.msra.mxu0 %v3232
          %3678 = vmatprep.subr.bf16.mxu0 0
          %3679 = vmatpush1.bf16.msra.mxu0 %v3241
          %3680 = vmatprep.subr.bf16.mxu0 0
          %3681 = vmatpush1.bf16.msra.mxu0 %v3250
          %3682 = vmatprep.subr.bf16.mxu0 0
          %3683 = vmatpush1.bf16.msra.mxu0 %v3259
          %3684 = vmatprep.subr.bf16.mxu0 0
          %3685 = vmatpush1.bf16.msra.mxu0 %v3268
          %3686 = vmatprep.subr.bf16.mxu0 0
          %3687 = vmatpush1.bf16.msra.mxu0 %v3277
          %3688 = vmatprep.subr.bf16.mxu0 0
          %3689 = vmatpush1.bf16.msra.mxu0 %v3286
          %3690 = vmatprep.subr.bf16.mxu0 0
          %3691 = vmatpush1.bf16.msra.mxu0 %v3295
          %3692 = vmatprep.subr.bf16.mxu0 0
          %3693 = vmatpush1.bf16.msra.mxu0 %v3304
          %3694 = vmatprep.subr.bf16.mxu0 0
          %3695 = vmatpush1.bf16.msra.mxu0 %v3313
          %3696 = vmatprep.subr.bf16.mxu0 0
          %3697 = vmatpush1.bf16.msra.mxu0 %v3322
          %3698 = vmatprep.subr.bf16.mxu0 0
          %3699 = vmatpush1.bf16.msra.mxu0 %v3331
          %3700 = vmatprep.subr.bf16.mxu0 0
          %3701 = vmatpush1.bf16.msra.mxu0 %v3340
          %3702 = vmatprep.subr.bf16.mxu0 0
          %3703 = vmatpush1.bf16.msra.mxu0 %v3349
          %3704 = vmatprep.subr.bf16.mxu0 0
          %3705 = vmatpush1.bf16.msra.mxu0 %v3358
          %3706 = vmatprep.subr.bf16.mxu0 0
          %3707 = vmatpush1.bf16.msra.mxu0 %v3367
          %3708 = vmatprep.mubr.bf16.mxu0 %v2566
          %3709 = vmatmul.mubr.bf16.gmra.mrb[0].mxu0 %v2565
          %v3710 = vpop.f32.mrb[0].mxu0
          %v3711 = vadd.f32 %v2766, %v3710
          %v3712 = vpop.f32.mrb[0].mxu0
          %v3713 = vpop.f32.mrb[0].mxu0
          %v3714 = vpop.f32.mrb[0].mxu0
          %3715 = vdwg.mxu0
          %vm3716 = vcmp.gt.f32.partialorder %v3547, 0.0
          %vm3717 = vcmp.gt.f32.partialorder %v3549, 0.0
          %vm3718 = vcmp.gt.f32.partialorder %v3588, 0.0
          %vm3719 = vcmp.gt.f32.partialorder %v3590, 0.0
          %vm3720 = vcmp.gt.f32.partialorder %v3629, 0.0
          %vm3721 = vcmp.gt.f32.partialorder %v3631, 0.0
          %vm3722 = vcmp.gt.f32.partialorder %v3670, 0.0
          %vm3723 = vcmp.gt.f32.partialorder %v3672, 0.0
          %v3724 = vmul.f32 %v3547, 0.2
          %v3725 = vmul.f32 %v3549, 0.2
          %v3726 = vmul.f32 %v3588, 0.2
          %v3727 = vmul.f32 %v3590, 0.2
          %v3728 = vmul.f32 %v3629, 0.2
          %v3729 = vmul.f32 %v3631, 0.2
          %v3730 = vmul.f32 %v3670, 0.2
          %v3731 = vmul.f32 %v3672, 0.2
          %v3732 = vsel %vm3716, %v3547, %v3724
          %v3733 = vsel %vm3717, %v3549, %v3725
          %v3734 = vsel %vm3718, %v3588, %v3726
          %v3735 = vsel %vm3719, %v3590, %v3727
          %v3736 = vsel %vm3720, %v3629, %v3728
          %v3737 = vsel %vm3721, %v3631, %v3729
          %v3738 = vsel %vm3722, %v3670, %v3730
          %v3739 = vsel %vm3723, %v3672, %v3731
          %v3740 = vpack.c.bf16 %v3732, %v3732
          %v3741 = vpack.c.bf16 %v3733, %v3733
          %v3742 = vpack.c.bf16 %v3734, %v3734
          %v3743 = vpack.c.bf16 %v3735, %v3735
          %v3744 = vpack.c.bf16 %v3736, %v3736
          %v3745 = vpack.c.bf16 %v3737, %v3737
          %v3746 = vpack.c.bf16 %v3738, %v3738
          %v3747 = vpack.c.bf16 %v3739, %v3739
          %3748 = vst [vmem:[#allocation18] sm:$0xff] %v3711
          %v3749 = vld [vmem:[#allocation15] sm:$0xf]
          %v3750 = vld [vmem:[#allocation15 + $0x4] sm:$0xf]
          %v3751 = vld [vmem:[#allocation15 + $0x8] sm:$0xf]
          %v3752 = vld [vmem:[#allocation15 + $0xc] sm:$0xf]
          %v3753 = vld [vmem:[#allocation15 + $0x10] sm:$0xf]
          %v3754 = vld [vmem:[#allocation15 + $0x14] sm:$0xf]
          %v3755 = vld [vmem:[#allocation15 + $0x18] sm:$0xf]
          %v3756 = vld [vmem:[#allocation15 + $0x1c] sm:$0xf]
          %v3757 = vld [vmem:[#allocation15 + $0x20] sm:$0xf]
          %v3758 = vld [vmem:[#allocation15 + $0x24] sm:$0xf]
          %v3759 = vld [vmem:[#allocation15 + $0x28] sm:$0xf]
          %v3760 = vld [vmem:[#allocation15 + $0x2c] sm:$0xf]
          %v3761 = vld [vmem:[#allocation15 + $0x30] sm:$0xf]
          %v3762 = vld [vmem:[#allocation15 + $0x34] sm:$0xf]
          %v3763 = vld [vmem:[#allocation15 + $0x38] sm:$0xf]
          %v3764 = vld [vmem:[#allocation15 + $0x3c] sm:$0xf]
          %v3765 = vld [vmem:[#allocation15 + $0x40] sm:$0xf]
          %v3766 = vld [vmem:[#allocation15 + $0x44] sm:$0xf]
          %v3767 = vld [vmem:[#allocation15 + $0x48] sm:$0xf]
          %v3768 = vld [vmem:[#allocation15 + $0x4c] sm:$0xf]
          %v3769 = vld [vmem:[#allocation15 + $0x50] sm:$0xf]
          %v3770 = vld [vmem:[#allocation15 + $0x54] sm:$0xf]
          %v3771 = vld [vmem:[#allocation15 + $0x58] sm:$0xf]
          %v3772 = vld [vmem:[#allocation15 + $0x5c] sm:$0xf]
          %v3773 = vld [vmem:[#allocation15 + $0x60] sm:$0xf]
          %v3774 = vld [vmem:[#allocation15 + $0x64] sm:$0xf]
          %v3775 = vld [vmem:[#allocation15 + $0x68] sm:$0xf]
          %v3776 = vld [vmem:[#allocation15 + $0x6c] sm:$0xf]
          %v3777 = vld [vmem:[#allocation15 + $0x70] sm:$0xf]
          %v3778 = vld [vmem:[#allocation15 + $0x74] sm:$0xf]
          %v3779 = vld [vmem:[#allocation15 + $0x78] sm:$0xf]
          %v3780 = vld [vmem:[#allocation15 + $0x7c] sm:$0xf]
          %v3781 = vld [vmem:[#allocation15 + $0x80] sm:$0xf]
          %v3782 = vld [vmem:[#allocation15 + $0x84] sm:$0xf]
          %v3783 = vld [vmem:[#allocation15 + $0x88] sm:$0xf]
          %v3784 = vld [vmem:[#allocation15 + $0x8c] sm:$0xf]
          %v3785 = vld [vmem:[#allocation15 + $0x90] sm:$0xf]
          %v3786 = vld [vmem:[#allocation15 + $0x94] sm:$0xf]
          %v3787 = vld [vmem:[#allocation15 + $0x98] sm:$0xf]
          %v3788 = vld [vmem:[#allocation15 + $0x9c] sm:$0xf]
          %v3789 = vld [vmem:[#allocation15 + $0xa0] sm:$0xf]
          %v3790 = vld [vmem:[#allocation15 + $0xa4] sm:$0xf]
          %v3791 = vld [vmem:[#allocation15 + $0xa8] sm:$0xf]
          %v3792 = vld [vmem:[#allocation15 + $0xac] sm:$0xf]
          %v3793 = vld [vmem:[#allocation15 + $0xb0] sm:$0xf]
          %v3794 = vld [vmem:[#allocation15 + $0xb4] sm:$0xf]
          %v3795 = vld [vmem:[#allocation15 + $0xb8] sm:$0xf]
          %v3796 = vld [vmem:[#allocation15 + $0xbc] sm:$0xf]
          %v3797 = vld [vmem:[#allocation15 + $0xc0] sm:$0xf]
          %v3798 = vld [vmem:[#allocation15 + $0xc4] sm:$0xf]
          %v3799 = vld [vmem:[#allocation15 + $0xc8] sm:$0xf]
          %v3800 = vld [vmem:[#allocation15 + $0xcc] sm:$0xf]
          %v3801 = vld [vmem:[#allocation15 + $0xd0] sm:$0xf]
          %v3802 = vld [vmem:[#allocation15 + $0xd4] sm:$0xf]
          %v3803 = vld [vmem:[#allocation15 + $0xd8] sm:$0xf]
          %v3804 = vld [vmem:[#allocation15 + $0xdc] sm:$0xf]
          %v3805 = vld [vmem:[#allocation15 + $0xe0] sm:$0xf]
          %v3806 = vld [vmem:[#allocation15 + $0xe4] sm:$0xf]
          %v3807 = vld [vmem:[#allocation15 + $0xe8] sm:$0xf]
          %v3808 = vld [vmem:[#allocation15 + $0xec] sm:$0xf]
          %v3809 = vld [vmem:[#allocation15 + $0xf0] sm:$0xf]
          %v3810 = vld [vmem:[#allocation15 + $0xf4] sm:$0xf]
          %v3811 = vld [vmem:[#allocation15 + $0xf8] sm:$0xf]
          %v3812 = vld [vmem:[#allocation15 + $0xfc] sm:$0xf]
          %v3813 = vld [vmem:[#allocation15 + $0x100] sm:$0xf]
          %v3814 = vld [vmem:[#allocation15 + $0x104] sm:$0xf]
          %v3815 = vld [vmem:[#allocation15 + $0x108] sm:$0xf]
          %v3816 = vld [vmem:[#allocation15 + $0x10c] sm:$0xf]
          %v3817 = vld [vmem:[#allocation15 + $0x110] sm:$0xf]
          %v3818 = vld [vmem:[#allocation15 + $0x114] sm:$0xf]
          %v3819 = vld [vmem:[#allocation15 + $0x118] sm:$0xf]
          %v3820 = vld [vmem:[#allocation15 + $0x11c] sm:$0xf]
          %v3821 = vld [vmem:[#allocation15 + $0x120] sm:$0xf]
          %v3822 = vld [vmem:[#allocation15 + $0x124] sm:$0xf]
          %v3823 = vld [vmem:[#allocation15 + $0x128] sm:$0xf]
          %v3824 = vld [vmem:[#allocation15 + $0x12c] sm:$0xf]
          %v3825 = vld [vmem:[#allocation15 + $0x130] sm:$0xf]
          %v3826 = vld [vmem:[#allocation15 + $0x134] sm:$0xf]
          %v3827 = vld [vmem:[#allocation15 + $0x138] sm:$0xf]
          %v3828 = vld [vmem:[#allocation15 + $0x13c] sm:$0xf]
          %v3829 = vld [vmem:[#allocation15 + $0x140] sm:$0xf]
          %v3830 = vld [vmem:[#allocation15 + $0x144] sm:$0xf]
          %v3831 = vld [vmem:[#allocation15 + $0x148] sm:$0xf]
          %v3832 = vld [vmem:[#allocation15 + $0x14c] sm:$0xf]
          %v3833 = vld [vmem:[#allocation15 + $0x150] sm:$0xf]
          %v3834 = vld [vmem:[#allocation15 + $0x154] sm:$0xf]
          %v3835 = vld [vmem:[#allocation15 + $0x158] sm:$0xf]
          %v3836 = vld [vmem:[#allocation15 + $0x15c] sm:$0xf]
          %v3837 = vld [vmem:[#allocation15 + $0x160] sm:$0xf]
          %v3838 = vld [vmem:[#allocation15 + $0x164] sm:$0xf]
          %v3839 = vld [vmem:[#allocation15 + $0x168] sm:$0xf]
          %v3840 = vld [vmem:[#allocation15 + $0x16c] sm:$0xf]
          %v3841 = vld [vmem:[#allocation15 + $0x170] sm:$0xf]
          %v3842 = vld [vmem:[#allocation15 + $0x174] sm:$0xf]
          %v3843 = vld [vmem:[#allocation15 + $0x178] sm:$0xf]
          %v3844 = vld [vmem:[#allocation15 + $0x17c] sm:$0xf]
          %v3845 = vld [vmem:[#allocation15 + $0x180] sm:$0xf]
          %v3846 = vld [vmem:[#allocation15 + $0x184] sm:$0xf]
          %v3847 = vld [vmem:[#allocation15 + $0x188] sm:$0xf]
          %v3848 = vld [vmem:[#allocation15 + $0x18c] sm:$0xf]
          %v3849 = vld [vmem:[#allocation15 + $0x190] sm:$0xf]
          %v3850 = vld [vmem:[#allocation15 + $0x194] sm:$0xf]
          %v3851 = vld [vmem:[#allocation15 + $0x198] sm:$0xf]
          %v3852 = vld [vmem:[#allocation15 + $0x19c] sm:$0xf]
          %v3853 = vld [vmem:[#allocation15 + $0x1a0] sm:$0xf]
          %v3854 = vld [vmem:[#allocation15 + $0x1a4] sm:$0xf]
          %v3855 = vld [vmem:[#allocation15 + $0x1a8] sm:$0xf]
          %v3856 = vld [vmem:[#allocation15 + $0x1ac] sm:$0xf]
          %v3857 = vld [vmem:[#allocation15 + $0x1b0] sm:$0xf]
          %v3858 = vld [vmem:[#allocation15 + $0x1b4] sm:$0xf]
          %v3859 = vld [vmem:[#allocation15 + $0x1b8] sm:$0xf]
          %v3860 = vld [vmem:[#allocation15 + $0x1bc] sm:$0xf]
          %v3861 = vld [vmem:[#allocation15 + $0x1c0] sm:$0xf]
          %v3862 = vld [vmem:[#allocation15 + $0x1c4] sm:$0xf]
          %v3863 = vld [vmem:[#allocation15 + $0x1c8] sm:$0xf]
          %v3864 = vld [vmem:[#allocation15 + $0x1cc] sm:$0xf]
          %v3865 = vld [vmem:[#allocation15 + $0x1d0] sm:$0xf]
          %v3866 = vld [vmem:[#allocation15 + $0x1d4] sm:$0xf]
          %v3867 = vld [vmem:[#allocation15 + $0x1d8] sm:$0xf]
          %v3868 = vld [vmem:[#allocation15 + $0x1dc] sm:$0xf]
          %v3869 = vld [vmem:[#allocation15 + $0x1e0] sm:$0xf]
          %v3870 = vld [vmem:[#allocation15 + $0x1e4] sm:$0xf]
          %v3871 = vld [vmem:[#allocation15 + $0x1e8] sm:$0xf]
          %v3872 = vld [vmem:[#allocation15 + $0x1ec] sm:$0xf]
          %v3873 = vld [vmem:[#allocation15 + $0x1f0] sm:$0xf]
          %v3874 = vld [vmem:[#allocation15 + $0x1f4] sm:$0xf]
          %v3875 = vld [vmem:[#allocation15 + $0x1f8] sm:$0xf]
          %v3876 = vld [vmem:[#allocation15 + $0x1fc] sm:$0xf]
          %v3877 = vld [vmem:[#allocation17] sm:$0x1]
          %v3879 = vlaneseq
          %v3880 = vshrl.u32 %v3879, 7
          %v3881 = vsub.s32 0, %v3880
          %v3882 = vrot.slane %v3877, %v3881
          %v4012 = vunpack.c.l.b16 %v3749
          %v4013 = vunpack.c.l.b16 %v3750
          %v4014 = vunpack.c.l.b16 %v3751
          %v4015 = vunpack.c.l.b16 %v3752
          %v4016 = vunpack.c.l.b16 %v3753
          %v4017 = vunpack.c.l.b16 %v3754
          %v4018 = vunpack.c.l.b16 %v3755
          %v4019 = vunpack.c.l.b16 %v3756
          %v4020 = vunpack.c.l.b16 %v3757
          %v4021 = vunpack.c.l.b16 %v3758
          %v4022 = vunpack.c.l.b16 %v3759
          %v4023 = vunpack.c.l.b16 %v3760
          %v4024 = vunpack.c.l.b16 %v3761
          %v4025 = vunpack.c.l.b16 %v3762
          %v4026 = vunpack.c.l.b16 %v3763
          %v4027 = vunpack.c.l.b16 %v3764
          %v4028 = vunpack.c.l.b16 %v3765
          %v4029 = vunpack.c.l.b16 %v3766
          %v4030 = vunpack.c.l.b16 %v3767
          %v4031 = vunpack.c.l.b16 %v3768
          %v4032 = vunpack.c.l.b16 %v3769
          %v4033 = vunpack.c.l.b16 %v3770
          %v4034 = vunpack.c.l.b16 %v3771
          %v4035 = vunpack.c.l.b16 %v3772
          %v4036 = vunpack.c.l.b16 %v3773
          %v4037 = vunpack.c.l.b16 %v3774
          %v4038 = vunpack.c.l.b16 %v3775
          %v4039 = vunpack.c.l.b16 %v3776
          %v4040 = vunpack.c.l.b16 %v3777
          %v4041 = vunpack.c.l.b16 %v3778
          %v4042 = vunpack.c.l.b16 %v3779
          %v4043 = vunpack.c.l.b16 %v3780
          %v4044 = vunpack.c.l.b16 %v3781
          %v4045 = vunpack.c.l.b16 %v3782
          %v4046 = vunpack.c.l.b16 %v3783
          %v4047 = vunpack.c.l.b16 %v3784
          %v4048 = vunpack.c.l.b16 %v3785
          %v4049 = vunpack.c.l.b16 %v3786
          %v4050 = vunpack.c.l.b16 %v3787
          %v4051 = vunpack.c.l.b16 %v3788
          %v4052 = vunpack.c.l.b16 %v3789
          %v4053 = vunpack.c.l.b16 %v3790
          %v4054 = vunpack.c.l.b16 %v3791
          %v4055 = vunpack.c.l.b16 %v3792
          %v4056 = vunpack.c.l.b16 %v3793
          %v4057 = vunpack.c.l.b16 %v3794
          %v4058 = vunpack.c.l.b16 %v3795
          %v4059 = vunpack.c.l.b16 %v3796
          %v4060 = vunpack.c.l.b16 %v3797
          %v4061 = vunpack.c.l.b16 %v3798
          %v4062 = vunpack.c.l.b16 %v3799
          %v4063 = vunpack.c.l.b16 %v3800
          %v4064 = vunpack.c.l.b16 %v3801
          %v4065 = vunpack.c.l.b16 %v3802
          %v4066 = vunpack.c.l.b16 %v3803
          %v4067 = vunpack.c.l.b16 %v3804
          %v4068 = vunpack.c.l.b16 %v3805
          %v4069 = vunpack.c.l.b16 %v3806
          %v4070 = vunpack.c.l.b16 %v3807
          %v4071 = vunpack.c.l.b16 %v3808
          %v4072 = vunpack.c.l.b16 %v3809
          %v4073 = vunpack.c.l.b16 %v3810
          %v4074 = vunpack.c.l.b16 %v3811
          %v4075 = vunpack.c.l.b16 %v3812
          %v4076 = vunpack.c.l.b16 %v3813
          %v4077 = vunpack.c.l.b16 %v3814
          %v4078 = vunpack.c.l.b16 %v3815
          %v4079 = vunpack.c.l.b16 %v3816
          %v4080 = vunpack.c.l.b16 %v3817
          %v4081 = vunpack.c.l.b16 %v3818
          %v4082 = vunpack.c.l.b16 %v3819
          %v4083 = vunpack.c.l.b16 %v3820
          %v4084 = vunpack.c.l.b16 %v3821
          %v4085 = vunpack.c.l.b16 %v3822
          %v4086 = vunpack.c.l.b16 %v3823
          %v4087 = vunpack.c.l.b16 %v3824
          %v4088 = vunpack.c.l.b16 %v3825
          %v4089 = vunpack.c.l.b16 %v3826
          %v4090 = vunpack.c.l.b16 %v3827
          %v4091 = vunpack.c.l.b16 %v3828
          %v4092 = vunpack.c.l.b16 %v3829
          %v4093 = vunpack.c.l.b16 %v3830
          %v4094 = vunpack.c.l.b16 %v3831
          %v4095 = vunpack.c.l.b16 %v3832
          %v4096 = vunpack.c.l.b16 %v3833
          %v4097 = vunpack.c.l.b16 %v3834
          %v4098 = vunpack.c.l.b16 %v3835
          %v4099 = vunpack.c.l.b16 %v3836
          %v4100 = vunpack.c.l.b16 %v3837
          %v4101 = vunpack.c.l.b16 %v3838
          %v4102 = vunpack.c.l.b16 %v3839
          %v4103 = vunpack.c.l.b16 %v3840
          %v4104 = vunpack.c.l.b16 %v3841
          %v4105 = vunpack.c.l.b16 %v3842
          %v4106 = vunpack.c.l.b16 %v3843
          %v4107 = vunpack.c.l.b16 %v3844
          %v4108 = vunpack.c.l.b16 %v3845
          %v4109 = vunpack.c.l.b16 %v3846
          %v4110 = vunpack.c.l.b16 %v3847
          %v4111 = vunpack.c.l.b16 %v3848
          %v4112 = vunpack.c.l.b16 %v3849
          %v4113 = vunpack.c.l.b16 %v3850
          %v4114 = vunpack.c.l.b16 %v3851
          %v4115 = vunpack.c.l.b16 %v3852
          %v4116 = vunpack.c.l.b16 %v3853
          %v4117 = vunpack.c.l.b16 %v3854
          %v4118 = vunpack.c.l.b16 %v3855
          %v4119 = vunpack.c.l.b16 %v3856
          %v4120 = vunpack.c.l.b16 %v3857
          %v4121 = vunpack.c.l.b16 %v3858
          %v4122 = vunpack.c.l.b16 %v3859
          %v4123 = vunpack.c.l.b16 %v3860
          %v4124 = vunpack.c.l.b16 %v3861
          %v4125 = vunpack.c.l.b16 %v3862
          %v4126 = vunpack.c.l.b16 %v3863
          %v4127 = vunpack.c.l.b16 %v3864
          %v4128 = vunpack.c.l.b16 %v3865
          %v4129 = vunpack.c.l.b16 %v3866
          %v4130 = vunpack.c.l.b16 %v3867
          %v4131 = vunpack.c.l.b16 %v3868
          %v4132 = vunpack.c.l.b16 %v3869
          %v4133 = vunpack.c.l.b16 %v3870
          %v4134 = vunpack.c.l.b16 %v3871
          %v4135 = vunpack.c.l.b16 %v3872
          %v4136 = vunpack.c.l.b16 %v3873
          %v4137 = vunpack.c.l.b16 %v3874
          %v4138 = vunpack.c.l.b16 %v3875
          %v4139 = vunpack.c.l.b16 %v3876
          %v4140 = vpack.c.b16 %v4013, %v4012
          %v4141 = vpack.c.b16 %v4015, %v4014
          %v4142 = vpack.c.b16 %v4017, %v4016
          %v4143 = vpack.c.b16 %v4019, %v4018
          %v4144 = vpack.c.b16 %v4021, %v4020
          %v4145 = vpack.c.b16 %v4023, %v4022
          %v4146 = vpack.c.b16 %v4025, %v4024
          %v4147 = vpack.c.b16 %v4027, %v4026
          %v4148 = vpack.c.b16 %v4029, %v4028
          %v4149 = vpack.c.b16 %v4031, %v4030
          %v4150 = vpack.c.b16 %v4033, %v4032
          %v4151 = vpack.c.b16 %v4035, %v4034
          %v4152 = vpack.c.b16 %v4037, %v4036
          %v4153 = vpack.c.b16 %v4039, %v4038
          %v4154 = vpack.c.b16 %v4041, %v4040
          %v4155 = vpack.c.b16 %v4043, %v4042
          %v4156 = vpack.c.b16 %v4045, %v4044
          %v4157 = vpack.c.b16 %v4047, %v4046
          %v4158 = vpack.c.b16 %v4049, %v4048
          %v4159 = vpack.c.b16 %v4051, %v4050
          %v4160 = vpack.c.b16 %v4053, %v4052
          %v4161 = vpack.c.b16 %v4055, %v4054
          %v4162 = vpack.c.b16 %v4057, %v4056
          %v4163 = vpack.c.b16 %v4059, %v4058
          %v4164 = vpack.c.b16 %v4061, %v4060
          %v4165 = vpack.c.b16 %v4063, %v4062
          %v4166 = vpack.c.b16 %v4065, %v4064
          %v4167 = vpack.c.b16 %v4067, %v4066
          %v4168 = vpack.c.b16 %v4069, %v4068
          %v4169 = vpack.c.b16 %v4071, %v4070
          %v4170 = vpack.c.b16 %v4073, %v4072
          %v4171 = vpack.c.b16 %v4075, %v4074
          %v4172 = vpack.c.b16 %v4077, %v4076
          %v4173 = vpack.c.b16 %v4079, %v4078
          %v4174 = vpack.c.b16 %v4081, %v4080
          %v4175 = vpack.c.b16 %v4083, %v4082
          %v4176 = vpack.c.b16 %v4085, %v4084
          %v4177 = vpack.c.b16 %v4087, %v4086
          %v4178 = vpack.c.b16 %v4089, %v4088
          %v4179 = vpack.c.b16 %v4091, %v4090
          %v4180 = vpack.c.b16 %v4093, %v4092
          %v4181 = vpack.c.b16 %v4095, %v4094
          %v4182 = vpack.c.b16 %v4097, %v4096
          %v4183 = vpack.c.b16 %v4099, %v4098
          %v4184 = vpack.c.b16 %v4101, %v4100
          %v4185 = vpack.c.b16 %v4103, %v4102
          %v4186 = vpack.c.b16 %v4105, %v4104
          %v4187 = vpack.c.b16 %v4107, %v4106
          %v4188 = vpack.c.b16 %v4109, %v4108
          %v4189 = vpack.c.b16 %v4111, %v4110
          %v4190 = vpack.c.b16 %v4113, %v4112
          %v4191 = vpack.c.b16 %v4115, %v4114
          %v4192 = vpack.c.b16 %v4117, %v4116
          %v4193 = vpack.c.b16 %v4119, %v4118
          %v4194 = vpack.c.b16 %v4121, %v4120
          %v4195 = vpack.c.b16 %v4123, %v4122
          %v4196 = vpack.c.b16 %v4125, %v4124
          %v4197 = vpack.c.b16 %v4127, %v4126
          %v4198 = vpack.c.b16 %v4129, %v4128
          %v4199 = vpack.c.b16 %v4131, %v4130
          %v4200 = vpack.c.b16 %v4133, %v4132
          %v4201 = vpack.c.b16 %v4135, %v4134
          %v4202 = vpack.c.b16 %v4137, %v4136
          %v4203 = vpack.c.b16 %v4139, %v4138
          %4268 = vmatprep.subr.bf16.mxu0 0
          %4269 = vmatpush1.bf16.msra.mxu0 %v4140
          %4270 = vmatprep.subr.bf16.mxu0 0
          %4271 = vmatpush1.bf16.msra.mxu0 %v4141
          %4272 = vmatprep.subr.bf16.mxu0 0
          %4273 = vmatpush1.bf16.msra.mxu0 %v4142
          %4274 = vmatprep.subr.bf16.mxu0 0
          %4275 = vmatpush1.bf16.msra.mxu0 %v4143
          %4276 = vmatprep.subr.bf16.mxu0 0
          %4277 = vmatpush1.bf16.msra.mxu0 %v4144
          %4278 = vmatprep.subr.bf16.mxu0 0
          %4279 = vmatpush1.bf16.msra.mxu0 %v4145
          %4280 = vmatprep.subr.bf16.mxu0 0
          %4281 = vmatpush1.bf16.msra.mxu0 %v4146
          %4282 = vmatprep.subr.bf16.mxu0 0
          %4283 = vmatpush1.bf16.msra.mxu0 %v4147
          %4284 = vmatprep.subr.bf16.mxu0 0
          %4285 = vmatpush1.bf16.msra.mxu0 %v4148
          %4286 = vmatprep.subr.bf16.mxu0 0
          %4287 = vmatpush1.bf16.msra.mxu0 %v4149
          %4288 = vmatprep.subr.bf16.mxu0 0
          %4289 = vmatpush1.bf16.msra.mxu0 %v4150
          %4290 = vmatprep.subr.bf16.mxu0 0
          %4291 = vmatpush1.bf16.msra.mxu0 %v4151
          %4292 = vmatprep.subr.bf16.mxu0 0
          %4293 = vmatpush1.bf16.msra.mxu0 %v4152
          %4294 = vmatprep.subr.bf16.mxu0 0
          %4295 = vmatpush1.bf16.msra.mxu0 %v4153
          %4296 = vmatprep.subr.bf16.mxu0 0
          %4297 = vmatpush1.bf16.msra.mxu0 %v4154
          %4298 = vmatprep.subr.bf16.mxu0 0
          %4299 = vmatpush1.bf16.msra.mxu0 %v4155
          %4300 = vmatprep.mubr.bf16.mxu0 %v3741
          %4301 = vmatmul.mubr.bf16.gmra.mrb[0].mxu0 %v3740
          %v4302 = vpop.f32.mrb[0].mxu0
          %v4303 = vadd.f32 %v3882, %v4302
          %v4304 = vpop.f32.mrb[0].mxu0
          %v4305 = vpop.f32.mrb[0].mxu0
          %v4306 = vpop.f32.mrb[0].mxu0
          %4307 = vdwg.mxu0
          %4308 = vmatprep.subr.bf16.mxu0 0
          %4309 = vmatpush1.bf16.msra.mxu0 %v4156
          %4310 = vmatprep.subr.bf16.mxu0 0
          %4311 = vmatpush1.bf16.msra.mxu0 %v4157
          %4312 = vmatprep.subr.bf16.mxu0 0
          %4313 = vmatpush1.bf16.msra.mxu0 %v4158
          %4314 = vmatprep.subr.bf16.mxu0 0
          %4315 = vmatpush1.bf16.msra.mxu0 %v4159
          %4316 = vmatprep.subr.bf16.mxu0 0
          %4317 = vmatpush1.bf16.msra.mxu0 %v4160
          %4318 = vmatprep.subr.bf16.mxu0 0
          %4319 = vmatpush1.bf16.msra.mxu0 %v4161
          %4320 = vmatprep.subr.bf16.mxu0 0
          %4321 = vmatpush1.bf16.msra.mxu0 %v4162
          %4322 = vmatprep.subr.bf16.mxu0 0
          %4323 = vmatpush1.bf16.msra.mxu0 %v4163
          %4324 = vmatprep.subr.bf16.mxu0 0
          %4325 = vmatpush1.bf16.msra.mxu0 %v4164
          %4326 = vmatprep.subr.bf16.mxu0 0
          %4327 = vmatpush1.bf16.msra.mxu0 %v4165
          %4328 = vmatprep.subr.bf16.mxu0 0
          %4329 = vmatpush1.bf16.msra.mxu0 %v4166
          %4330 = vmatprep.subr.bf16.mxu0 0
          %4331 = vmatpush1.bf16.msra.mxu0 %v4167
          %4332 = vmatprep.subr.bf16.mxu0 0
          %4333 = vmatpush1.bf16.msra.mxu0 %v4168
          %4334 = vmatprep.subr.bf16.mxu0 0
          %4335 = vmatpush1.bf16.msra.mxu0 %v4169
          %4336 = vmatprep.subr.bf16.mxu0 0
          %4337 = vmatpush1.bf16.msra.mxu0 %v4170
          %4338 = vmatprep.subr.bf16.mxu0 0
          %4339 = vmatpush1.bf16.msra.mxu0 %v4171
          %4340 = vmatprep.mubr.bf16.mxu0 %v3743
          %4341 = vmatmul.mubr.bf16.gmra.mrb[0].mxu0 %v3742
          %v4342 = vpop.f32.mrb[0].mxu0
          %v4343 = vadd.f32 %v4303, %v4342
          %v4344 = vpop.f32.mrb[0].mxu0
          %v4345 = vpop.f32.mrb[0].mxu0
          %v4346 = vpop.f32.mrb[0].mxu0
          %4347 = vdwg.mxu0
          %4348 = vmatprep.subr.bf16.mxu0 0
          %4349 = vmatpush1.bf16.msra.mxu0 %v4172
          %4350 = vmatprep.subr.bf16.mxu0 0
          %4351 = vmatpush1.bf16.msra.mxu0 %v4173
          %4352 = vmatprep.subr.bf16.mxu0 0
          %4353 = vmatpush1.bf16.msra.mxu0 %v4174
          %4354 = vmatprep.subr.bf16.mxu0 0
          %4355 = vmatpush1.bf16.msra.mxu0 %v4175
          %4356 = vmatprep.subr.bf16.mxu0 0
          %4357 = vmatpush1.bf16.msra.mxu0 %v4176
          %4358 = vmatprep.subr.bf16.mxu0 0
          %4359 = vmatpush1.bf16.msra.mxu0 %v4177
          %4360 = vmatprep.subr.bf16.mxu0 0
          %4361 = vmatpush1.bf16.msra.mxu0 %v4178
          %4362 = vmatprep.subr.bf16.mxu0 0
          %4363 = vmatpush1.bf16.msra.mxu0 %v4179
          %4364 = vmatprep.subr.bf16.mxu0 0
          %4365 = vmatpush1.bf16.msra.mxu0 %v4180
          %4366 = vmatprep.subr.bf16.mxu0 0
          %4367 = vmatpush1.bf16.msra.mxu0 %v4181
          %4368 = vmatprep.subr.bf16.mxu0 0
          %4369 = vmatpush1.bf16.msra.mxu0 %v4182
          %4370 = vmatprep.subr.bf16.mxu0 0
          %4371 = vmatpush1.bf16.msra.mxu0 %v4183
          %4372 = vmatprep.subr.bf16.mxu0 0
          %4373 = vmatpush1.bf16.msra.mxu0 %v4184
          %4374 = vmatprep.subr.bf16.mxu0 0
          %4375 = vmatpush1.bf16.msra.mxu0 %v4185
          %4376 = vmatprep.subr.bf16.mxu0 0
          %4377 = vmatpush1.bf16.msra.mxu0 %v4186
          %4378 = vmatprep.subr.bf16.mxu0 0
          %4379 = vmatpush1.bf16.msra.mxu0 %v4187
          %4380 = vmatprep.mubr.bf16.mxu0 %v3745
          %4381 = vmatmul.mubr.bf16.gmra.mrb[0].mxu0 %v3744
          %v4382 = vpop.f32.mrb[0].mxu0
          %v4383 = vadd.f32 %v4343, %v4382
          %v4384 = vpop.f32.mrb[0].mxu0
          %v4385 = vpop.f32.mrb[0].mxu0
          %v4386 = vpop.f32.mrb[0].mxu0
          %4387 = vdwg.mxu0
          %4388 = vmatprep.subr.bf16.mxu0 0
          %4389 = vmatpush1.bf16.msra.mxu0 %v4188
          %4390 = vmatprep.subr.bf16.mxu0 0
          %4391 = vmatpush1.bf16.msra.mxu0 %v4189
          %4392 = vmatprep.subr.bf16.mxu0 0
          %4393 = vmatpush1.bf16.msra.mxu0 %v4190
          %4394 = vmatprep.subr.bf16.mxu0 0
          %4395 = vmatpush1.bf16.msra.mxu0 %v4191
          %4396 = vmatprep.subr.bf16.mxu0 0
          %4397 = vmatpush1.bf16.msra.mxu0 %v4192
          %4398 = vmatprep.subr.bf16.mxu0 0
          %4399 = vmatpush1.bf16.msra.mxu0 %v4193
          %4400 = vmatprep.subr.bf16.mxu0 0
          %4401 = vmatpush1.bf16.msra.mxu0 %v4194
          %4402 = vmatprep.subr.bf16.mxu0 0
          %4403 = vmatpush1.bf16.msra.mxu0 %v4195
          %4404 = vmatprep.subr.bf16.mxu0 0
          %4405 = vmatpush1.bf16.msra.mxu0 %v4196
          %4406 = vmatprep.subr.bf16.mxu0 0
          %4407 = vmatpush1.bf16.msra.mxu0 %v4197
          %4408 = vmatprep.subr.bf16.mxu0 0
          %4409 = vmatpush1.bf16.msra.mxu0 %v4198
          %4410 = vmatprep.subr.bf16.mxu0 0
          %4411 = vmatpush1.bf16.msra.mxu0 %v4199
          %4412 = vmatprep.subr.bf16.mxu0 0
          %4413 = vmatpush1.bf16.msra.mxu0 %v4200
          %4414 = vmatprep.subr.bf16.mxu0 0
          %4415 = vmatpush1.bf16.msra.mxu0 %v4201
          %4416 = vmatprep.subr.bf16.mxu0 0
          %4417 = vmatpush1.bf16.msra.mxu0 %v4202
          %4418 = vmatprep.subr.bf16.mxu0 0
          %4419 = vmatpush1.bf16.msra.mxu0 %v4203
          %4420 = vmatprep.mubr.bf16.mxu0 %v3747
          %4421 = vmatmul.mubr.bf16.gmra.mrb[0].mxu0 %v3746
          %v4422 = vpop.f32.mrb[0].mxu0
          %v4423 = vadd.f32 %v4383, %v4422
          %v4424 = vpop.f32.mrb[0].mxu0
          %v4425 = vpop.f32.mrb[0].mxu0
          %v4426 = vpop.f32.mrb[0].mxu0
          %4427 = vdwg.mxu0
          %4428 = vmax.xlane.f32.xlu0 %v4423
          %v4429 = vpop.xlane.xlu0 %4428
          %v4430 = vsub.f32 %v4423, %v4429
          %v4431 = vmul.f32 %v4430, 1.442695
          %v4432 = vpow.pop %v4431
          %4433 = vadd.xlane.f32.xlu0 %v4432
          %v4434 = vpop.xlane.xlu0 %4433
          %v4435 = vlog2.pop %v4434
          %v4436 = vmul.f32 %v4435, 0.6931472
          %v4437 = vsub.f32 %v4430, %v4436
          %4438 = vst [vmem:[#allocation19] sm:$0xff] %v4437
        $region100: #{tpu_custom_call.1} parent=55 // pred_fallthru
          _
        // Predicated region
        $region101: #{tpu_custom_call.1} parent=55 // pred_check
          %p4439 = pneg %p273
        $region102: #{tpu_custom_call.1} parent=55 // pred_check_branch
          %4441 = sbr.rel (%p4439) target = $region104
        $region103: #{tpu_custom_call.1} parent=55 // pred_region
          %s4443 = ssub.s32 128, 128
          %4444 = vsyncadd [#allocation5], %s4443
          %s4445 = smul.addr %s38, 128
          %s4446 = scalar_lea.hbm %s9, %s4445
          %s4448 = sshll.u32 [#allocation18], 4
          %s4449 = int_to_ptr.vmem [resolvable:$true] %s4448
          %4451 = dma.vmem_to_hbm [thread:$0]  %s4449, 128, %s4446, [#allocation5]
        $region104: #{tpu_custom_call.1} parent=55 // pred_fallthru
          _
        // Predicated region
        $region105: #{tpu_custom_call.1} parent=55 // pred_check
          %p4452 = pneg %p299
        $region106: #{tpu_custom_call.1} parent=55 // pred_check_branch
          %4454 = sbr.rel (%p4452) target = $region108
        $region107: #{tpu_custom_call.1} parent=55 // pred_region
          %s4456 = ssub.s32 128, 128
          %4457 = vsyncadd [#allocation20], %s4456
          %s4458 = smul.addr %s38, 128
          %s4459 = scalar_lea.hbm %s10, %s4458
          %s4461 = sshll.u32 [#allocation19], 4
          %s4462 = int_to_ptr.vmem [resolvable:$true] %s4461
          %4464 = dma.vmem_to_hbm [thread:$0]  %s4462, 128, %s4459, [#allocation20]
        $region108: #{tpu_custom_call.1} parent=55 // pred_fallthru
          _
        // Predicated region
        $region109: #{tpu_custom_call.1} parent=55 // pred_check
          %p4465 = pneg %p325
        $region110: #{tpu_custom_call.1} parent=55 // pred_check_branch
          %4467 = sbr.rel (%p4465) target = $region112
        $region111: #{tpu_custom_call.1} parent=55 // pred_region
          %s4469 = ssub.s32 256, 256
          %4470 = vsyncadd [#allocation20], %s4469
          %s4471 = smul.addr %s38, 2
          %s4472 = smul.addr %s4471, 128
          %s4473 = scalar_lea.hbm %s11, %s4472
          %s4475 = sshll.u32 [#allocation21], 4
          %s4476 = int_to_ptr.vmem [resolvable:$true] %s4475
          %4478 = dma.vmem_to_hbm [thread:$0]  %s4476, 256, %s4473, [#allocation20]
        $region112: #{tpu_custom_call.1} parent=55 // pred_fallthru
          _
        // Predicated region
        $region113: #{tpu_custom_call.1} parent=55 // pred_check
          %p4479 = pneg %p273
        $region114: #{tpu_custom_call.1} parent=55 // pred_check_branch
          %4481 = sbr.rel (%p4479) target = $region116
        $region115: #{tpu_custom_call.1} parent=55 // pred_region
          %4482 = dma.done [#allocation5], 128
        $region116: #{tpu_custom_call.1} parent=55 // pred_fallthru
          _
        // Predicated region
        $region117: #{tpu_custom_call.1} parent=55 // pred_check
          %p4483 = pneg %p299
        $region118: #{tpu_custom_call.1} parent=55 // pred_check_branch
          %4485 = sbr.rel (%p4483) target = $region120
        $region119: #{tpu_custom_call.1} parent=55 // pred_region
          %4486 = dma.done [#allocation20], 128
        $region120: #{tpu_custom_call.1} parent=55 // pred_fallthru
          _
        // Predicated region
        $region121: #{tpu_custom_call.1} parent=55 // pred_check
          %p4487 = pneg %p325
        $region122: #{tpu_custom_call.1} parent=55 // pred_check_branch
          %4489 = sbr.rel (%p4487) target = $region124
        $region123: #{tpu_custom_call.1} parent=55 // pred_region
          %4490 = dma.done [#allocation20], 256
        $region124: #{tpu_custom_call.1} parent=55 // pred_fallthru
          _
      $region56: #{tpu_custom_call.1} parent=5 // pred_fallthru
        _
      %p4491 = scmp.le.s32.totalorder 2, %s29
      // Predicated region
      $region125: #{tpu_custom_call.1} parent=5 // pred_check
        %p4492 = pneg %p4491
      $region126: #{tpu_custom_call.1} parent=5 // pred_check_branch
        %4494 = sbr.rel (%p4492) target = $region128
      $region127: #{tpu_custom_call.1} parent=5 // pred_region
        %s4495 = ssub.s32 %s29, 2
      $region128: #{tpu_custom_call.1} parent=5 // pred_fallthru
        _
    $region6: #{tpu_custom_call.1} parent=1 // loop_footer
      %s33 = sadd.s32 1, %s29
    $region7: #{tpu_custom_call.1} parent=1 // loop_footer_branch
      %28 = sbr.rel target = $region3
    $region8: #{tpu_custom_call.1} parent=1 // loop_exit
      _
    %4496 = vsyncpa [#allocation4], 1
    %s4497 = scalar_lea.sflag [#allocation4], 1
    %4498 = vsyncpa %s4497, 1
    %4499 = vsyncpa [#allocation7], 1
    %s4500 = scalar_lea.sflag [#allocation7], 1
    %4501 = vsyncpa %s4500, 1
    %4502 = vsyncpa [#allocation10], 1
    %s4503 = scalar_lea.sflag [#allocation10], 1
    %4504 = vsyncpa %s4503, 1
    %4505 = vsyncpa [#allocation13], 1
    %4506 = vsyncpa [#allocation16], 1
    %4507 = vsyncpa [#allocation5], 1
    %s4508 = scalar_lea.sflag [#allocation5], 1
    %4509 = vsyncpa %s4508, 1
    %4510 = vsyncpa [#allocation20], 1

</llo_original>
